<compile_context>
chip_gen: v7x
topology: tpu7x:2x2x1
jax: 0.10.0
libtpu: 0.0.40
codegen_flags: <defaults>
</compile_context>

<pallas_src>
import jax
import jax.numpy as jnp
from jax.experimental import pallas as pl
from jax.experimental.pallas import tpu as pltpu


# ---------------------------------------------------------------------------
# Small helpers
# ---------------------------------------------------------------------------
def _round_up(x, m):
    return -(-x // m) * m


def _pad2(a, rows, cols):
    a = jnp.asarray(a, jnp.float32)
    return jnp.pad(a, ((0, rows - a.shape[0]), (0, cols - a.shape[1])))


def _vmem_limit(act_tile_bytes, const_bytes, n_bufs=6):
    """Conservative scoped-VMEM request: enough for the pipeline, capped below
    physical capacity with headroom for Mosaic internal scratch."""
    try:
        cap = int(pltpu.get_tpu_info().vmem_capacity_bytes)
    except Exception:  # pragma: no cover - conservative fallback
        cap = 64 * 1024 * 1024
    cap -= 16 * 1024 * 1024
    need = n_bufs * act_tile_bytes + 2 * const_bytes + (1 << 20)
    return int(min(cap, max(2 * need, 32 * 1024 * 1024)))


def _choose_tile_rows(r, c_tot_pad, *, dtype_bytes=4, budget=8 * 1024 * 1024):
    """Row tile (sublane axis) for the batch-major path; multiple of 8."""
    max_rows = max(8, (budget // (6 * c_tot_pad * dtype_bytes)) // 8 * 8)
    target = min(1024, max_rows)
    if r <= target:
        return _round_up(r, 8)
    return target


def _choose_tile_hw(hw, c_tot_pad, *, dtype_bytes=4, budget=16 * 1024 * 1024):
    """Spatial (lane) tile for the channel-major path; multiple of 128.
    Decoupled from divisibility: caller pads hw up to a multiple of the tile."""
    max_lanes = max(128, (budget // (4 * c_tot_pad * dtype_bytes)) // 128 * 128)
    target = min(2048, max_lanes)
    if hw <= target:
        return _round_up(hw, 128)
    return target


# ---------------------------------------------------------------------------
# Kernel bodies
# ---------------------------------------------------------------------------
def _make_rows_kernel(c0p, c1p, iters, emit_branches, emit_mean):
    """Batch-major kernel: rows = batch*spatial (sublanes), lanes = channels.

    x_ref : (TR, c0p + c1p)   branch-0 channels | branch-1 channels
    w_ab  : (c0p, c1p)        weights[(0,1)]  (branch0 -> branch1)
    w_ba  : (c1p, c0p)        weights[(1,0)]  (branch1 -> branch0)
    b_a   : (1, c0p)          bias of the (1->0) conv
    b_b   : (1, c1p)          bias of the (0->1) conv
    """
    def kernel(x_ref, w_ab_ref, w_ba_ref, b_a_ref, b_b_ref, *out_refs):
        xa = x_ref[:, :c0p]
        xb = x_ref[:, c0p:]
        for _ in range(iters):
            bin_a = jnp.maximum(
                jnp.dot(xb, w_ba_ref[...], preferred_element_type=jnp.float32)
                + b_a_ref[...], 0.0)
            bin_b = jnp.maximum(
                jnp.dot(xa, w_ab_ref[...], preferred_element_type=jnp.float32)
                + b_b_ref[...], 0.0)
            xa = jnp.maximum(xa + bin_a, 0.0)
            xb = jnp.maximum(xb + bin_b, 0.0)
        idx = 0
        if emit_branches:
            o = out_refs[idx]; idx += 1
            o[:, :c0p] = xa.astype(o.dtype)
            o[:, c0p:] = xb.astype(o.dtype)
        if emit_mean:
            m = out_refs[idx]
            m[...] = (0.5 * (xa + xb)).astype(m.dtype)
    return kernel


def _make_cmajor_kernel(c0p, c1p, iters):
    """Channel-major kernel: channels on sublanes, spatial positions on lanes.

    x_ref  : (1, c0p + c1p, T)
    w_ba_t : (c0p, c1p)   weights[(1,0)].T   (branch1 -> branch0)
    w_ab_t : (c1p, c0p)   weights[(0,1)].T   (branch0 -> branch1)
    b_a    : (c0p, 1), b_b : (c1p, 1)
    """
    def kernel(x_ref, w_ba_t_ref, w_ab_t_ref, b_a_ref, b_b_ref, o_ref):
        x = x_ref[0]
        xa = x[:c0p, :]
        xb = x[c0p:, :]
        for _ in range(iters):
            bin_a = jnp.maximum(
                jnp.dot(w_ba_t_ref[...], xb, preferred_element_type=jnp.float32)
                + b_a_ref[...], 0.0)
            bin_b = jnp.maximum(
                jnp.dot(w_ab_t_ref[...], xa, preferred_element_type=jnp.float32)
                + b_b_ref[...], 0.0)
            xa = jnp.maximum(xa + bin_a, 0.0)
            xb = jnp.maximum(xb + bin_b, 0.0)
        o_ref[0, :c0p, :] = xa.astype(o_ref.dtype)
        o_ref[0, c0p:, :] = xb.astype(o_ref.dtype)
    return kernel


# ---------------------------------------------------------------------------
# pallas_call wrappers
# ---------------------------------------------------------------------------
def _mp_rows_call(x_all, w_ab, w_ba, b_a, b_b, *, tile_r, iters,
                  emit_branches, emit_mean, vmem_limit):
    r_pad, c_tot_pad = x_all.shape
    c0p = w_ab.shape[0]
    c1p = w_ba.shape[0]
    out_shapes, out_specs = [], []
    if emit_branches:
        out_shapes.append(jax.ShapeDtypeStruct((r_pad, c_tot_pad), jnp.float32))
        out_specs.append(pl.BlockSpec((tile_r, c_tot_pad), lambda r: (r, 0)))
    if emit_mean:
        out_shapes.append(jax.ShapeDtypeStruct((r_pad, c0p), jnp.float32))
        out_specs.append(pl.BlockSpec((tile_r, c0p), lambda r: (r, 0)))

    res = pl.pallas_call(
        _make_rows_kernel(c0p, c1p, iters, emit_branches, emit_mean),
        out_shape=tuple(out_shapes),
        grid_spec=pltpu.PrefetchScalarGridSpec(
            num_scalar_prefetch=0,
            grid=(r_pad // tile_r,),
            in_specs=[
                pl.BlockSpec((tile_r, c_tot_pad), lambda r: (r, 0)),   # activations
                pl.BlockSpec((c0p, c1p), lambda r: (0, 0)),            # w_ab (resident)
                pl.BlockSpec((c1p, c0p), lambda r: (0, 0)),            # w_ba (resident)
                pl.BlockSpec((1, c0p), lambda r: (0, 0)),              # bias a
                pl.BlockSpec((1, c1p), lambda r: (0, 0)),              # bias b
            ],
            out_specs=tuple(out_specs),
        ),
        compiler_params=pltpu.CompilerParams(
            dimension_semantics=("parallel",),
            vmem_limit_bytes=vmem_limit,
        ),
    )(x_all, w_ab, w_ba, b_a, b_b)
    if not isinstance(res, (list, tuple)):
        res = (res,)
    return list(res)


def _mp_batch_major(x0, x1, weights, biases, *, iters=1,
                    emit_branches=True, emit_mean=False):
    """Batch-major message passing.  Returns dict with 'branches' and/or 'mean'."""
    N, c0, H, W = x0.shape
    c1 = int(x1.shape[1])
    HW = H * W
    R = N * HW
    c0p = _round_up(c0, 128)
    c1p = _round_up(c1, 128)
    if emit_mean:
        assert c0 == c1, "fused branch mean requires equal branch widths"

    def to_rows(x, c):
        x = x.astype(jnp.float32).reshape(N, c, HW)
        if HW != 1:                      # only taken when HW is small; cheap transpose
            x = jnp.transpose(x, (0, 2, 1))
        return x.reshape(R, c)

    tile_r = _choose_tile_rows(R, c0p + c1p)
    r_pad = _round_up(R, tile_r)

    x_all = jnp.zeros((r_pad, c0p + c1p), jnp.float32)
    x_all = x_all.at[:R, :c0].set(to_rows(x0, c0))
    x_all = x_all.at[:R, c0p:c0p + c1].set(to_rows(x1, c1))

    w_ab = _pad2(weights[(0, 1)], c0p, c1p)      # (C0, C1)
    w_ba = _pad2(weights[(1, 0)], c1p, c0p)      # (C1, C0)
    b_a = _pad2(biases[(1, 0)], 1, c0p)          # (1, C0)
    b_b = _pad2(biases[(0, 1)], 1, c1p)          # (1, C1)

    act_bytes = tile_r * (c0p + c1p) * 4
    const_bytes = (2 * c0p * c1p + c0p + c1p) * 4
    vmem_limit = _vmem_limit(act_bytes, const_bytes)

    res = _mp_rows_call(x_all, w_ab, w_ba, b_a, b_b, tile_r=tile_r, iters=iters,
                        emit_branches=emit_branches, emit_mean=emit_mean,
                        vmem_limit=vmem_limit)

    def from_rows(rows, c):
        x = rows.reshape(N, HW, c)
        if HW != 1:
            x = jnp.transpose(x, (0, 2, 1))
        return x.reshape(N, c, H, W)

    out, idx = {}, 0
    if emit_branches:
        full = res[idx]; idx += 1
        out["branches"] = [from_rows(full[:R, :c0], c0),
                           from_rows(full[:R, c0p:c0p + c1], c1)]
    if emit_mean:
        out["mean"] = from_rows(res[idx][:R, :c0], c0)
    return out


def _mp_channel_major(x0, x1, weights, biases, *, iters=1):
    """Channel-major message passing (HW on lanes).  Returns list of NCHW outputs."""
    N, c0, H, W = x0.shape
    c1 = int(x1.shape[1])
    HW = H * W
    c0p = _round_up(c0, 8)
    c1p = _round_up(c1, 8)
    c_tot_pad = c0p + c1p

    tile_hw = _choose_tile_hw(HW, c_tot_pad)
    hw_pad = _round_up(HW, tile_hw)

    x_all = jnp.zeros((N, c_tot_pad, hw_pad), jnp.float32)
    x_all = x_all.at[:, :c0, :HW].set(x0.astype(jnp.float32).reshape(N, c0, HW))
    x_all = x_all.at[:, c0p:c0p + c1, :HW].set(x1.astype(jnp.float32).reshape(N, c1, HW))

    w_ba_t = _pad2(jnp.asarray(weights[(1, 0)]).T, c0p, c1p)   # (C0, C1)
    w_ab_t = _pad2(jnp.asarray(weights[(0, 1)]).T, c1p, c0p)   # (C1, C0)
    b_a = _pad2(jnp.asarray(biases[(1, 0)]).T, c0p, 1)
    b_b = _pad2(jnp.asarray(biases[(0, 1)]).T, c1p, 1)

    act_bytes = c_tot_pad * tile_hw * 4
    const_bytes = (2 * c0p * c1p + c0p + c1p) * 4
    vmem_limit = _vmem_limit(act_bytes, const_bytes)

    out = pl.pallas_call(
        _make_cmajor_kernel(c0p, c1p, iters),
        out_shape=jax.ShapeDtypeStruct((N, c_tot_pad, hw_pad), jnp.float32),
        grid_spec=pltpu.PrefetchScalarGridSpec(
            num_scalar_prefetch=0,
            grid=(N, hw_pad // tile_hw),
            in_specs=[
                pl.BlockSpec((1, c_tot_pad, tile_hw), lambda n, t: (n, 0, t)),
                pl.BlockSpec((c0p, c1p), lambda n, t: (0, 0)),
                pl.BlockSpec((c1p, c0p), lambda n, t: (0, 0)),
                pl.BlockSpec((c0p, 1), lambda n, t: (0, 0)),
                pl.BlockSpec((c1p, 1), lambda n, t: (0, 0)),
            ],
            out_specs=pl.BlockSpec((1, c_tot_pad, tile_hw), lambda n, t: (n, 0, t)),
        ),
        compiler_params=pltpu.CompilerParams(
            dimension_semantics=("parallel", "parallel"),
            vmem_limit_bytes=vmem_limit,
        ),
    )(x_all, w_ba_t, w_ab_t, b_a, b_b)

    y0 = out[:, :c0, :HW].reshape(N, c0, H, W)
    y1 = out[:, c0p:c0p + c1, :HW].reshape(N, c1, H, W)
    return [y0, y1]


# ---------------------------------------------------------------------------
# Public forward functions
# ---------------------------------------------------------------------------
def message_passing_forward(inputs_nchw, weights, biases, branch_n, iters=1,
                            channel_major_min_hw=512):
    """MessagePassing.forward for branch_n == 2.  Returns list of [N, C_i, H, W]."""
    assert branch_n == 2 and len(inputs_nchw) == 2
    H, W = int(inputs_nchw[0].shape[2]), int(inputs_nchw[0].shape[3])
    if H * W >= channel_major_min_hw:
        return _mp_channel_major(inputs_nchw[0], inputs_nchw[1], weights, biases,
                                 iters=iters)
    return _mp_batch_major(inputs_nchw[0], inputs_nchw[1], weights, biases,
                           iters=iters, emit_branches=True,
                           emit_mean=False)["branches"]


def crf_forward(x1, x2, weights, biases):
    """CRF.forward: message passing -> branch mean (fused in-kernel) -> view(b//17,17,c)."""
    b, c, h, w = x1.shape
    assert h * w == 1 and b % 17 == 0, "CRF's view(b//17, 17, c) requires h*w==1 and b%17==0"
    mean = _mp_batch_major(x1, x2, weights, biases, iters=1,
                           emit_branches=False, emit_mean=True)["mean"]  # (b, c, 1, 1)
    return mean.reshape(b // 17, 17, c)


# ---------------------------------------------------------------------------
# Pure-JAX references (identical math, no Pallas).
# ---------------------------------------------------------------------------
def message_passing_reference(inputs_nchw, weights, biases, branch_n, iters=1):
    hidden = [x.astype(jnp.float32) for x in inputs_nchw]
    for _ in range(iters):
        new_hidden = []
        for i in range(branch_n):
            unary = hidden[i]
            binary = None
            for j in range(branch_n):
                if i == j:
                    continue
                y = jnp.einsum("nchw,cd->ndhw", hidden[j], weights[(j, i)],
                               precision=jax.lax.Precision.HIGHEST)
                y = y + biases[(j, i)][0][None, :, None, None]
                binary = y if binary is None else binary + y
            binary = jnp.maximum(binary, 0.0)
            new_hidden.append(jnp.maximum(unary + binary, 0.0))
        hidden = new_hidden
    return hidden


def crf_reference(x1, x2, weights, biases):
    y1, y2 = message_passing_reference([x1, x2], weights, biases, branch_n=2)
    x = 0.5 * (y1 + y2)
    b, c, h, w = x.shape
    return x.reshape(b // 17, 17, c)


# ---------------------------------------------------------------------------
# Tests
# ---------------------------------------------------------------------------
if __name__ == "__main__":
    key = jax.random.PRNGKey(0)
    keys = jax.random.split(key, 64)
    kidx = 0

    # CRF with c == 128 dispatches to passing1: MessagePassing(branch_n=2, input_ncs=[128, 128]).
    branch_n = 2
    C = 128
    input_ncs = [C, C]

    # Deterministic 1x1-conv parameters w_0_{j}_{i}_0 : C_j -> C_i  (j != i).
    # weights[(j, i)] has shape (C_j, C_i)  (== PyTorch conv weight[:, :, 0, 0].T);
    # biases[(j, i)] has shape (1, C_i).
    weights, biases = {}, {}
    for i in range(branch_n):
        for j in range(branch_n):
            if i == j:
                continue
            weights[(j, i)] = (
                jax.random.normal(keys[kidx], (input_ncs[j], input_ncs[i]), jnp.float32) * 0.05
            )
            kidx += 1
            biases[(j, i)] = (
                jax.random.normal(keys[kidx], (1, input_ncs[i]), jnp.float32) * 0.05
            )
            kidx += 1

    # Tolerance note: the in-kernel matmul uses the MXU default f32 path
    # (preferred_element_type=f32); the reference uses Precision.HIGHEST.
    RTOL = ATOL = 1e-4

    # --- Test 1: channel-major path (large H*W): (2, 128, 32, 32). ---
    N, H, W = 2, 32, 32
    x1 = jax.random.normal(keys[kidx], (N, C, H, W), jnp.float32); kidx += 1
    x2 = jax.random.normal(keys[kidx], (N, C, H, W), jnp.float32); kidx += 1
    outs = jax.block_until_ready(message_passing_forward([x1, x2], weights, biases, branch_n))
    refs = message_passing_reference([x1, x2], weights, biases, branch_n)
    for o, r in zip(outs, refs):
        assert o.shape == r.shape and o.dtype == r.dtype
        assert jnp.allclose(o, r, rtol=RTOL, atol=ATOL), "channel-major MessagePassing mismatch"

    # --- Test 2: batch-major path (small H*W): (2, 128, 8, 8). ---
    N, H, W = 2, 8, 8
    x1 = jax.random.normal(keys[kidx], (N, C, H, W), jnp.float32); kidx += 1
    x2 = jax.random.normal(keys[kidx], (N, C, H, W), jnp.float32); kidx += 1
    outs = jax.block_until_ready(message_passing_forward([x1, x2], weights, biases, branch_n))
    refs = message_passing_reference([x1, x2], weights, biases, branch_n)
    for o, r in zip(outs, refs):
        assert o.shape == r.shape and o.dtype == r.dtype
        assert jnp.allclose(o, r, rtol=RTOL, atol=ATOL), "batch-major MessagePassing mismatch"

    # --- Test 3: full CRF forward (h*w == 1, b % 17 == 0), branch mean fused in-kernel. ---
    b = 34
    y1 = jax.random.normal(keys[kidx], (b, C, 1, 1), jnp.float32); kidx += 1
    y2 = jax.random.normal(keys[kidx], (b, C, 1, 1), jnp.float32); kidx += 1
    crf_out = jax.block_until_ready(crf_forward(y1, y2, weights, biases))
    crf_ref = crf_reference(y1, y2, weights, biases)
    assert crf_out.shape == (b // 17, 17, C)
    assert jnp.allclose(crf_out, crf_ref, rtol=RTOL, atol=ATOL), "CRF mismatch vs reference"

    print("KERNEL_OK")
</pallas_src>

<mosaic_0001>
module attributes {stable_mosaic.version = 11 : i64} {
  func.func @kernel(%arg0: i32, %arg1: i32, %arg2: memref<1x256x1024xf32, #tpu.memory_space<vmem>>, %arg3: memref<128x128xf32, #tpu.memory_space<vmem>>, %arg4: memref<128x128xf32, #tpu.memory_space<vmem>>, %arg5: memref<128x1xf32, #tpu.memory_space<vmem>>, %arg6: memref<128x1xf32, #tpu.memory_space<vmem>>, %arg7: memref<1x256x1024xf32, #tpu.memory_space<vmem>>) attributes {dimension_semantics = [#tpu.dimension_semantics<parallel>, #tpu.dimension_semantics<parallel>], iteration_bounds = array<i64: 2, 1>, scalar_prefetch = 0 : i64, scratch_operands = 0 : i64, tpu.core_type = #tpu.core_type<tc>, window_params = [{transform_indices = @transform_0, window_bounds = array<i64: 1, 256, 1024>}, {pipeline_mode = #tpu.pipeline_mode<synchronous>, transform_indices = @transform_1, window_bounds = array<i64: 128, 128>}, {pipeline_mode = #tpu.pipeline_mode<synchronous>, transform_indices = @transform_2, window_bounds = array<i64: 128, 128>}, {pipeline_mode = #tpu.pipeline_mode<synchronous>, transform_indices = @transform_3, window_bounds = array<i64: 128, 1>}, {pipeline_mode = #tpu.pipeline_mode<synchronous>, transform_indices = @transform_4, window_bounds = array<i64: 128, 1>}, {transform_indices = @transform_5, window_bounds = array<i64: 1, 256, 1024>}]} {
    %c0 = arith.constant 0 : index
    %c0_0 = arith.constant 0 : index
    %c0_1 = arith.constant 0 : index
    %0 = vector.load %arg2[%c0, %c0_0, %c0_1] : memref<1x256x1024xf32, #tpu.memory_space<vmem>>, vector<1x256x1024xf32>
    %1 = vector.shape_cast %0 : vector<1x256x1024xf32> to vector<256x1024xf32>
    %2 = vector.extract_strided_slice %1 {offsets = [0, 0], sizes = [128, 1024], strides = [1, 1]} : vector<256x1024xf32> to vector<128x1024xf32>
    %3 = vector.extract_strided_slice %1 {offsets = [128, 0], sizes = [128, 1024], strides = [1, 1]} : vector<256x1024xf32> to vector<128x1024xf32>
    %c0_2 = arith.constant 0 : index
    %c0_3 = arith.constant 0 : index
    %4 = vector.load %arg3[%c0_2, %c0_3] : memref<128x128xf32, #tpu.memory_space<vmem>>, vector<128x128xf32>
    %cst = arith.constant dense<0.000000e+00> : vector<128x1024xf32>
    %5 = tpu.matmul %4, %3, %cst {dimension_numbers = #tpu.dot_dimension_numbers<[1], [0], [0], [1], [0, 0, 1, 1], [], []>} : vector<128x128xf32>, vector<128x1024xf32>, vector<128x1024xf32> -> vector<128x1024xf32>
    %c0_4 = arith.constant 0 : index
    %c0_5 = arith.constant 0 : index
    %6 = vector.load %arg5[%c0_4, %c0_5] : memref<128x1xf32, #tpu.memory_space<vmem>>, vector<128x1xf32>
    %7 = vector.broadcast %6 : vector<128x1xf32> to vector<128x1024xf32>
    %8 = arith.addf %5, %7 : vector<128x1024xf32>
    %cst_6 = arith.constant 0.000000e+00 : f32
    %9 = vector.broadcast %cst_6 : f32 to vector<128x1024xf32>
    %10 = arith.maximumf %8, %9 : vector<128x1024xf32>
    %c0_7 = arith.constant 0 : index
    %c0_8 = arith.constant 0 : index
    %11 = vector.load %arg4[%c0_7, %c0_8] : memref<128x128xf32, #tpu.memory_space<vmem>>, vector<128x128xf32>
    %cst_9 = arith.constant dense<0.000000e+00> : vector<128x1024xf32>
    %12 = tpu.matmul %11, %2, %cst_9 {dimension_numbers = #tpu.dot_dimension_numbers<[1], [0], [0], [1], [0, 0, 1, 1], [], []>} : vector<128x128xf32>, vector<128x1024xf32>, vector<128x1024xf32> -> vector<128x1024xf32>
    %c0_10 = arith.constant 0 : index
    %c0_11 = arith.constant 0 : index
    %13 = vector.load %arg6[%c0_10, %c0_11] : memref<128x1xf32, #tpu.memory_space<vmem>>, vector<128x1xf32>
    %14 = vector.broadcast %13 : vector<128x1xf32> to vector<128x1024xf32>
    %15 = arith.addf %12, %14 : vector<128x1024xf32>
    %cst_12 = arith.constant 0.000000e+00 : f32
    %16 = vector.broadcast %cst_12 : f32 to vector<128x1024xf32>
    %17 = arith.maximumf %15, %16 : vector<128x1024xf32>
    %18 = arith.addf %2, %10 : vector<128x1024xf32>
    %cst_13 = arith.constant 0.000000e+00 : f32
    %19 = vector.broadcast %cst_13 : f32 to vector<128x1024xf32>
    %20 = arith.maximumf %18, %19 : vector<128x1024xf32>
    %21 = arith.addf %3, %17 : vector<128x1024xf32>
    %cst_14 = arith.constant 0.000000e+00 : f32
    %22 = vector.broadcast %cst_14 : f32 to vector<128x1024xf32>
    %23 = arith.maximumf %21, %22 : vector<128x1024xf32>
    %c0_15 = arith.constant 0 : index
    %c0_16 = arith.constant 0 : index
    %c0_17 = arith.constant 0 : index
    %24 = vector.load %arg7[%c0_15, %c0_16, %c0_17] : memref<1x256x1024xf32, #tpu.memory_space<vmem>>, vector<1x128x1024xf32>
    %25 = vector.shape_cast %24 : vector<1x128x1024xf32> to vector<128x1024xf32>
    %26 = vector.shape_cast %20 : vector<128x1024xf32> to vector<1x128x1024xf32>
    tpu.vector_store %arg7[%c0_15, %c0_16, %c0_17], %26 {strides = array<i32>} : memref<1x256x1024xf32, #tpu.memory_space<vmem>>, vector<1x128x1024xf32>,
    %c0_18 = arith.constant 0 : index
    %c128 = arith.constant 128 : index
    %c0_19 = arith.constant 0 : index
    %27 = vector.load %arg7[%c0_18, %c128, %c0_19] : memref<1x256x1024xf32, #tpu.memory_space<vmem>>, vector<1x128x1024xf32>
    %28 = vector.shape_cast %27 : vector<1x128x1024xf32> to vector<128x1024xf32>
    %29 = vector.shape_cast %23 : vector<128x1024xf32> to vector<1x128x1024xf32>
    tpu.vector_store %arg7[%c0_18, %c128, %c0_19], %29 {strides = array<i32>} : memref<1x256x1024xf32, #tpu.memory_space<vmem>>, vector<1x128x1024xf32>,
    return
  }
  func.func @transform_0(%arg0: i32, %arg1: i32) -> (i32, i32, i32) {
    %c0_i32 = arith.constant 0 : i32
    %c0_i32_0 = arith.constant 0 : i32
    return %arg0, %c0_i32, %arg1 : i32, i32, i32
  }
  func.func @transform_1(%arg0: i32, %arg1: i32) -> (i32, i32) {
    %c0_i32 = arith.constant 0 : i32
    %c0_i32_0 = arith.constant 0 : i32
    %c0_i32_1 = arith.constant 0 : i32
    return %c0_i32, %c0_i32_0 : i32, i32
  }
  func.func @transform_2(%arg0: i32, %arg1: i32) -> (i32, i32) {
    %c0_i32 = arith.constant 0 : i32
    %c0_i32_0 = arith.constant 0 : i32
    %c0_i32_1 = arith.constant 0 : i32
    return %c0_i32, %c0_i32_0 : i32, i32
  }
  func.func @transform_3(%arg0: i32, %arg1: i32) -> (i32, i32) {
    %c0_i32 = arith.constant 0 : i32
    %c0_i32_0 = arith.constant 0 : i32
    %c0_i32_1 = arith.constant 0 : i32
    return %c0_i32, %c0_i32_0 : i32, i32
  }
  func.func @transform_4(%arg0: i32, %arg1: i32) -> (i32, i32) {
    %c0_i32 = arith.constant 0 : i32
    %c0_i32_0 = arith.constant 0 : i32
    %c0_i32_1 = arith.constant 0 : i32
    return %c0_i32, %c0_i32_0 : i32, i32
  }
  func.func @transform_5(%arg0: i32, %arg1: i32) -> (i32, i32, i32) {
    %c0_i32 = arith.constant 0 : i32
    %c0_i32_0 = arith.constant 0 : i32
    return %arg0, %c0_i32, %arg1 : i32, i32, i32
  }
}

</mosaic_0001>

<llo_original>
// kernel: tpu_custom_call.1
$region0: #{tpu_custom_call.1}
  #allocation0 [shape = 'u32[]', space=smem, size = 0x4, offset = 0x4, fixed_abs, tag = 'smem constant byte address 0x4 - core index']
  #allocation1 [shape = 'u32[144,128]{1,0:T(1,128)}', space=vmem, size = 0x12000, scoped, tag = 'internal scratch']
  %s0 = inlined_call_operand.hbm [shape: f32[2,256,1024], index: 0, kind: input, shape index: {}]
  %s1 = inlined_call_operand.hbm [shape: f32[128,128], index: 1, kind: input, shape index: {}]
  %s2 = inlined_call_operand.hbm [shape: f32[128,128], index: 2, kind: input, shape index: {}]
  %s3 = inlined_call_operand.vmem [shape: f32[128,1], index: 3, kind: input, shape index: {}]
  %s4 = inlined_call_operand.vmem [shape: f32[128,1], index: 4, kind: input, shape index: {}]
  %s5 = inlined_call_operand.hbm [shape: f32[2,256,1024], index: 5, kind: output, shape index: {}]
  %s6 = sld [smem:[#allocation0]]
  $region65: #{tpu_custom_call.1} parent=0
    _
  %s8 = ssub.s32 1, %s6
  %s9 = scalar_select 0, %s8, %s6
  $region1: #{tpu_custom_call.1} parent=0
    #allocation2 [shape = 'u8[2097152]{0}', space=vmem, size = 0x200000, scoped, tag = 'input window, operand 0']
    #allocation3 [shape = 's32[2]{0}', space=sflag, size = 0x8, scoped, tag = 'scoped memory for tpu_custom_call.1']
    #allocation4 [shape = 's32[2]{0}', space=sflag, size = 0x8, scoped, tag = 'scoped memory for tpu_custom_call.1']
    #allocation5 [shape = 'u8[65536]{0}', space=vmem, size = 0x10000, scoped, tag = 'input window, operand 1, single buffered']
    #allocation6 [shape = 's32[1]{0}', space=sflag, size = 0x4, scoped, tag = 'scoped memory for tpu_custom_call.1']
    #allocation7 [shape = 'u8[65536]{0}', space=vmem, size = 0x10000, scoped, tag = 'input window, operand 2, single buffered']
    #allocation8 [shape = 'u8[2097152]{0}', space=vmem, size = 0x200000, scoped, tag = 'output window, operand 0']
    %10 = vsyncpa [#allocation3], 0
    %s11 = scalar_lea.sflag [#allocation3], 1
    %12 = vsyncpa %s11, 0
    %13 = vsyncpa [#allocation6], 0
    %14 = vsyncpa [#allocation4], 0
    %s15 = scalar_lea.sflag [#allocation4], 1
    %16 = vsyncpa %s15, 0
    loop: start=0, step=1, limit=4
    $region2: #{tpu_custom_call.1} parent=1 // loop_pre_header
      _
    $region3: #{tpu_custom_call.1} parent=1 // loop_header
      %s18 = sphi 0, %s22
      %p19 = scmp.ge.s32.totalorder %s18, 4
      %s25 = sphi 0, %s37
      %s26 = sphi 0, %s33
      %s27 = sphi 0, %s25
      %s28 = sphi 0, %s26
      %s29 = sphi 0, %s27
      %s30 = sphi 0, %s28
      %s42 = sphi 0, %s44
      %s45 = sphi 0, %s42
      %s46 = sphi 0, %s45
      %s62 = sphi 0, %s46
      %s66 = sphi 0, %s66
      %s68 = sphi 0, %s66
      %s69 = sphi 0, %s68
      %s83 = sphi 0, %s69
      %s87 = sphi 0, %s87
      %s89 = sphi 0, %s87
      %s90 = sphi 0, %s89
      %s104 = sphi 0, %s90
      %s108 = sphi 0, %s108
      %s110 = sphi 0, %s108
      %s111 = sphi 0, %s110
      %s125 = sphi 0, %s111
      %s129 = sphi 0, %s129
      %s131 = sphi 0, %s129
      %s132 = sphi 0, %s131
      %s146 = sphi 0, %s132
      %s154 = sphi 0, %s156
      %s157 = sphi 0, %s154
      %s158 = sphi 0, %s157
      %s174 = sphi 0, %s158
    $region4: #{tpu_custom_call.1} parent=1 // loop_header_branch
      %21 = sbr.rel (%p19) target = $region8
    $region5: #{tpu_custom_call.1} parent=1 // loop_body
      %s23 = ssub.s32 %s18, 1
      %s24 = ssub.s32 %s18, 2
      %s31 = sadd.s32 1, %s26
      %p32 = scmp.ge.s32.totalorder %s31, 1
      %s33 = scalar_select %p32, 0, %s31
      %s34 = sadd.s32 1, %s25
      %s35 = scalar_select %p32, %s34, %s25
      %p36 = scmp.ge.s32.totalorder %s35, 2
      %s37 = scalar_select %p36, 0, %s35
      %s38 = ssub.s32 %s25, %s37
      %s39 = ssub.s32 %s26, %s33
      %s40 = sor.u32 %s38, %s39
      %p41 = scmp.eq.s32.totalorder %s40, 0
      %s43 = sadd.s32 %s42, 1
      %s44 = scalar_select %p41, %s42, %s43
      %p47 = pneg %p41
      %p48 = scmp.eq.s32.totalorder %s18, 1
      %p49 = por %p47, %p48
      %p50 = scmp.ne.s32.totalorder %s42, %s45
      %p51 = scmp.eq.s32.totalorder %s18, 0
      %p52 = por %p50, %p51
      %p53 = scmp.ne.s32.totalorder %s42, %s45
      %p54 = scmp.eq.s32.totalorder %s23, 1
      %p55 = por %p53, %p54
      %p56 = scmp.ne.s32.totalorder %s45, %s46
      %p57 = scmp.eq.s32.totalorder %s23, 0
      %p58 = por %p56, %p57
      %p59 = scmp.ne.s32.totalorder %s45, %s46
      %p60 = scmp.eq.s32.totalorder %s24, 1
      %p61 = por %p59, %p60
      %p63 = scmp.ne.s32.totalorder %s46, %s62
      %p64 = scmp.eq.s32.totalorder %s24, 0
      %p65 = por %p63, %p64
      %s67 = sadd.s32 %s66, 1
      %p70 = scmp.eq.s32.totalorder %s18, 1
      %p71 = scmp.ne.s32.totalorder %s66, %s68
      %p72 = scmp.eq.s32.totalorder %s18, 0
      %p73 = por %p71, %p72
      %p74 = scmp.ne.s32.totalorder %s66, %s68
      %p75 = scmp.eq.s32.totalorder %s23, 1
      %p76 = por %p74, %p75
      %p77 = scmp.ne.s32.totalorder %s68, %s69
      %p78 = scmp.eq.s32.totalorder %s23, 0
      %p79 = por %p77, %p78
      %p80 = scmp.ne.s32.totalorder %s68, %s69
      %p81 = scmp.eq.s32.totalorder %s24, 1
      %p82 = por %p80, %p81
      %p84 = scmp.ne.s32.totalorder %s69, %s83
      %p85 = scmp.eq.s32.totalorder %s24, 0
      %p86 = por %p84, %p85
      %s88 = sadd.s32 %s87, 1
      %p91 = scmp.eq.s32.totalorder %s18, 1
      %p92 = scmp.ne.s32.totalorder %s87, %s89
      %p93 = scmp.eq.s32.totalorder %s18, 0
      %p94 = por %p92, %p93
      %p95 = scmp.ne.s32.totalorder %s87, %s89
      %p96 = scmp.eq.s32.totalorder %s23, 1
      %p97 = por %p95, %p96
      %p98 = scmp.ne.s32.totalorder %s89, %s90
      %p99 = scmp.eq.s32.totalorder %s23, 0
      %p100 = por %p98, %p99
      %p101 = scmp.ne.s32.totalorder %s89, %s90
      %p102 = scmp.eq.s32.totalorder %s24, 1
      %p103 = por %p101, %p102
      %p105 = scmp.ne.s32.totalorder %s90, %s104
      %p106 = scmp.eq.s32.totalorder %s24, 0
      %p107 = por %p105, %p106
      %s109 = sadd.s32 %s108, 1
      %p112 = scmp.eq.s32.totalorder %s18, 1
      %p113 = scmp.ne.s32.totalorder %s108, %s110
      %p114 = scmp.eq.s32.totalorder %s18, 0
      %p115 = por %p113, %p114
      %p116 = scmp.ne.s32.totalorder %s108, %s110
      %p117 = scmp.eq.s32.totalorder %s23, 1
      %p118 = por %p116, %p117
      %p119 = scmp.ne.s32.totalorder %s110, %s111
      %p120 = scmp.eq.s32.totalorder %s23, 0
      %p121 = por %p119, %p120
      %p122 = scmp.ne.s32.totalorder %s110, %s111
      %p123 = scmp.eq.s32.totalorder %s24, 1
      %p124 = por %p122, %p123
      %p126 = scmp.ne.s32.totalorder %s111, %s125
      %p127 = scmp.eq.s32.totalorder %s24, 0
      %p128 = por %p126, %p127
      %s130 = sadd.s32 %s129, 1
      %p133 = scmp.eq.s32.totalorder %s18, 1
      %p134 = scmp.ne.s32.totalorder %s129, %s131
      %p135 = scmp.eq.s32.totalorder %s18, 0
      %p136 = por %p134, %p135
      %p137 = scmp.ne.s32.totalorder %s129, %s131
      %p138 = scmp.eq.s32.totalorder %s23, 1
      %p139 = por %p137, %p138
      %p140 = scmp.ne.s32.totalorder %s131, %s132
      %p141 = scmp.eq.s32.totalorder %s23, 0
      %p142 = por %p140, %p141
      %p143 = scmp.ne.s32.totalorder %s131, %s132
      %p144 = scmp.eq.s32.totalorder %s24, 1
      %p145 = por %p143, %p144
      %p147 = scmp.ne.s32.totalorder %s132, %s146
      %p148 = scmp.eq.s32.totalorder %s24, 0
      %p149 = por %p147, %p148
      %s150 = ssub.s32 %s25, %s37
      %s151 = ssub.s32 %s26, %s33
      %s152 = sor.u32 %s150, %s151
      %p153 = scmp.eq.s32.totalorder %s152, 0
      %s155 = sadd.s32 %s154, 1
      %s156 = scalar_select %p153, %s154, %s155
      %p159 = pneg %p153
      %p160 = scmp.eq.s32.totalorder %s18, 1
      %p161 = por %p159, %p160
      %p162 = scmp.ne.s32.totalorder %s154, %s157
      %p163 = scmp.eq.s32.totalorder %s18, 0
      %p164 = por %p162, %p163
      %p165 = scmp.ne.s32.totalorder %s154, %s157
      %p166 = scmp.eq.s32.totalorder %s23, 1
      %p167 = por %p165, %p166
      %p168 = scmp.ne.s32.totalorder %s157, %s158
      %p169 = scmp.eq.s32.totalorder %s23, 0
      %p170 = por %p168, %p169
      %p171 = scmp.ne.s32.totalorder %s157, %s158
      %p172 = scmp.eq.s32.totalorder %s24, 1
      %p173 = por %p171, %p172
      %p175 = scmp.ne.s32.totalorder %s158, %s174
      %p176 = scmp.eq.s32.totalorder %s24, 0
      %p177 = por %p175, %p176
      %p178 = scmp.le.s32.totalorder 1, %s18
      %p179 = scmp.lt.s32.totalorder %s18, 3
      %p180 = pnand %p178, %p179
      %p181 = pneg %p180
      // Predicated region
      $region9: #{tpu_custom_call.1} parent=5 // pred_check
        _
      $region10: #{tpu_custom_call.1} parent=5 // pred_check_branch
        %183 = sbr.rel (%p180) target = $region12
      $region11: #{tpu_custom_call.1} parent=5 // pred_region
        %s184 = ssub.s32 %s18, 1
        // Predicated region
        $region13: #{tpu_custom_call.1} parent=11 // pred_check
          %p185 = pneg %p79
        $region14: #{tpu_custom_call.1} parent=11 // pred_check_branch
          %187 = sbr.rel (%p185) target = $region16
        $region15: #{tpu_custom_call.1} parent=11 // pred_region
          %s189 = ssub.s32 2048, 2048
          %190 = vsyncadd [#allocation6], %s189
          %s191 = sshll.u32 [#allocation5], 4
          %s192 = int_to_ptr.vmem [resolvable:$true] %s191
          %197 = dma.hbm_to_vmem [thread:$0]  %s1, 2048, %s192, [#allocation6], 128, 128, 8
        $region16: #{tpu_custom_call.1} parent=11 // pred_fallthru
          _
        // Predicated region
        $region17: #{tpu_custom_call.1} parent=11 // pred_check
          %p198 = pneg %p100
        $region18: #{tpu_custom_call.1} parent=11 // pred_check_branch
          %200 = sbr.rel (%p198) target = $region20
        $region19: #{tpu_custom_call.1} parent=11 // pred_region
          %s202 = ssub.s32 2048, 2048
          %203 = vsyncadd [#allocation6], %s202
          %s204 = sshll.u32 [#allocation7], 4
          %s205 = int_to_ptr.vmem [resolvable:$true] %s204
          %210 = dma.hbm_to_vmem [thread:$0]  %s2, 2048, %s205, [#allocation6], 128, 128, 8
        $region20: #{tpu_custom_call.1} parent=11 // pred_fallthru
          _
        // Predicated region
        $region21: #{tpu_custom_call.1} parent=11 // pred_check
          %p211 = pneg %p121
        $region22: #{tpu_custom_call.1} parent=11 // pred_check_branch
          %213 = sbr.rel (%p211) target = $region24
        $region23: #{tpu_custom_call.1} parent=11 // pred_region
          _
        $region24: #{tpu_custom_call.1} parent=11 // pred_fallthru
          _
        // Predicated region
        $region25: #{tpu_custom_call.1} parent=11 // pred_check
          %p214 = pneg %p142
        $region26: #{tpu_custom_call.1} parent=11 // pred_check_branch
          %216 = sbr.rel (%p214) target = $region28
        $region27: #{tpu_custom_call.1} parent=11 // pred_region
          _
        $region28: #{tpu_custom_call.1} parent=11 // pred_fallthru
          _
      $region12: #{tpu_custom_call.1} parent=5 // pred_fallthru
        _
      %p217 = scmp.lt.s32.totalorder %s18, 2
      // Predicated region
      $region29: #{tpu_custom_call.1} parent=5 // pred_check
        %p218 = pneg %p217
      $region30: #{tpu_custom_call.1} parent=5 // pred_check_branch
        %220 = sbr.rel (%p218) target = $region32
      $region31: #{tpu_custom_call.1} parent=5 // pred_region
        // Predicated region
        $region33: #{tpu_custom_call.1} parent=31 // pred_check
          %p221 = pneg %p52
        $region34: #{tpu_custom_call.1} parent=31 // pred_check_branch
          %223 = sbr.rel (%p221) target = $region36
        $region35: #{tpu_custom_call.1} parent=31 // pred_region
          %s224 = sand.u32 %s42, 1
          %s225 = scalar_lea.sflag [#allocation3], %s224
          %s226 = sand.u32 %s42, 1
          %s227 = smul.addr %s226, 2048
          %s228 = scalar_lea.vmem [#allocation2], %s227
          %s229 = smul.u32 8, %s26
          %s231 = ssub.s32 32768, 32768
          %232 = vsyncadd %s225, %s231
          %s233 = smul.addr %s25, 256
          %s234 = sadd.s32 %s229, %s233
          %s235 = smul.addr %s234, 128
          %s236 = scalar_lea.hbm %s0, %s235
          %s237 = sshll.u32 %s228, 4
          %s238 = int_to_ptr.vmem [resolvable:$true] %s237
          %243 = dma.hbm_to_vmem [thread:$0]  %s236, 32768, %s238, %s225, 1024, 1024, 64
        $region36: #{tpu_custom_call.1} parent=31 // pred_fallthru
          _
      $region32: #{tpu_custom_call.1} parent=5 // pred_fallthru
        _
      %p244 = scmp.le.s32.totalorder 1, %s18
      %p245 = scmp.lt.s32.totalorder %s18, 3
      %p246 = pnand %p244, %p245
      %p247 = pneg %p246
      // Predicated region
      $region37: #{tpu_custom_call.1} parent=5 // pred_check
        _
      $region38: #{tpu_custom_call.1} parent=5 // pred_check_branch
        %249 = sbr.rel (%p246) target = $region40
      $region39: #{tpu_custom_call.1} parent=5 // pred_region
        %s250 = ssub.s32 %s18, 1
        %s251 = sand.u32 %s45, 1
        %s252 = scalar_lea.sflag [#allocation3], %s251
        %s253 = sand.u32 %s45, 1
        %s254 = smul.addr %s253, 2048
        %s255 = scalar_lea.vmem [#allocation2], %s254
        // Predicated region
        $region41: #{tpu_custom_call.1} parent=39 // pred_check
          %p256 = pneg %p58
        $region42: #{tpu_custom_call.1} parent=39 // pred_check_branch
          %258 = sbr.rel (%p256) target = $region44
        $region43: #{tpu_custom_call.1} parent=39 // pred_region
          %259 = dma.done %s252, 32768
        $region44: #{tpu_custom_call.1} parent=39 // pred_fallthru
          _
        // Predicated region
        $region45: #{tpu_custom_call.1} parent=39 // pred_check
          %p260 = pneg %p79
        $region46: #{tpu_custom_call.1} parent=39 // pred_check_branch
          %262 = sbr.rel (%p260) target = $region48
        $region47: #{tpu_custom_call.1} parent=39 // pred_region
          %263 = dma.done [#allocation6], 2048
        $region48: #{tpu_custom_call.1} parent=39 // pred_fallthru
          _
        // Predicated region
        $region49: #{tpu_custom_call.1} parent=39 // pred_check
          %p264 = pneg %p100
        $region50: #{tpu_custom_call.1} parent=39 // pred_check_branch
          %266 = sbr.rel (%p264) target = $region52
        $region51: #{tpu_custom_call.1} parent=39 // pred_region
          %267 = dma.done [#allocation6], 2048
        $region52: #{tpu_custom_call.1} parent=39 // pred_fallthru
          _
        %s268 = sand.u32 %s45, 1
        %s269 = scalar_lea.sflag [#allocation3], %s268
        %s270 = sand.u32 %s45, 1
        %s271 = smul.addr %s270, 2048
        %s272 = scalar_lea.vmem [#allocation2], %s271
        %p273 = pneg %p58
        %p274 = pneg %p55
        %p275 = pneg %p79
        %p276 = pneg %p76
        %p277 = pneg %p100
        %p278 = pneg %p97
        %p279 = pneg %p121
        %p280 = pneg %p118
        %p281 = pneg %p142
        %p282 = pneg %p139
        %p283 = pneg %p170
        %p284 = pneg %p167
        %s285 = sand.u32 %s157, 1
        %s286 = scalar_lea.sflag [#allocation4], %s285
        %s287 = sand.u32 %s157, 1
        %s288 = smul.addr %s287, 2048
        %s289 = scalar_lea.vmem [#allocation8], %s288
        %s290 = smul.u32 8, %s28
        %s291 = smul.u32 8, %s28
        %v292 = vld [vmem:[%s255] sm:$0xff]
        %v293 = vld [vmem:[%s255 + $0x8] sm:$0xff]
        %v294 = vld [vmem:[%s255 + $0x10] sm:$0xff]
        %v295 = vld [vmem:[%s255 + $0x18] sm:$0xff]
        %v296 = vld [vmem:[%s255 + $0x20] sm:$0xff]
        %v297 = vld [vmem:[%s255 + $0x28] sm:$0xff]
        %v298 = vld [vmem:[%s255 + $0x30] sm:$0xff]
        %v299 = vld [vmem:[%s255 + $0x38] sm:$0xff]
        %v300 = vld [vmem:[%s255 + $0x40] sm:$0xff]
        %v301 = vld [vmem:[%s255 + $0x48] sm:$0xff]
        %v302 = vld [vmem:[%s255 + $0x50] sm:$0xff]
        %v303 = vld [vmem:[%s255 + $0x58] sm:$0xff]
        %v304 = vld [vmem:[%s255 + $0x60] sm:$0xff]
        %v305 = vld [vmem:[%s255 + $0x68] sm:$0xff]
        %v306 = vld [vmem:[%s255 + $0x70] sm:$0xff]
        %v307 = vld [vmem:[%s255 + $0x78] sm:$0xff]
        %v308 = vld [vmem:[%s255 + $0x80] sm:$0xff]
        %v309 = vld [vmem:[%s255 + $0x88] sm:$0xff]
        %v310 = vld [vmem:[%s255 + $0x90] sm:$0xff]
        %v311 = vld [vmem:[%s255 + $0x98] sm:$0xff]
        %v312 = vld [vmem:[%s255 + $0xa0] sm:$0xff]
        %v313 = vld [vmem:[%s255 + $0xa8] sm:$0xff]
        %v314 = vld [vmem:[%s255 + $0xb0] sm:$0xff]
        %v315 = vld [vmem:[%s255 + $0xb8] sm:$0xff]
        %v316 = vld [vmem:[%s255 + $0xc0] sm:$0xff]
        %v317 = vld [vmem:[%s255 + $0xc8] sm:$0xff]
        %v318 = vld [vmem:[%s255 + $0xd0] sm:$0xff]
        %v319 = vld [vmem:[%s255 + $0xd8] sm:$0xff]
        %v320 = vld [vmem:[%s255 + $0xe0] sm:$0xff]
        %v321 = vld [vmem:[%s255 + $0xe8] sm:$0xff]
        %v322 = vld [vmem:[%s255 + $0xf0] sm:$0xff]
        %v323 = vld [vmem:[%s255 + $0xf8] sm:$0xff]
        %v324 = vld [vmem:[%s255 + $0x100] sm:$0xff]
        %v325 = vld [vmem:[%s255 + $0x108] sm:$0xff]
        %v326 = vld [vmem:[%s255 + $0x110] sm:$0xff]
        %v327 = vld [vmem:[%s255 + $0x118] sm:$0xff]
        %v328 = vld [vmem:[%s255 + $0x120] sm:$0xff]
        %v329 = vld [vmem:[%s255 + $0x128] sm:$0xff]
        %v330 = vld [vmem:[%s255 + $0x130] sm:$0xff]
        %v331 = vld [vmem:[%s255 + $0x138] sm:$0xff]
        %v332 = vld [vmem:[%s255 + $0x140] sm:$0xff]
        %v333 = vld [vmem:[%s255 + $0x148] sm:$0xff]
        %v334 = vld [vmem:[%s255 + $0x150] sm:$0xff]
        %v335 = vld [vmem:[%s255 + $0x158] sm:$0xff]
        %v336 = vld [vmem:[%s255 + $0x160] sm:$0xff]
        %v337 = vld [vmem:[%s255 + $0x168] sm:$0xff]
        %v338 = vld [vmem:[%s255 + $0x170] sm:$0xff]
        %v339 = vld [vmem:[%s255 + $0x178] sm:$0xff]
        %v340 = vld [vmem:[%s255 + $0x180] sm:$0xff]
        %v341 = vld [vmem:[%s255 + $0x188] sm:$0xff]
        %v342 = vld [vmem:[%s255 + $0x190] sm:$0xff]
        %v343 = vld [vmem:[%s255 + $0x198] sm:$0xff]
        %v344 = vld [vmem:[%s255 + $0x1a0] sm:$0xff]
        %v345 = vld [vmem:[%s255 + $0x1a8] sm:$0xff]
        %v346 = vld [vmem:[%s255 + $0x1b0] sm:$0xff]
        %v347 = vld [vmem:[%s255 + $0x1b8] sm:$0xff]
        %v348 = vld [vmem:[%s255 + $0x1c0] sm:$0xff]
        %v349 = vld [vmem:[%s255 + $0x1c8] sm:$0xff]
        %v350 = vld [vmem:[%s255 + $0x1d0] sm:$0xff]
        %v351 = vld [vmem:[%s255 + $0x1d8] sm:$0xff]
        %v352 = vld [vmem:[%s255 + $0x1e0] sm:$0xff]
        %v353 = vld [vmem:[%s255 + $0x1e8] sm:$0xff]
        %v354 = vld [vmem:[%s255 + $0x1f0] sm:$0xff]
        %v355 = vld [vmem:[%s255 + $0x1f8] sm:$0xff]
        %v356 = vld [vmem:[%s255 + $0x200] sm:$0xff]
        %v357 = vld [vmem:[%s255 + $0x208] sm:$0xff]
        %v358 = vld [vmem:[%s255 + $0x210] sm:$0xff]
        %v359 = vld [vmem:[%s255 + $0x218] sm:$0xff]
        %v360 = vld [vmem:[%s255 + $0x220] sm:$0xff]
        %v361 = vld [vmem:[%s255 + $0x228] sm:$0xff]
        %v362 = vld [vmem:[%s255 + $0x230] sm:$0xff]
        %v363 = vld [vmem:[%s255 + $0x238] sm:$0xff]
        %v364 = vld [vmem:[%s255 + $0x240] sm:$0xff]
        %v365 = vld [vmem:[%s255 + $0x248] sm:$0xff]
        %v366 = vld [vmem:[%s255 + $0x250] sm:$0xff]
        %v367 = vld [vmem:[%s255 + $0x258] sm:$0xff]
        %v368 = vld [vmem:[%s255 + $0x260] sm:$0xff]
        %v369 = vld [vmem:[%s255 + $0x268] sm:$0xff]
        %v370 = vld [vmem:[%s255 + $0x270] sm:$0xff]
        %v371 = vld [vmem:[%s255 + $0x278] sm:$0xff]
        %v372 = vld [vmem:[%s255 + $0x280] sm:$0xff]
        %v373 = vld [vmem:[%s255 + $0x288] sm:$0xff]
        %v374 = vld [vmem:[%s255 + $0x290] sm:$0xff]
        %v375 = vld [vmem:[%s255 + $0x298] sm:$0xff]
        %v376 = vld [vmem:[%s255 + $0x2a0] sm:$0xff]
        %v377 = vld [vmem:[%s255 + $0x2a8] sm:$0xff]
        %v378 = vld [vmem:[%s255 + $0x2b0] sm:$0xff]
        %v379 = vld [vmem:[%s255 + $0x2b8] sm:$0xff]
        %v380 = vld [vmem:[%s255 + $0x2c0] sm:$0xff]
        %v381 = vld [vmem:[%s255 + $0x2c8] sm:$0xff]
        %v382 = vld [vmem:[%s255 + $0x2d0] sm:$0xff]
        %v383 = vld [vmem:[%s255 + $0x2d8] sm:$0xff]
        %v384 = vld [vmem:[%s255 + $0x2e0] sm:$0xff]
        %v385 = vld [vmem:[%s255 + $0x2e8] sm:$0xff]
        %v386 = vld [vmem:[%s255 + $0x2f0] sm:$0xff]
        %v387 = vld [vmem:[%s255 + $0x2f8] sm:$0xff]
        %v388 = vld [vmem:[%s255 + $0x300] sm:$0xff]
        %v389 = vld [vmem:[%s255 + $0x308] sm:$0xff]
        %v390 = vld [vmem:[%s255 + $0x310] sm:$0xff]
        %v391 = vld [vmem:[%s255 + $0x318] sm:$0xff]
        %v392 = vld [vmem:[%s255 + $0x320] sm:$0xff]
        %v393 = vld [vmem:[%s255 + $0x328] sm:$0xff]
        %v394 = vld [vmem:[%s255 + $0x330] sm:$0xff]
        %v395 = vld [vmem:[%s255 + $0x338] sm:$0xff]
        %v396 = vld [vmem:[%s255 + $0x340] sm:$0xff]
        %v397 = vld [vmem:[%s255 + $0x348] sm:$0xff]
        %v398 = vld [vmem:[%s255 + $0x350] sm:$0xff]
        %v399 = vld [vmem:[%s255 + $0x358] sm:$0xff]
        %v400 = vld [vmem:[%s255 + $0x360] sm:$0xff]
        %v401 = vld [vmem:[%s255 + $0x368] sm:$0xff]
        %v402 = vld [vmem:[%s255 + $0x370] sm:$0xff]
        %v403 = vld [vmem:[%s255 + $0x378] sm:$0xff]
        %v404 = vld [vmem:[%s255 + $0x380] sm:$0xff]
        %v405 = vld [vmem:[%s255 + $0x388] sm:$0xff]
        %v406 = vld [vmem:[%s255 + $0x390] sm:$0xff]
        %v407 = vld [vmem:[%s255 + $0x398] sm:$0xff]
        %v408 = vld [vmem:[%s255 + $0x3a0] sm:$0xff]
        %v409 = vld [vmem:[%s255 + $0x3a8] sm:$0xff]
        %v410 = vld [vmem:[%s255 + $0x3b0] sm:$0xff]
        %v411 = vld [vmem:[%s255 + $0x3b8] sm:$0xff]
        %v412 = vld [vmem:[%s255 + $0x3c0] sm:$0xff]
        %v413 = vld [vmem:[%s255 + $0x3c8] sm:$0xff]
        %v414 = vld [vmem:[%s255 + $0x3d0] sm:$0xff]
        %v415 = vld [vmem:[%s255 + $0x3d8] sm:$0xff]
        %v416 = vld [vmem:[%s255 + $0x3e0] sm:$0xff]
        %v417 = vld [vmem:[%s255 + $0x3e8] sm:$0xff]
        %v418 = vld [vmem:[%s255 + $0x3f0] sm:$0xff]
        %v419 = vld [vmem:[%s255 + $0x3f8] sm:$0xff]
        %v420 = vld [vmem:[%s255 + $0x400] sm:$0xff]
        %v421 = vld [vmem:[%s255 + $0x408] sm:$0xff]
        %v422 = vld [vmem:[%s255 + $0x410] sm:$0xff]
        %v423 = vld [vmem:[%s255 + $0x418] sm:$0xff]
        %v424 = vld [vmem:[%s255 + $0x420] sm:$0xff]
        %v425 = vld [vmem:[%s255 + $0x428] sm:$0xff]
        %v426 = vld [vmem:[%s255 + $0x430] sm:$0xff]
        %v427 = vld [vmem:[%s255 + $0x438] sm:$0xff]
        %v428 = vld [vmem:[%s255 + $0x440] sm:$0xff]
        %v429 = vld [vmem:[%s255 + $0x448] sm:$0xff]
        %v430 = vld [vmem:[%s255 + $0x450] sm:$0xff]
        %v431 = vld [vmem:[%s255 + $0x458] sm:$0xff]
        %v432 = vld [vmem:[%s255 + $0x460] sm:$0xff]
        %v433 = vld [vmem:[%s255 + $0x468] sm:$0xff]
        %v434 = vld [vmem:[%s255 + $0x470] sm:$0xff]
        %v435 = vld [vmem:[%s255 + $0x478] sm:$0xff]
        %v436 = vld [vmem:[%s255 + $0x480] sm:$0xff]
        %v437 = vld [vmem:[%s255 + $0x488] sm:$0xff]
        %v438 = vld [vmem:[%s255 + $0x490] sm:$0xff]
        %v439 = vld [vmem:[%s255 + $0x498] sm:$0xff]
        %v440 = vld [vmem:[%s255 + $0x4a0] sm:$0xff]
        %v441 = vld [vmem:[%s255 + $0x4a8] sm:$0xff]
        %v442 = vld [vmem:[%s255 + $0x4b0] sm:$0xff]
        %v443 = vld [vmem:[%s255 + $0x4b8] sm:$0xff]
        %v444 = vld [vmem:[%s255 + $0x4c0] sm:$0xff]
        %v445 = vld [vmem:[%s255 + $0x4c8] sm:$0xff]
        %v446 = vld [vmem:[%s255 + $0x4d0] sm:$0xff]
        %v447 = vld [vmem:[%s255 + $0x4d8] sm:$0xff]
        %v448 = vld [vmem:[%s255 + $0x4e0] sm:$0xff]
        %v449 = vld [vmem:[%s255 + $0x4e8] sm:$0xff]
        %v450 = vld [vmem:[%s255 + $0x4f0] sm:$0xff]
        %v451 = vld [vmem:[%s255 + $0x4f8] sm:$0xff]
        %v452 = vld [vmem:[%s255 + $0x500] sm:$0xff]
        %v453 = vld [vmem:[%s255 + $0x508] sm:$0xff]
        %v454 = vld [vmem:[%s255 + $0x510] sm:$0xff]
        %v455 = vld [vmem:[%s255 + $0x518] sm:$0xff]
        %v456 = vld [vmem:[%s255 + $0x520] sm:$0xff]
        %v457 = vld [vmem:[%s255 + $0x528] sm:$0xff]
        %v458 = vld [vmem:[%s255 + $0x530] sm:$0xff]
        %v459 = vld [vmem:[%s255 + $0x538] sm:$0xff]
        %v460 = vld [vmem:[%s255 + $0x540] sm:$0xff]
        %v461 = vld [vmem:[%s255 + $0x548] sm:$0xff]
        %v462 = vld [vmem:[%s255 + $0x550] sm:$0xff]
        %v463 = vld [vmem:[%s255 + $0x558] sm:$0xff]
        %v464 = vld [vmem:[%s255 + $0x560] sm:$0xff]
        %v465 = vld [vmem:[%s255 + $0x568] sm:$0xff]
        %v466 = vld [vmem:[%s255 + $0x570] sm:$0xff]
        %v467 = vld [vmem:[%s255 + $0x578] sm:$0xff]
        %v468 = vld [vmem:[%s255 + $0x580] sm:$0xff]
        %v469 = vld [vmem:[%s255 + $0x588] sm:$0xff]
        %v470 = vld [vmem:[%s255 + $0x590] sm:$0xff]
        %v471 = vld [vmem:[%s255 + $0x598] sm:$0xff]
        %v472 = vld [vmem:[%s255 + $0x5a0] sm:$0xff]
        %v473 = vld [vmem:[%s255 + $0x5a8] sm:$0xff]
        %v474 = vld [vmem:[%s255 + $0x5b0] sm:$0xff]
        %v475 = vld [vmem:[%s255 + $0x5b8] sm:$0xff]
        %v476 = vld [vmem:[%s255 + $0x5c0] sm:$0xff]
        %v477 = vld [vmem:[%s255 + $0x5c8] sm:$0xff]
        %v478 = vld [vmem:[%s255 + $0x5d0] sm:$0xff]
        %v479 = vld [vmem:[%s255 + $0x5d8] sm:$0xff]
        %v480 = vld [vmem:[%s255 + $0x5e0] sm:$0xff]
        %v481 = vld [vmem:[%s255 + $0x5e8] sm:$0xff]
        %v482 = vld [vmem:[%s255 + $0x5f0] sm:$0xff]
        %v483 = vld [vmem:[%s255 + $0x5f8] sm:$0xff]
        %v484 = vld [vmem:[%s255 + $0x600] sm:$0xff]
        %v485 = vld [vmem:[%s255 + $0x608] sm:$0xff]
        %v486 = vld [vmem:[%s255 + $0x610] sm:$0xff]
        %v487 = vld [vmem:[%s255 + $0x618] sm:$0xff]
        %v488 = vld [vmem:[%s255 + $0x620] sm:$0xff]
        %v489 = vld [vmem:[%s255 + $0x628] sm:$0xff]
        %v490 = vld [vmem:[%s255 + $0x630] sm:$0xff]
        %v491 = vld [vmem:[%s255 + $0x638] sm:$0xff]
        %v492 = vld [vmem:[%s255 + $0x640] sm:$0xff]
        %v493 = vld [vmem:[%s255 + $0x648] sm:$0xff]
        %v494 = vld [vmem:[%s255 + $0x650] sm:$0xff]
        %v495 = vld [vmem:[%s255 + $0x658] sm:$0xff]
        %v496 = vld [vmem:[%s255 + $0x660] sm:$0xff]
        %v497 = vld [vmem:[%s255 + $0x668] sm:$0xff]
        %v498 = vld [vmem:[%s255 + $0x670] sm:$0xff]
        %v499 = vld [vmem:[%s255 + $0x678] sm:$0xff]
        %v500 = vld [vmem:[%s255 + $0x680] sm:$0xff]
        %v501 = vld [vmem:[%s255 + $0x688] sm:$0xff]
        %v502 = vld [vmem:[%s255 + $0x690] sm:$0xff]
        %v503 = vld [vmem:[%s255 + $0x698] sm:$0xff]
        %v504 = vld [vmem:[%s255 + $0x6a0] sm:$0xff]
        %v505 = vld [vmem:[%s255 + $0x6a8] sm:$0xff]
        %v506 = vld [vmem:[%s255 + $0x6b0] sm:$0xff]
        %v507 = vld [vmem:[%s255 + $0x6b8] sm:$0xff]
        %v508 = vld [vmem:[%s255 + $0x6c0] sm:$0xff]
        %v509 = vld [vmem:[%s255 + $0x6c8] sm:$0xff]
        %v510 = vld [vmem:[%s255 + $0x6d0] sm:$0xff]
        %v511 = vld [vmem:[%s255 + $0x6d8] sm:$0xff]
        %v512 = vld [vmem:[%s255 + $0x6e0] sm:$0xff]
        %v513 = vld [vmem:[%s255 + $0x6e8] sm:$0xff]
        %v514 = vld [vmem:[%s255 + $0x6f0] sm:$0xff]
        %v515 = vld [vmem:[%s255 + $0x6f8] sm:$0xff]
        %v516 = vld [vmem:[%s255 + $0x700] sm:$0xff]
        %v517 = vld [vmem:[%s255 + $0x708] sm:$0xff]
        %v518 = vld [vmem:[%s255 + $0x710] sm:$0xff]
        %v519 = vld [vmem:[%s255 + $0x718] sm:$0xff]
        %v520 = vld [vmem:[%s255 + $0x720] sm:$0xff]
        %v521 = vld [vmem:[%s255 + $0x728] sm:$0xff]
        %v522 = vld [vmem:[%s255 + $0x730] sm:$0xff]
        %v523 = vld [vmem:[%s255 + $0x738] sm:$0xff]
        %v524 = vld [vmem:[%s255 + $0x740] sm:$0xff]
        %v525 = vld [vmem:[%s255 + $0x748] sm:$0xff]
        %v526 = vld [vmem:[%s255 + $0x750] sm:$0xff]
        %v527 = vld [vmem:[%s255 + $0x758] sm:$0xff]
        %v528 = vld [vmem:[%s255 + $0x760] sm:$0xff]
        %v529 = vld [vmem:[%s255 + $0x768] sm:$0xff]
        %v530 = vld [vmem:[%s255 + $0x770] sm:$0xff]
        %v531 = vld [vmem:[%s255 + $0x778] sm:$0xff]
        %v532 = vld [vmem:[%s255 + $0x780] sm:$0xff]
        %v533 = vld [vmem:[%s255 + $0x788] sm:$0xff]
        %v534 = vld [vmem:[%s255 + $0x790] sm:$0xff]
        %v535 = vld [vmem:[%s255 + $0x798] sm:$0xff]
        %v536 = vld [vmem:[%s255 + $0x7a0] sm:$0xff]
        %v537 = vld [vmem:[%s255 + $0x7a8] sm:$0xff]
        %v538 = vld [vmem:[%s255 + $0x7b0] sm:$0xff]
        %v539 = vld [vmem:[%s255 + $0x7b8] sm:$0xff]
        %v540 = vld [vmem:[%s255 + $0x7c0] sm:$0xff]
        %v541 = vld [vmem:[%s255 + $0x7c8] sm:$0xff]
        %v542 = vld [vmem:[%s255 + $0x7d0] sm:$0xff]
        %v543 = vld [vmem:[%s255 + $0x7d8] sm:$0xff]
        %v544 = vld [vmem:[%s255 + $0x7e0] sm:$0xff]
        %v545 = vld [vmem:[%s255 + $0x7e8] sm:$0xff]
        %v546 = vld [vmem:[%s255 + $0x7f0] sm:$0xff]
        %v547 = vld [vmem:[%s255 + $0x7f8] sm:$0xff]
        %v548 = vld [vmem:[#allocation5] sm:$0xff]
        %v549 = vld [vmem:[#allocation5 + $0x8] sm:$0xff]
        %v550 = vld [vmem:[#allocation5 + $0x10] sm:$0xff]
        %v551 = vld [vmem:[#allocation5 + $0x18] sm:$0xff]
        %v552 = vld [vmem:[#allocation5 + $0x20] sm:$0xff]
        %v553 = vld [vmem:[#allocation5 + $0x28] sm:$0xff]
        %v554 = vld [vmem:[#allocation5 + $0x30] sm:$0xff]
        %v555 = vld [vmem:[#allocation5 + $0x38] sm:$0xff]
        %v556 = vld [vmem:[#allocation5 + $0x40] sm:$0xff]
        %v557 = vld [vmem:[#allocation5 + $0x48] sm:$0xff]
        %v558 = vld [vmem:[#allocation5 + $0x50] sm:$0xff]
        %v559 = vld [vmem:[#allocation5 + $0x58] sm:$0xff]
        %v560 = vld [vmem:[#allocation5 + $0x60] sm:$0xff]
        %v561 = vld [vmem:[#allocation5 + $0x68] sm:$0xff]
        %v562 = vld [vmem:[#allocation5 + $0x70] sm:$0xff]
        %v563 = vld [vmem:[#allocation5 + $0x78] sm:$0xff]
        %v564 = vld [vmem:[%s3] sm:$0xff]
        %v565 = vld [vmem:[%s3 + $0x8] sm:$0xff]
        %v566 = vld [vmem:[%s3 + $0x10] sm:$0xff]
        %v567 = vld [vmem:[%s3 + $0x18] sm:$0xff]
        %v568 = vld [vmem:[%s3 + $0x20] sm:$0xff]
        %v569 = vld [vmem:[%s3 + $0x28] sm:$0xff]
        %v570 = vld [vmem:[%s3 + $0x30] sm:$0xff]
        %v571 = vld [vmem:[%s3 + $0x38] sm:$0xff]
        %v572 = vld [vmem:[%s3 + $0x40] sm:$0xff]
        %v573 = vld [vmem:[%s3 + $0x48] sm:$0xff]
        %v574 = vld [vmem:[%s3 + $0x50] sm:$0xff]
        %v575 = vld [vmem:[%s3 + $0x58] sm:$0xff]
        %v576 = vld [vmem:[%s3 + $0x60] sm:$0xff]
        %v577 = vld [vmem:[%s3 + $0x68] sm:$0xff]
        %v578 = vld [vmem:[%s3 + $0x70] sm:$0xff]
        %v579 = vld [vmem:[%s3 + $0x78] sm:$0xff]
        %581 = vset.pattern.permute.xlu0 0
        %582 = vperm.xlu0 %581, %v564
        %v583 = vpop.permute.xlu0 %582
        %586 = vset.pattern.permute.xlu0 0
        %587 = vperm.xlu0 %586, %v565
        %v588 = vpop.permute.xlu0 %587
        %591 = vset.pattern.permute.xlu0 0
        %592 = vperm.xlu0 %591, %v566
        %v593 = vpop.permute.xlu0 %592
        %596 = vset.pattern.permute.xlu0 0
        %597 = vperm.xlu0 %596, %v567
        %v598 = vpop.permute.xlu0 %597
        %601 = vset.pattern.permute.xlu0 0
        %602 = vperm.xlu0 %601, %v568
        %v603 = vpop.permute.xlu0 %602
        %606 = vset.pattern.permute.xlu0 0
        %607 = vperm.xlu0 %606, %v569
        %v608 = vpop.permute.xlu0 %607
        %611 = vset.pattern.permute.xlu0 0
        %612 = vperm.xlu0 %611, %v570
        %v613 = vpop.permute.xlu0 %612
        %616 = vset.pattern.permute.xlu0 0
        %617 = vperm.xlu0 %616, %v571
        %v618 = vpop.permute.xlu0 %617
        %621 = vset.pattern.permute.xlu0 0
        %622 = vperm.xlu0 %621, %v572
        %v623 = vpop.permute.xlu0 %622
        %626 = vset.pattern.permute.xlu0 0
        %627 = vperm.xlu0 %626, %v573
        %v628 = vpop.permute.xlu0 %627
        %631 = vset.pattern.permute.xlu0 0
        %632 = vperm.xlu0 %631, %v574
        %v633 = vpop.permute.xlu0 %632
        %636 = vset.pattern.permute.xlu0 0
        %637 = vperm.xlu0 %636, %v575
        %v638 = vpop.permute.xlu0 %637
        %641 = vset.pattern.permute.xlu0 0
        %642 = vperm.xlu0 %641, %v576
        %v643 = vpop.permute.xlu0 %642
        %646 = vset.pattern.permute.xlu0 0
        %647 = vperm.xlu0 %646, %v577
        %v648 = vpop.permute.xlu0 %647
        %651 = vset.pattern.permute.xlu0 0
        %652 = vperm.xlu0 %651, %v578
        %v653 = vpop.permute.xlu0 %652
        %656 = vset.pattern.permute.xlu0 0
        %657 = vperm.xlu0 %656, %v579
        %v658 = vpop.permute.xlu0 %657
        %660 = vmatprep.subr.mxu0 %v421
        %661 = vmatpush1.msra.mxu0 %v420
        %662 = vmatprep.subr.mxu0 %v429
        %663 = vmatpush1.msra.mxu0 %v428
        %664 = vmatprep.subr.mxu0 %v437
        %665 = vmatpush1.msra.mxu0 %v436
        %666 = vmatprep.subr.mxu0 %v445
        %667 = vmatpush1.msra.mxu0 %v444
        %668 = vmatprep.subr.mxu0 %v453
        %669 = vmatpush1.msra.mxu0 %v452
        %670 = vmatprep.subr.mxu0 %v461
        %671 = vmatpush1.msra.mxu0 %v460
        %672 = vmatprep.subr.mxu0 %v469
        %673 = vmatpush1.msra.mxu0 %v468
        %674 = vmatprep.subr.mxu0 %v477
        %675 = vmatpush1.msra.mxu0 %v476
        %676 = vmatprep.subr.mxu0 %v485
        %677 = vmatpush1.msra.mxu0 %v484
        %678 = vmatprep.subr.mxu0 %v493
        %679 = vmatpush1.msra.mxu0 %v492
        %680 = vmatprep.subr.mxu0 %v501
        %681 = vmatpush1.msra.mxu0 %v500
        %682 = vmatprep.subr.mxu0 %v509
        %683 = vmatpush1.msra.mxu0 %v508
        %684 = vmatprep.subr.mxu0 %v517
        %685 = vmatpush1.msra.mxu0 %v516
        %686 = vmatprep.subr.mxu0 %v525
        %687 = vmatpush1.msra.mxu0 %v524
        %688 = vmatprep.subr.mxu0 %v533
        %689 = vmatpush1.msra.mxu0 %v532
        %690 = vmatprep.subr.mxu0 %v541
        %691 = vmatpush1.msra.mxu0 %v540
        %692 = vmatprep.subr.mxu0 0.0
        %693 = vmatpush1.msra.mxu0 0.0
        %694 = vmatprep.subr.mxu0 0.0
        %695 = vmatpush1.msra.mxu0 0.0
        %696 = vmatprep.subr.mxu0 0.0
        %697 = vmatpush1.msra.mxu0 0.0
        %698 = vmatprep.subr.mxu0 0.0
        %699 = vmatpush1.msra.mxu0 0.0
        %700 = vmatprep.subr.mxu0 0.0
        %701 = vmatpush1.msra.mxu0 0.0
        %702 = vmatprep.subr.mxu0 0.0
        %703 = vmatpush1.msra.mxu0 0.0
        %704 = vmatprep.subr.mxu0 0.0
        %705 = vmatpush1.msra.mxu0 0.0
        %706 = vmatprep.subr.mxu0 0.0
        %707 = vmatpush1.msra.mxu0 0.0
        %708 = vmatprep.subr.mxu0 0.0
        %709 = vmatpush1.msra.mxu0 0.0
        %710 = vmatprep.subr.mxu0 0.0
        %711 = vmatpush1.msra.mxu0 0.0
        %712 = vmatprep.subr.mxu0 0.0
        %713 = vmatpush1.msra.mxu0 0.0
        %714 = vmatprep.subr.mxu0 0.0
        %715 = vmatpush1.msra.mxu0 0.0
        %716 = vmatprep.subr.mxu0 0.0
        %717 = vmatpush1.msra.mxu0 0.0
        %718 = vmatprep.subr.mxu0 0.0
        %719 = vmatpush1.msra.mxu0 0.0
        %720 = vmatprep.subr.mxu0 0.0
        %721 = vmatpush1.msra.mxu0 0.0
        %722 = vmatprep.subr.mxu0 0.0
        %723 = vmatpush1.msra.mxu0 0.0
        %724 = vmatprep.mubr.f32.mxu0 0.0
        %725 = vmatmul.mubr.f32.gmra.mrb[0].mxu0 %v548
        %v726 = vpop.f32.mrb[0].mxu0
        %v727 = vadd.f32 %v583, %v726
        %v728 = vpop.f32.mrb[0].mxu0
        %v729 = vadd.f32 %v583, %v728
        %730 = vmatprep.mubr.f32.mxu0 0.0
        %731 = vmatmul.mubr.f32.gmra.mrb[0].mxu0 %v549
        %v732 = vpop.f32.mrb[0].mxu0
        %v733 = vadd.f32 %v588, %v732
        %v734 = vpop.f32.mrb[0].mxu0
        %v735 = vadd.f32 %v588, %v734
        %736 = vmatprep.mubr.f32.mxu0 0.0
        %737 = vmatmul.mubr.f32.gmra.mrb[0].mxu0 %v550
        %v738 = vpop.f32.mrb[0].mxu0
        %v739 = vadd.f32 %v593, %v738
        %v740 = vpop.f32.mrb[0].mxu0
        %v741 = vadd.f32 %v593, %v740
        %742 = vmatprep.mubr.f32.mxu0 0.0
        %743 = vmatmul.mubr.f32.gmra.mrb[0].mxu0 %v551
        %v744 = vpop.f32.mrb[0].mxu0
        %v745 = vadd.f32 %v598, %v744
        %v746 = vpop.f32.mrb[0].mxu0
        %v747 = vadd.f32 %v598, %v746
        %748 = vmatprep.mubr.f32.mxu0 0.0
        %749 = vmatmul.mubr.f32.gmra.mrb[0].mxu0 %v552
        %v750 = vpop.f32.mrb[0].mxu0
        %v751 = vadd.f32 %v603, %v750
        %v752 = vpop.f32.mrb[0].mxu0
        %v753 = vadd.f32 %v603, %v752
        %754 = vmatprep.mubr.f32.mxu0 0.0
        %755 = vmatmul.mubr.f32.gmra.mrb[0].mxu0 %v553
        %v756 = vpop.f32.mrb[0].mxu0
        %v757 = vadd.f32 %v608, %v756
        %v758 = vpop.f32.mrb[0].mxu0
        %v759 = vadd.f32 %v608, %v758
        %760 = vmatprep.mubr.f32.mxu0 0.0
        %761 = vmatmul.mubr.f32.gmra.mrb[0].mxu0 %v554
        %v762 = vpop.f32.mrb[0].mxu0
        %v763 = vadd.f32 %v613, %v762
        %v764 = vpop.f32.mrb[0].mxu0
        %v765 = vadd.f32 %v613, %v764
        %766 = vmatprep.mubr.f32.mxu0 0.0
        %767 = vmatmul.mubr.f32.gmra.mrb[0].mxu0 %v555
        %v768 = vpop.f32.mrb[0].mxu0
        %v769 = vadd.f32 %v618, %v768
        %v770 = vpop.f32.mrb[0].mxu0
        %v771 = vadd.f32 %v618, %v770
        %772 = vmatprep.mubr.f32.mxu0 0.0
        %773 = vmatmul.mubr.f32.gmra.mrb[0].mxu0 %v556
        %v774 = vpop.f32.mrb[0].mxu0
        %v775 = vadd.f32 %v623, %v774
        %v776 = vpop.f32.mrb[0].mxu0
        %v777 = vadd.f32 %v623, %v776
        %778 = vmatprep.mubr.f32.mxu0 0.0
        %779 = vmatmul.mubr.f32.gmra.mrb[0].mxu0 %v557
        %v780 = vpop.f32.mrb[0].mxu0
        %v781 = vadd.f32 %v628, %v780
        %v782 = vpop.f32.mrb[0].mxu0
        %v783 = vadd.f32 %v628, %v782
        %784 = vmatprep.mubr.f32.mxu0 0.0
        %785 = vmatmul.mubr.f32.gmra.mrb[0].mxu0 %v558
        %v786 = vpop.f32.mrb[0].mxu0
        %v787 = vadd.f32 %v633, %v786
        %v788 = vpop.f32.mrb[0].mxu0
        %v789 = vadd.f32 %v633, %v788
        %790 = vmatprep.mubr.f32.mxu0 0.0
        %791 = vmatmul.mubr.f32.gmra.mrb[0].mxu0 %v559
        %v792 = vpop.f32.mrb[0].mxu0
        %v793 = vadd.f32 %v638, %v792
        %v794 = vpop.f32.mrb[0].mxu0
        %v795 = vadd.f32 %v638, %v794
        %796 = vmatprep.mubr.f32.mxu0 0.0
        %797 = vmatmul.mubr.f32.gmra.mrb[0].mxu0 %v560
        %v798 = vpop.f32.mrb[0].mxu0
        %v799 = vadd.f32 %v643, %v798
        %v800 = vpop.f32.mrb[0].mxu0
        %v801 = vadd.f32 %v643, %v800
        %802 = vmatprep.mubr.f32.mxu0 0.0
        %803 = vmatmul.mubr.f32.gmra.mrb[0].mxu0 %v561
        %v804 = vpop.f32.mrb[0].mxu0
        %v805 = vadd.f32 %v648, %v804
        %v806 = vpop.f32.mrb[0].mxu0
        %v807 = vadd.f32 %v648, %v806
        %808 = vmatprep.mubr.f32.mxu0 0.0
        %809 = vmatmul.mubr.f32.gmra.mrb[0].mxu0 %v562
        %v810 = vpop.f32.mrb[0].mxu0
        %v811 = vadd.f32 %v653, %v810
        %v812 = vpop.f32.mrb[0].mxu0
        %v813 = vadd.f32 %v653, %v812
        %814 = vmatprep.mubr.f32.mxu0 0.0
        %815 = vmatmul.mubr.f32.gmra.mrb[0].mxu0 %v563
        %v816 = vpop.f32.mrb[0].mxu0
        %v817 = vadd.f32 %v658, %v816
        %v818 = vpop.f32.mrb[0].mxu0
        %v819 = vadd.f32 %v658, %v818
        %820 = vdwg.mxu0
        %821 = vmatprep.subr.mxu0 %v423
        %822 = vmatpush1.msra.mxu0 %v422
        %823 = vmatprep.subr.mxu0 %v431
        %824 = vmatpush1.msra.mxu0 %v430
        %825 = vmatprep.subr.mxu0 %v439
        %826 = vmatpush1.msra.mxu0 %v438
        %827 = vmatprep.subr.mxu0 %v447
        %828 = vmatpush1.msra.mxu0 %v446
        %829 = vmatprep.subr.mxu0 %v455
        %830 = vmatpush1.msra.mxu0 %v454
        %831 = vmatprep.subr.mxu0 %v463
        %832 = vmatpush1.msra.mxu0 %v462
        %833 = vmatprep.subr.mxu0 %v471
        %834 = vmatpush1.msra.mxu0 %v470
        %835 = vmatprep.subr.mxu0 %v479
        %836 = vmatpush1.msra.mxu0 %v478
        %837 = vmatprep.subr.mxu0 %v487
        %838 = vmatpush1.msra.mxu0 %v486
        %839 = vmatprep.subr.mxu0 %v495
        %840 = vmatpush1.msra.mxu0 %v494
        %841 = vmatprep.subr.mxu0 %v503
        %842 = vmatpush1.msra.mxu0 %v502
        %843 = vmatprep.subr.mxu0 %v511
        %844 = vmatpush1.msra.mxu0 %v510
        %845 = vmatprep.subr.mxu0 %v519
        %846 = vmatpush1.msra.mxu0 %v518
        %847 = vmatprep.subr.mxu0 %v527
        %848 = vmatpush1.msra.mxu0 %v526
        %849 = vmatprep.subr.mxu0 %v535
        %850 = vmatpush1.msra.mxu0 %v534
        %851 = vmatprep.subr.mxu0 %v543
        %852 = vmatpush1.msra.mxu0 %v542
        %853 = vmatprep.subr.mxu0 0.0
        %854 = vmatpush1.msra.mxu0 0.0
        %855 = vmatprep.subr.mxu0 0.0
        %856 = vmatpush1.msra.mxu0 0.0
        %857 = vmatprep.subr.mxu0 0.0
        %858 = vmatpush1.msra.mxu0 0.0
        %859 = vmatprep.subr.mxu0 0.0
        %860 = vmatpush1.msra.mxu0 0.0
        %861 = vmatprep.subr.mxu0 0.0
        %862 = vmatpush1.msra.mxu0 0.0
        %863 = vmatprep.subr.mxu0 0.0
        %864 = vmatpush1.msra.mxu0 0.0
        %865 = vmatprep.subr.mxu0 0.0
        %866 = vmatpush1.msra.mxu0 0.0
        %867 = vmatprep.subr.mxu0 0.0
        %868 = vmatpush1.msra.mxu0 0.0
        %869 = vmatprep.subr.mxu0 0.0
        %870 = vmatpush1.msra.mxu0 0.0
        %871 = vmatprep.subr.mxu0 0.0
        %872 = vmatpush1.msra.mxu0 0.0
        %873 = vmatprep.subr.mxu0 0.0
        %874 = vmatpush1.msra.mxu0 0.0
        %875 = vmatprep.subr.mxu0 0.0
        %876 = vmatpush1.msra.mxu0 0.0
        %877 = vmatprep.subr.mxu0 0.0
        %878 = vmatpush1.msra.mxu0 0.0
        %879 = vmatprep.subr.mxu0 0.0
        %880 = vmatpush1.msra.mxu0 0.0
        %881 = vmatprep.subr.mxu0 0.0
        %882 = vmatpush1.msra.mxu0 0.0
        %883 = vmatprep.subr.mxu0 0.0
        %884 = vmatpush1.msra.mxu0 0.0
        %885 = vmatprep.mubr.f32.mxu0 0.0
        %886 = vmatmul.mubr.f32.gmra.mrb[0].mxu0 %v548
        %v887 = vpop.f32.mrb[0].mxu0
        %v888 = vadd.f32 %v583, %v887
        %v889 = vpop.f32.mrb[0].mxu0
        %v890 = vadd.f32 %v583, %v889
        %891 = vmatprep.mubr.f32.mxu0 0.0
        %892 = vmatmul.mubr.f32.gmra.mrb[0].mxu0 %v549
        %v893 = vpop.f32.mrb[0].mxu0
        %v894 = vadd.f32 %v588, %v893
        %v895 = vpop.f32.mrb[0].mxu0
        %v896 = vadd.f32 %v588, %v895
        %897 = vmatprep.mubr.f32.mxu0 0.0
        %898 = vmatmul.mubr.f32.gmra.mrb[0].mxu0 %v550
        %v899 = vpop.f32.mrb[0].mxu0
        %v900 = vadd.f32 %v593, %v899
        %v901 = vpop.f32.mrb[0].mxu0
        %v902 = vadd.f32 %v593, %v901
        %903 = vmatprep.mubr.f32.mxu0 0.0
        %904 = vmatmul.mubr.f32.gmra.mrb[0].mxu0 %v551
        %v905 = vpop.f32.mrb[0].mxu0
        %v906 = vadd.f32 %v598, %v905
        %v907 = vpop.f32.mrb[0].mxu0
        %v908 = vadd.f32 %v598, %v907
        %909 = vmatprep.mubr.f32.mxu0 0.0
        %910 = vmatmul.mubr.f32.gmra.mrb[0].mxu0 %v552
        %v911 = vpop.f32.mrb[0].mxu0
        %v912 = vadd.f32 %v603, %v911
        %v913 = vpop.f32.mrb[0].mxu0
        %v914 = vadd.f32 %v603, %v913
        %915 = vmatprep.mubr.f32.mxu0 0.0
        %916 = vmatmul.mubr.f32.gmra.mrb[0].mxu0 %v553
        %v917 = vpop.f32.mrb[0].mxu0
        %v918 = vadd.f32 %v608, %v917
        %v919 = vpop.f32.mrb[0].mxu0
        %v920 = vadd.f32 %v608, %v919
        %921 = vmatprep.mubr.f32.mxu0 0.0
        %922 = vmatmul.mubr.f32.gmra.mrb[0].mxu0 %v554
        %v923 = vpop.f32.mrb[0].mxu0
        %v924 = vadd.f32 %v613, %v923
        %v925 = vpop.f32.mrb[0].mxu0
        %v926 = vadd.f32 %v613, %v925
        %927 = vmatprep.mubr.f32.mxu0 0.0
        %928 = vmatmul.mubr.f32.gmra.mrb[0].mxu0 %v555
        %v929 = vpop.f32.mrb[0].mxu0
        %v930 = vadd.f32 %v618, %v929
        %v931 = vpop.f32.mrb[0].mxu0
        %v932 = vadd.f32 %v618, %v931
        %933 = vmatprep.mubr.f32.mxu0 0.0
        %934 = vmatmul.mubr.f32.gmra.mrb[0].mxu0 %v556
        %v935 = vpop.f32.mrb[0].mxu0
        %v936 = vadd.f32 %v623, %v935
        %v937 = vpop.f32.mrb[0].mxu0
        %v938 = vadd.f32 %v623, %v937
        %939 = vmatprep.mubr.f32.mxu0 0.0
        %940 = vmatmul.mubr.f32.gmra.mrb[0].mxu0 %v557
        %v941 = vpop.f32.mrb[0].mxu0
        %v942 = vadd.f32 %v628, %v941
        %v943 = vpop.f32.mrb[0].mxu0
        %v944 = vadd.f32 %v628, %v943
        %945 = vmatprep.mubr.f32.mxu0 0.0
        %946 = vmatmul.mubr.f32.gmra.mrb[0].mxu0 %v558
        %v947 = vpop.f32.mrb[0].mxu0
        %v948 = vadd.f32 %v633, %v947
        %v949 = vpop.f32.mrb[0].mxu0
        %v950 = vadd.f32 %v633, %v949
        %951 = vmatprep.mubr.f32.mxu0 0.0
        %952 = vmatmul.mubr.f32.gmra.mrb[0].mxu0 %v559
        %v953 = vpop.f32.mrb[0].mxu0
        %v954 = vadd.f32 %v638, %v953
        %v955 = vpop.f32.mrb[0].mxu0
        %v956 = vadd.f32 %v638, %v955
        %957 = vmatprep.mubr.f32.mxu0 0.0
        %958 = vmatmul.mubr.f32.gmra.mrb[0].mxu0 %v560
        %v959 = vpop.f32.mrb[0].mxu0
        %v960 = vadd.f32 %v643, %v959
        %v961 = vpop.f32.mrb[0].mxu0
        %v962 = vadd.f32 %v643, %v961
        %963 = vmatprep.mubr.f32.mxu0 0.0
        %964 = vmatmul.mubr.f32.gmra.mrb[0].mxu0 %v561
        %v965 = vpop.f32.mrb[0].mxu0
        %v966 = vadd.f32 %v648, %v965
        %v967 = vpop.f32.mrb[0].mxu0
        %v968 = vadd.f32 %v648, %v967
        %969 = vmatprep.mubr.f32.mxu0 0.0
        %970 = vmatmul.mubr.f32.gmra.mrb[0].mxu0 %v562
        %v971 = vpop.f32.mrb[0].mxu0
        %v972 = vadd.f32 %v653, %v971
        %v973 = vpop.f32.mrb[0].mxu0
        %v974 = vadd.f32 %v653, %v973
        %975 = vmatprep.mubr.f32.mxu0 0.0
        %976 = vmatmul.mubr.f32.gmra.mrb[0].mxu0 %v563
        %v977 = vpop.f32.mrb[0].mxu0
        %v978 = vadd.f32 %v658, %v977
        %v979 = vpop.f32.mrb[0].mxu0
        %v980 = vadd.f32 %v658, %v979
        %981 = vdwg.mxu0
        %982 = vmatprep.subr.mxu0 %v425
        %983 = vmatpush1.msra.mxu0 %v424
        %984 = vmatprep.subr.mxu0 %v433
        %985 = vmatpush1.msra.mxu0 %v432
        %986 = vmatprep.subr.mxu0 %v441
        %987 = vmatpush1.msra.mxu0 %v440
        %988 = vmatprep.subr.mxu0 %v449
        %989 = vmatpush1.msra.mxu0 %v448
        %990 = vmatprep.subr.mxu0 %v457
        %991 = vmatpush1.msra.mxu0 %v456
        %992 = vmatprep.subr.mxu0 %v465
        %993 = vmatpush1.msra.mxu0 %v464
        %994 = vmatprep.subr.mxu0 %v473
        %995 = vmatpush1.msra.mxu0 %v472
        %996 = vmatprep.subr.mxu0 %v481
        %997 = vmatpush1.msra.mxu0 %v480
        %998 = vmatprep.subr.mxu0 %v489
        %999 = vmatpush1.msra.mxu0 %v488
        %1000 = vmatprep.subr.mxu0 %v497
        %1001 = vmatpush1.msra.mxu0 %v496
        %1002 = vmatprep.subr.mxu0 %v505
        %1003 = vmatpush1.msra.mxu0 %v504
        %1004 = vmatprep.subr.mxu0 %v513
        %1005 = vmatpush1.msra.mxu0 %v512
        %1006 = vmatprep.subr.mxu0 %v521
        %1007 = vmatpush1.msra.mxu0 %v520
        %1008 = vmatprep.subr.mxu0 %v529
        %1009 = vmatpush1.msra.mxu0 %v528
        %1010 = vmatprep.subr.mxu0 %v537
        %1011 = vmatpush1.msra.mxu0 %v536
        %1012 = vmatprep.subr.mxu0 %v545
        %1013 = vmatpush1.msra.mxu0 %v544
        %1014 = vmatprep.subr.mxu0 0.0
        %1015 = vmatpush1.msra.mxu0 0.0
        %1016 = vmatprep.subr.mxu0 0.0
        %1017 = vmatpush1.msra.mxu0 0.0
        %1018 = vmatprep.subr.mxu0 0.0
        %1019 = vmatpush1.msra.mxu0 0.0
        %1020 = vmatprep.subr.mxu0 0.0
        %1021 = vmatpush1.msra.mxu0 0.0
        %1022 = vmatprep.subr.mxu0 0.0
        %1023 = vmatpush1.msra.mxu0 0.0
        %1024 = vmatprep.subr.mxu0 0.0
        %1025 = vmatpush1.msra.mxu0 0.0
        %1026 = vmatprep.subr.mxu0 0.0
        %1027 = vmatpush1.msra.mxu0 0.0
        %1028 = vmatprep.subr.mxu0 0.0
        %1029 = vmatpush1.msra.mxu0 0.0
        %1030 = vmatprep.subr.mxu0 0.0
        %1031 = vmatpush1.msra.mxu0 0.0
        %1032 = vmatprep.subr.mxu0 0.0
        %1033 = vmatpush1.msra.mxu0 0.0
        %1034 = vmatprep.subr.mxu0 0.0
        %1035 = vmatpush1.msra.mxu0 0.0
        %1036 = vmatprep.subr.mxu0 0.0
        %1037 = vmatpush1.msra.mxu0 0.0
        %1038 = vmatprep.subr.mxu0 0.0
        %1039 = vmatpush1.msra.mxu0 0.0
        %1040 = vmatprep.subr.mxu0 0.0
        %1041 = vmatpush1.msra.mxu0 0.0
        %1042 = vmatprep.subr.mxu0 0.0
        %1043 = vmatpush1.msra.mxu0 0.0
        %1044 = vmatprep.subr.mxu0 0.0
        %1045 = vmatpush1.msra.mxu0 0.0
        %1046 = vmatprep.mubr.f32.mxu0 0.0
        %1047 = vmatmul.mubr.f32.gmra.mrb[0].mxu0 %v548
        %v1048 = vpop.f32.mrb[0].mxu0
        %v1049 = vadd.f32 %v583, %v1048
        %v1050 = vpop.f32.mrb[0].mxu0
        %v1051 = vadd.f32 %v583, %v1050
        %1052 = vmatprep.mubr.f32.mxu0 0.0
        %1053 = vmatmul.mubr.f32.gmra.mrb[0].mxu0 %v549
        %v1054 = vpop.f32.mrb[0].mxu0
        %v1055 = vadd.f32 %v588, %v1054
        %v1056 = vpop.f32.mrb[0].mxu0
        %v1057 = vadd.f32 %v588, %v1056
        %1058 = vmatprep.mubr.f32.mxu0 0.0
        %1059 = vmatmul.mubr.f32.gmra.mrb[0].mxu0 %v550
        %v1060 = vpop.f32.mrb[0].mxu0
        %v1061 = vadd.f32 %v593, %v1060
        %v1062 = vpop.f32.mrb[0].mxu0
        %v1063 = vadd.f32 %v593, %v1062
        %1064 = vmatprep.mubr.f32.mxu0 0.0
        %1065 = vmatmul.mubr.f32.gmra.mrb[0].mxu0 %v551
        %v1066 = vpop.f32.mrb[0].mxu0
        %v1067 = vadd.f32 %v598, %v1066
        %v1068 = vpop.f32.mrb[0].mxu0
        %v1069 = vadd.f32 %v598, %v1068
        %1070 = vmatprep.mubr.f32.mxu0 0.0
        %1071 = vmatmul.mubr.f32.gmra.mrb[0].mxu0 %v552
        %v1072 = vpop.f32.mrb[0].mxu0
        %v1073 = vadd.f32 %v603, %v1072
        %v1074 = vpop.f32.mrb[0].mxu0
        %v1075 = vadd.f32 %v603, %v1074
        %1076 = vmatprep.mubr.f32.mxu0 0.0
        %1077 = vmatmul.mubr.f32.gmra.mrb[0].mxu0 %v553
        %v1078 = vpop.f32.mrb[0].mxu0
        %v1079 = vadd.f32 %v608, %v1078
        %v1080 = vpop.f32.mrb[0].mxu0
        %v1081 = vadd.f32 %v608, %v1080
        %1082 = vmatprep.mubr.f32.mxu0 0.0
        %1083 = vmatmul.mubr.f32.gmra.mrb[0].mxu0 %v554
        %v1084 = vpop.f32.mrb[0].mxu0
        %v1085 = vadd.f32 %v613, %v1084
        %v1086 = vpop.f32.mrb[0].mxu0
        %v1087 = vadd.f32 %v613, %v1086
        %1088 = vmatprep.mubr.f32.mxu0 0.0
        %1089 = vmatmul.mubr.f32.gmra.mrb[0].mxu0 %v555
        %v1090 = vpop.f32.mrb[0].mxu0
        %v1091 = vadd.f32 %v618, %v1090
        %v1092 = vpop.f32.mrb[0].mxu0
        %v1093 = vadd.f32 %v618, %v1092
        %1094 = vmatprep.mubr.f32.mxu0 0.0
        %1095 = vmatmul.mubr.f32.gmra.mrb[0].mxu0 %v556
        %v1096 = vpop.f32.mrb[0].mxu0
        %v1097 = vadd.f32 %v623, %v1096
        %v1098 = vpop.f32.mrb[0].mxu0
        %v1099 = vadd.f32 %v623, %v1098
        %1100 = vmatprep.mubr.f32.mxu0 0.0
        %1101 = vmatmul.mubr.f32.gmra.mrb[0].mxu0 %v557
        %v1102 = vpop.f32.mrb[0].mxu0
        %v1103 = vadd.f32 %v628, %v1102
        %v1104 = vpop.f32.mrb[0].mxu0
        %v1105 = vadd.f32 %v628, %v1104
        %1106 = vmatprep.mubr.f32.mxu0 0.0
        %1107 = vmatmul.mubr.f32.gmra.mrb[0].mxu0 %v558
        %v1108 = vpop.f32.mrb[0].mxu0
        %v1109 = vadd.f32 %v633, %v1108
        %v1110 = vpop.f32.mrb[0].mxu0
        %v1111 = vadd.f32 %v633, %v1110
        %1112 = vmatprep.mubr.f32.mxu0 0.0
        %1113 = vmatmul.mubr.f32.gmra.mrb[0].mxu0 %v559
        %v1114 = vpop.f32.mrb[0].mxu0
        %v1115 = vadd.f32 %v638, %v1114
        %v1116 = vpop.f32.mrb[0].mxu0
        %v1117 = vadd.f32 %v638, %v1116
        %1118 = vmatprep.mubr.f32.mxu0 0.0
        %1119 = vmatmul.mubr.f32.gmra.mrb[0].mxu0 %v560
        %v1120 = vpop.f32.mrb[0].mxu0
        %v1121 = vadd.f32 %v643, %v1120
        %v1122 = vpop.f32.mrb[0].mxu0
        %v1123 = vadd.f32 %v643, %v1122
        %1124 = vmatprep.mubr.f32.mxu0 0.0
        %1125 = vmatmul.mubr.f32.gmra.mrb[0].mxu0 %v561
        %v1126 = vpop.f32.mrb[0].mxu0
        %v1127 = vadd.f32 %v648, %v1126
        %v1128 = vpop.f32.mrb[0].mxu0
        %v1129 = vadd.f32 %v648, %v1128
        %1130 = vmatprep.mubr.f32.mxu0 0.0
        %1131 = vmatmul.mubr.f32.gmra.mrb[0].mxu0 %v562
        %v1132 = vpop.f32.mrb[0].mxu0
        %v1133 = vadd.f32 %v653, %v1132
        %v1134 = vpop.f32.mrb[0].mxu0
        %v1135 = vadd.f32 %v653, %v1134
        %1136 = vmatprep.mubr.f32.mxu0 0.0
        %1137 = vmatmul.mubr.f32.gmra.mrb[0].mxu0 %v563
        %v1138 = vpop.f32.mrb[0].mxu0
        %v1139 = vadd.f32 %v658, %v1138
        %v1140 = vpop.f32.mrb[0].mxu0
        %v1141 = vadd.f32 %v658, %v1140
        %1142 = vdwg.mxu0
        %1143 = vmatprep.subr.mxu0 %v427
        %1144 = vmatpush1.msra.mxu0 %v426
        %1145 = vmatprep.subr.mxu0 %v435
        %1146 = vmatpush1.msra.mxu0 %v434
        %1147 = vmatprep.subr.mxu0 %v443
        %1148 = vmatpush1.msra.mxu0 %v442
        %1149 = vmatprep.subr.mxu0 %v451
        %1150 = vmatpush1.msra.mxu0 %v450
        %1151 = vmatprep.subr.mxu0 %v459
        %1152 = vmatpush1.msra.mxu0 %v458
        %1153 = vmatprep.subr.mxu0 %v467
        %1154 = vmatpush1.msra.mxu0 %v466
        %1155 = vmatprep.subr.mxu0 %v475
        %1156 = vmatpush1.msra.mxu0 %v474
        %1157 = vmatprep.subr.mxu0 %v483
        %1158 = vmatpush1.msra.mxu0 %v482
        %1159 = vmatprep.subr.mxu0 %v491
        %1160 = vmatpush1.msra.mxu0 %v490
        %1161 = vmatprep.subr.mxu0 %v499
        %1162 = vmatpush1.msra.mxu0 %v498
        %1163 = vmatprep.subr.mxu0 %v507
        %1164 = vmatpush1.msra.mxu0 %v506
        %1165 = vmatprep.subr.mxu0 %v515
        %1166 = vmatpush1.msra.mxu0 %v514
        %1167 = vmatprep.subr.mxu0 %v523
        %1168 = vmatpush1.msra.mxu0 %v522
        %1169 = vmatprep.subr.mxu0 %v531
        %1170 = vmatpush1.msra.mxu0 %v530
        %1171 = vmatprep.subr.mxu0 %v539
        %1172 = vmatpush1.msra.mxu0 %v538
        %1173 = vmatprep.subr.mxu0 %v547
        %1174 = vmatpush1.msra.mxu0 %v546
        %1175 = vmatprep.subr.mxu0 0.0
        %1176 = vmatpush1.msra.mxu0 0.0
        %1177 = vmatprep.subr.mxu0 0.0
        %1178 = vmatpush1.msra.mxu0 0.0
        %1179 = vmatprep.subr.mxu0 0.0
        %1180 = vmatpush1.msra.mxu0 0.0
        %1181 = vmatprep.subr.mxu0 0.0
        %1182 = vmatpush1.msra.mxu0 0.0
        %1183 = vmatprep.subr.mxu0 0.0
        %1184 = vmatpush1.msra.mxu0 0.0
        %1185 = vmatprep.subr.mxu0 0.0
        %1186 = vmatpush1.msra.mxu0 0.0
        %1187 = vmatprep.subr.mxu0 0.0
        %1188 = vmatpush1.msra.mxu0 0.0
        %1189 = vmatprep.subr.mxu0 0.0
        %1190 = vmatpush1.msra.mxu0 0.0
        %1191 = vmatprep.subr.mxu0 0.0
        %1192 = vmatpush1.msra.mxu0 0.0
        %1193 = vmatprep.subr.mxu0 0.0
        %1194 = vmatpush1.msra.mxu0 0.0
        %1195 = vmatprep.subr.mxu0 0.0
        %1196 = vmatpush1.msra.mxu0 0.0
        %1197 = vmatprep.subr.mxu0 0.0
        %1198 = vmatpush1.msra.mxu0 0.0
        %1199 = vmatprep.subr.mxu0 0.0
        %1200 = vmatpush1.msra.mxu0 0.0
        %1201 = vmatprep.subr.mxu0 0.0
        %1202 = vmatpush1.msra.mxu0 0.0
        %1203 = vmatprep.subr.mxu0 0.0
        %1204 = vmatpush1.msra.mxu0 0.0
        %1205 = vmatprep.subr.mxu0 0.0
        %1206 = vmatpush1.msra.mxu0 0.0
        %1207 = vmatprep.mubr.f32.mxu0 0.0
        %1208 = vmatmul.mubr.f32.gmra.mrb[0].mxu0 %v548
        %v1209 = vpop.f32.mrb[0].mxu0
        %v1210 = vadd.f32 %v583, %v1209
        %v1211 = vpop.f32.mrb[0].mxu0
        %v1212 = vadd.f32 %v583, %v1211
        %1213 = vmatprep.mubr.f32.mxu0 0.0
        %1214 = vmatmul.mubr.f32.gmra.mrb[0].mxu0 %v549
        %v1215 = vpop.f32.mrb[0].mxu0
        %v1216 = vadd.f32 %v588, %v1215
        %v1217 = vpop.f32.mrb[0].mxu0
        %v1218 = vadd.f32 %v588, %v1217
        %1219 = vmatprep.mubr.f32.mxu0 0.0
        %1220 = vmatmul.mubr.f32.gmra.mrb[0].mxu0 %v550
        %v1221 = vpop.f32.mrb[0].mxu0
        %v1222 = vadd.f32 %v593, %v1221
        %v1223 = vpop.f32.mrb[0].mxu0
        %v1224 = vadd.f32 %v593, %v1223
        %1225 = vmatprep.mubr.f32.mxu0 0.0
        %1226 = vmatmul.mubr.f32.gmra.mrb[0].mxu0 %v551
        %v1227 = vpop.f32.mrb[0].mxu0
        %v1228 = vadd.f32 %v598, %v1227
        %v1229 = vpop.f32.mrb[0].mxu0
        %v1230 = vadd.f32 %v598, %v1229
        %1231 = vmatprep.mubr.f32.mxu0 0.0
        %1232 = vmatmul.mubr.f32.gmra.mrb[0].mxu0 %v552
        %v1233 = vpop.f32.mrb[0].mxu0
        %v1234 = vadd.f32 %v603, %v1233
        %v1235 = vpop.f32.mrb[0].mxu0
        %v1236 = vadd.f32 %v603, %v1235
        %1237 = vmatprep.mubr.f32.mxu0 0.0
        %1238 = vmatmul.mubr.f32.gmra.mrb[0].mxu0 %v553
        %v1239 = vpop.f32.mrb[0].mxu0
        %v1240 = vadd.f32 %v608, %v1239
        %v1241 = vpop.f32.mrb[0].mxu0
        %v1242 = vadd.f32 %v608, %v1241
        %1243 = vmatprep.mubr.f32.mxu0 0.0
        %1244 = vmatmul.mubr.f32.gmra.mrb[0].mxu0 %v554
        %v1245 = vpop.f32.mrb[0].mxu0
        %v1246 = vadd.f32 %v613, %v1245
        %v1247 = vpop.f32.mrb[0].mxu0
        %v1248 = vadd.f32 %v613, %v1247
        %1249 = vmatprep.mubr.f32.mxu0 0.0
        %1250 = vmatmul.mubr.f32.gmra.mrb[0].mxu0 %v555
        %v1251 = vpop.f32.mrb[0].mxu0
        %v1252 = vadd.f32 %v618, %v1251
        %v1253 = vpop.f32.mrb[0].mxu0
        %v1254 = vadd.f32 %v618, %v1253
        %1255 = vmatprep.mubr.f32.mxu0 0.0
        %1256 = vmatmul.mubr.f32.gmra.mrb[0].mxu0 %v556
        %v1257 = vpop.f32.mrb[0].mxu0
        %v1258 = vadd.f32 %v623, %v1257
        %v1259 = vpop.f32.mrb[0].mxu0
        %v1260 = vadd.f32 %v623, %v1259
        %1261 = vmatprep.mubr.f32.mxu0 0.0
        %1262 = vmatmul.mubr.f32.gmra.mrb[0].mxu0 %v557
        %v1263 = vpop.f32.mrb[0].mxu0
        %v1264 = vadd.f32 %v628, %v1263
        %v1265 = vpop.f32.mrb[0].mxu0
        %v1266 = vadd.f32 %v628, %v1265
        %1267 = vmatprep.mubr.f32.mxu0 0.0
        %1268 = vmatmul.mubr.f32.gmra.mrb[0].mxu0 %v558
        %v1269 = vpop.f32.mrb[0].mxu0
        %v1270 = vadd.f32 %v633, %v1269
        %v1271 = vpop.f32.mrb[0].mxu0
        %v1272 = vadd.f32 %v633, %v1271
        %1273 = vmatprep.mubr.f32.mxu0 0.0
        %1274 = vmatmul.mubr.f32.gmra.mrb[0].mxu0 %v559
        %v1275 = vpop.f32.mrb[0].mxu0
        %v1276 = vadd.f32 %v638, %v1275
        %v1277 = vpop.f32.mrb[0].mxu0
        %v1278 = vadd.f32 %v638, %v1277
        %1279 = vmatprep.mubr.f32.mxu0 0.0
        %1280 = vmatmul.mubr.f32.gmra.mrb[0].mxu0 %v560
        %v1281 = vpop.f32.mrb[0].mxu0
        %v1282 = vadd.f32 %v643, %v1281
        %v1283 = vpop.f32.mrb[0].mxu0
        %v1284 = vadd.f32 %v643, %v1283
        %1285 = vmatprep.mubr.f32.mxu0 0.0
        %1286 = vmatmul.mubr.f32.gmra.mrb[0].mxu0 %v561
        %v1287 = vpop.f32.mrb[0].mxu0
        %v1288 = vadd.f32 %v648, %v1287
        %v1289 = vpop.f32.mrb[0].mxu0
        %v1290 = vadd.f32 %v648, %v1289
        %1291 = vmatprep.mubr.f32.mxu0 0.0
        %1292 = vmatmul.mubr.f32.gmra.mrb[0].mxu0 %v562
        %v1293 = vpop.f32.mrb[0].mxu0
        %v1294 = vadd.f32 %v653, %v1293
        %v1295 = vpop.f32.mrb[0].mxu0
        %v1296 = vadd.f32 %v653, %v1295
        %1297 = vmatprep.mubr.f32.mxu0 0.0
        %1298 = vmatmul.mubr.f32.gmra.mrb[0].mxu0 %v563
        %v1299 = vpop.f32.mrb[0].mxu0
        %v1300 = vadd.f32 %v658, %v1299
        %v1301 = vpop.f32.mrb[0].mxu0
        %v1302 = vadd.f32 %v658, %v1301
        %1303 = vdwg.mxu0
        %v1304 = vmax.f32 %v727, 0.0
        %v1305 = vmax.f32 %v729, 0.0
        %v1306 = vmax.f32 %v888, 0.0
        %v1307 = vmax.f32 %v890, 0.0
        %v1308 = vmax.f32 %v1049, 0.0
        %v1309 = vmax.f32 %v1051, 0.0
        %v1310 = vmax.f32 %v1210, 0.0
        %v1311 = vmax.f32 %v1212, 0.0
        %v1312 = vmax.f32 %v733, 0.0
        %v1313 = vmax.f32 %v735, 0.0
        %v1314 = vmax.f32 %v894, 0.0
        %v1315 = vmax.f32 %v896, 0.0
        %v1316 = vmax.f32 %v1055, 0.0
        %v1317 = vmax.f32 %v1057, 0.0
        %v1318 = vmax.f32 %v1216, 0.0
        %v1319 = vmax.f32 %v1218, 0.0
        %v1320 = vmax.f32 %v739, 0.0
        %v1321 = vmax.f32 %v741, 0.0
        %v1322 = vmax.f32 %v900, 0.0
        %v1323 = vmax.f32 %v902, 0.0
        %v1324 = vmax.f32 %v1061, 0.0
        %v1325 = vmax.f32 %v1063, 0.0
        %v1326 = vmax.f32 %v1222, 0.0
        %v1327 = vmax.f32 %v1224, 0.0
        %v1328 = vmax.f32 %v745, 0.0
        %v1329 = vmax.f32 %v747, 0.0
        %v1330 = vmax.f32 %v906, 0.0
        %v1331 = vmax.f32 %v908, 0.0
        %v1332 = vmax.f32 %v1067, 0.0
        %v1333 = vmax.f32 %v1069, 0.0
        %v1334 = vmax.f32 %v1228, 0.0
        %v1335 = vmax.f32 %v1230, 0.0
        %v1336 = vmax.f32 %v751, 0.0
        %v1337 = vmax.f32 %v753, 0.0
        %v1338 = vmax.f32 %v912, 0.0
        %v1339 = vmax.f32 %v914, 0.0
        %v1340 = vmax.f32 %v1073, 0.0
        %v1341 = vmax.f32 %v1075, 0.0
        %v1342 = vmax.f32 %v1234, 0.0
        %v1343 = vmax.f32 %v1236, 0.0
        %v1344 = vmax.f32 %v757, 0.0
        %v1345 = vmax.f32 %v759, 0.0
        %v1346 = vmax.f32 %v918, 0.0
        %v1347 = vmax.f32 %v920, 0.0
        %v1348 = vmax.f32 %v1079, 0.0
        %v1349 = vmax.f32 %v1081, 0.0
        %v1350 = vmax.f32 %v1240, 0.0
        %v1351 = vmax.f32 %v1242, 0.0
        %v1352 = vmax.f32 %v763, 0.0
        %v1353 = vmax.f32 %v765, 0.0
        %v1354 = vmax.f32 %v924, 0.0
        %v1355 = vmax.f32 %v926, 0.0
        %v1356 = vmax.f32 %v1085, 0.0
        %v1357 = vmax.f32 %v1087, 0.0
        %v1358 = vmax.f32 %v1246, 0.0
        %v1359 = vmax.f32 %v1248, 0.0
        %v1360 = vmax.f32 %v769, 0.0
        %v1361 = vmax.f32 %v771, 0.0
        %v1362 = vmax.f32 %v930, 0.0
        %v1363 = vmax.f32 %v932, 0.0
        %v1364 = vmax.f32 %v1091, 0.0
        %v1365 = vmax.f32 %v1093, 0.0
        %v1366 = vmax.f32 %v1252, 0.0
        %v1367 = vmax.f32 %v1254, 0.0
        %v1368 = vmax.f32 %v775, 0.0
        %v1369 = vmax.f32 %v777, 0.0
        %v1370 = vmax.f32 %v936, 0.0
        %v1371 = vmax.f32 %v938, 0.0
        %v1372 = vmax.f32 %v1097, 0.0
        %v1373 = vmax.f32 %v1099, 0.0
        %v1374 = vmax.f32 %v1258, 0.0
        %v1375 = vmax.f32 %v1260, 0.0
        %v1376 = vmax.f32 %v781, 0.0
        %v1377 = vmax.f32 %v783, 0.0
        %v1378 = vmax.f32 %v942, 0.0
        %v1379 = vmax.f32 %v944, 0.0
        %v1380 = vmax.f32 %v1103, 0.0
        %v1381 = vmax.f32 %v1105, 0.0
        %v1382 = vmax.f32 %v1264, 0.0
        %v1383 = vmax.f32 %v1266, 0.0
        %v1384 = vmax.f32 %v787, 0.0
        %v1385 = vmax.f32 %v789, 0.0
        %v1386 = vmax.f32 %v948, 0.0
        %v1387 = vmax.f32 %v950, 0.0
        %v1388 = vmax.f32 %v1109, 0.0
        %v1389 = vmax.f32 %v1111, 0.0
        %v1390 = vmax.f32 %v1270, 0.0
        %v1391 = vmax.f32 %v1272, 0.0
        %v1392 = vmax.f32 %v793, 0.0
        %v1393 = vmax.f32 %v795, 0.0
        %v1394 = vmax.f32 %v954, 0.0
        %v1395 = vmax.f32 %v956, 0.0
        %v1396 = vmax.f32 %v1115, 0.0
        %v1397 = vmax.f32 %v1117, 0.0
        %v1398 = vmax.f32 %v1276, 0.0
        %v1399 = vmax.f32 %v1278, 0.0
        %v1400 = vmax.f32 %v799, 0.0
        %v1401 = vmax.f32 %v801, 0.0
        %v1402 = vmax.f32 %v960, 0.0
        %v1403 = vmax.f32 %v962, 0.0
        %v1404 = vmax.f32 %v1121, 0.0
        %v1405 = vmax.f32 %v1123, 0.0
        %v1406 = vmax.f32 %v1282, 0.0
        %v1407 = vmax.f32 %v1284, 0.0
        %v1408 = vmax.f32 %v805, 0.0
        %v1409 = vmax.f32 %v807, 0.0
        %v1410 = vmax.f32 %v966, 0.0
        %v1411 = vmax.f32 %v968, 0.0
        %v1412 = vmax.f32 %v1127, 0.0
        %v1413 = vmax.f32 %v1129, 0.0
        %v1414 = vmax.f32 %v1288, 0.0
        %v1415 = vmax.f32 %v1290, 0.0
        %v1416 = vmax.f32 %v811, 0.0
        %v1417 = vmax.f32 %v813, 0.0
        %v1418 = vmax.f32 %v972, 0.0
        %v1419 = vmax.f32 %v974, 0.0
        %v1420 = vmax.f32 %v1133, 0.0
        %v1421 = vmax.f32 %v1135, 0.0
        %v1422 = vmax.f32 %v1294, 0.0
        %v1423 = vmax.f32 %v1296, 0.0
        %v1424 = vmax.f32 %v817, 0.0
        %v1425 = vmax.f32 %v819, 0.0
        %v1426 = vmax.f32 %v978, 0.0
        %v1427 = vmax.f32 %v980, 0.0
        %v1428 = vmax.f32 %v1139, 0.0
        %v1429 = vmax.f32 %v1141, 0.0
        %v1430 = vmax.f32 %v1300, 0.0
        %v1431 = vmax.f32 %v1302, 0.0
        %v1432 = vld [vmem:[#allocation7] sm:$0xff]
        %v1433 = vld [vmem:[#allocation7 + $0x8] sm:$0xff]
        %v1434 = vld [vmem:[#allocation7 + $0x10] sm:$0xff]
        %v1435 = vld [vmem:[#allocation7 + $0x18] sm:$0xff]
        %v1436 = vld [vmem:[#allocation7 + $0x20] sm:$0xff]
        %v1437 = vld [vmem:[#allocation7 + $0x28] sm:$0xff]
        %v1438 = vld [vmem:[#allocation7 + $0x30] sm:$0xff]
        %v1439 = vld [vmem:[#allocation7 + $0x38] sm:$0xff]
        %v1440 = vld [vmem:[#allocation7 + $0x40] sm:$0xff]
        %v1441 = vld [vmem:[#allocation7 + $0x48] sm:$0xff]
        %v1442 = vld [vmem:[#allocation7 + $0x50] sm:$0xff]
        %v1443 = vld [vmem:[#allocation7 + $0x58] sm:$0xff]
        %v1444 = vld [vmem:[#allocation7 + $0x60] sm:$0xff]
        %v1445 = vld [vmem:[#allocation7 + $0x68] sm:$0xff]
        %v1446 = vld [vmem:[#allocation7 + $0x70] sm:$0xff]
        %v1447 = vld [vmem:[#allocation7 + $0x78] sm:$0xff]
        %v1448 = vld [vmem:[%s4] sm:$0xff]
        %v1449 = vld [vmem:[%s4 + $0x8] sm:$0xff]
        %v1450 = vld [vmem:[%s4 + $0x10] sm:$0xff]
        %v1451 = vld [vmem:[%s4 + $0x18] sm:$0xff]
        %v1452 = vld [vmem:[%s4 + $0x20] sm:$0xff]
        %v1453 = vld [vmem:[%s4 + $0x28] sm:$0xff]
        %v1454 = vld [vmem:[%s4 + $0x30] sm:$0xff]
        %v1455 = vld [vmem:[%s4 + $0x38] sm:$0xff]
        %v1456 = vld [vmem:[%s4 + $0x40] sm:$0xff]
        %v1457 = vld [vmem:[%s4 + $0x48] sm:$0xff]
        %v1458 = vld [vmem:[%s4 + $0x50] sm:$0xff]
        %v1459 = vld [vmem:[%s4 + $0x58] sm:$0xff]
        %v1460 = vld [vmem:[%s4 + $0x60] sm:$0xff]
        %v1461 = vld [vmem:[%s4 + $0x68] sm:$0xff]
        %v1462 = vld [vmem:[%s4 + $0x70] sm:$0xff]
        %v1463 = vld [vmem:[%s4 + $0x78] sm:$0xff]
        %1465 = vset.pattern.permute.xlu0 0
        %1466 = vperm.xlu0 %1465, %v1448
        %v1467 = vpop.permute.xlu0 %1466
        %1470 = vset.pattern.permute.xlu0 0
        %1471 = vperm.xlu0 %1470, %v1449
        %v1472 = vpop.permute.xlu0 %1471
        %1475 = vset.pattern.permute.xlu0 0
        %1476 = vperm.xlu0 %1475, %v1450
        %v1477 = vpop.permute.xlu0 %1476
        %1480 = vset.pattern.permute.xlu0 0
        %1481 = vperm.xlu0 %1480, %v1451
        %v1482 = vpop.permute.xlu0 %1481
        %1485 = vset.pattern.permute.xlu0 0
        %1486 = vperm.xlu0 %1485, %v1452
        %v1487 = vpop.permute.xlu0 %1486
        %1490 = vset.pattern.permute.xlu0 0
        %1491 = vperm.xlu0 %1490, %v1453
        %v1492 = vpop.permute.xlu0 %1491
        %1495 = vset.pattern.permute.xlu0 0
        %1496 = vperm.xlu0 %1495, %v1454
        %v1497 = vpop.permute.xlu0 %1496
        %1500 = vset.pattern.permute.xlu0 0
        %1501 = vperm.xlu0 %1500, %v1455
        %v1502 = vpop.permute.xlu0 %1501
        %1505 = vset.pattern.permute.xlu0 0
        %1506 = vperm.xlu0 %1505, %v1456
        %v1507 = vpop.permute.xlu0 %1506
        %1510 = vset.pattern.permute.xlu0 0
        %1511 = vperm.xlu0 %1510, %v1457
        %v1512 = vpop.permute.xlu0 %1511
        %1515 = vset.pattern.permute.xlu0 0
        %1516 = vperm.xlu0 %1515, %v1458
        %v1517 = vpop.permute.xlu0 %1516
        %1520 = vset.pattern.permute.xlu0 0
        %1521 = vperm.xlu0 %1520, %v1459
        %v1522 = vpop.permute.xlu0 %1521
        %1525 = vset.pattern.permute.xlu0 0
        %1526 = vperm.xlu0 %1525, %v1460
        %v1527 = vpop.permute.xlu0 %1526
        %1530 = vset.pattern.permute.xlu0 0
        %1531 = vperm.xlu0 %1530, %v1461
        %v1532 = vpop.permute.xlu0 %1531
        %1535 = vset.pattern.permute.xlu0 0
        %1536 = vperm.xlu0 %1535, %v1462
        %v1537 = vpop.permute.xlu0 %1536
        %1540 = vset.pattern.permute.xlu0 0
        %1541 = vperm.xlu0 %1540, %v1463
        %v1542 = vpop.permute.xlu0 %1541
        %1544 = vmatprep.subr.mxu0 %v293
        %1545 = vmatpush1.msra.mxu0 %v292
        %1546 = vmatprep.subr.mxu0 %v301
        %1547 = vmatpush1.msra.mxu0 %v300
        %1548 = vmatprep.subr.mxu0 %v309
        %1549 = vmatpush1.msra.mxu0 %v308
        %1550 = vmatprep.subr.mxu0 %v317
        %1551 = vmatpush1.msra.mxu0 %v316
        %1552 = vmatprep.subr.mxu0 %v325
        %1553 = vmatpush1.msra.mxu0 %v324
        %1554 = vmatprep.subr.mxu0 %v333
        %1555 = vmatpush1.msra.mxu0 %v332
        %1556 = vmatprep.subr.mxu0 %v341
        %1557 = vmatpush1.msra.mxu0 %v340
        %1558 = vmatprep.subr.mxu0 %v349
        %1559 = vmatpush1.msra.mxu0 %v348
        %1560 = vmatprep.subr.mxu0 %v357
        %1561 = vmatpush1.msra.mxu0 %v356
        %1562 = vmatprep.subr.mxu0 %v365
        %1563 = vmatpush1.msra.mxu0 %v364
        %1564 = vmatprep.subr.mxu0 %v373
        %1565 = vmatpush1.msra.mxu0 %v372
        %1566 = vmatprep.subr.mxu0 %v381
        %1567 = vmatpush1.msra.mxu0 %v380
        %1568 = vmatprep.subr.mxu0 %v389
        %1569 = vmatpush1.msra.mxu0 %v388
        %1570 = vmatprep.subr.mxu0 %v397
        %1571 = vmatpush1.msra.mxu0 %v396
        %1572 = vmatprep.subr.mxu0 %v405
        %1573 = vmatpush1.msra.mxu0 %v404
        %1574 = vmatprep.subr.mxu0 %v413
        %1575 = vmatpush1.msra.mxu0 %v412
        %1576 = vmatprep.subr.mxu0 0.0
        %1577 = vmatpush1.msra.mxu0 0.0
        %1578 = vmatprep.subr.mxu0 0.0
        %1579 = vmatpush1.msra.mxu0 0.0
        %1580 = vmatprep.subr.mxu0 0.0
        %1581 = vmatpush1.msra.mxu0 0.0
        %1582 = vmatprep.subr.mxu0 0.0
        %1583 = vmatpush1.msra.mxu0 0.0
        %1584 = vmatprep.subr.mxu0 0.0
        %1585 = vmatpush1.msra.mxu0 0.0
        %1586 = vmatprep.subr.mxu0 0.0
        %1587 = vmatpush1.msra.mxu0 0.0
        %1588 = vmatprep.subr.mxu0 0.0
        %1589 = vmatpush1.msra.mxu0 0.0
        %1590 = vmatprep.subr.mxu0 0.0
        %1591 = vmatpush1.msra.mxu0 0.0
        %1592 = vmatprep.subr.mxu0 0.0
        %1593 = vmatpush1.msra.mxu0 0.0
        %1594 = vmatprep.subr.mxu0 0.0
        %1595 = vmatpush1.msra.mxu0 0.0
        %1596 = vmatprep.subr.mxu0 0.0
        %1597 = vmatpush1.msra.mxu0 0.0
        %1598 = vmatprep.subr.mxu0 0.0
        %1599 = vmatpush1.msra.mxu0 0.0
        %1600 = vmatprep.subr.mxu0 0.0
        %1601 = vmatpush1.msra.mxu0 0.0
        %1602 = vmatprep.subr.mxu0 0.0
        %1603 = vmatpush1.msra.mxu0 0.0
        %1604 = vmatprep.subr.mxu0 0.0
        %1605 = vmatpush1.msra.mxu0 0.0
        %1606 = vmatprep.subr.mxu0 0.0
        %1607 = vmatpush1.msra.mxu0 0.0
        %1608 = vmatprep.mubr.f32.mxu0 0.0
        %1609 = vmatmul.mubr.f32.gmra.mrb[0].mxu0 %v1432
        %v1610 = vpop.f32.mrb[0].mxu0
        %v1611 = vadd.f32 %v1467, %v1610
        %v1612 = vpop.f32.mrb[0].mxu0
        %v1613 = vadd.f32 %v1467, %v1612
        %1614 = vmatprep.mubr.f32.mxu0 0.0
        %1615 = vmatmul.mubr.f32.gmra.mrb[0].mxu0 %v1433
        %v1616 = vpop.f32.mrb[0].mxu0
        %v1617 = vadd.f32 %v1472, %v1616
        %v1618 = vpop.f32.mrb[0].mxu0
        %v1619 = vadd.f32 %v1472, %v1618
        %1620 = vmatprep.mubr.f32.mxu0 0.0
        %1621 = vmatmul.mubr.f32.gmra.mrb[0].mxu0 %v1434
        %v1622 = vpop.f32.mrb[0].mxu0
        %v1623 = vadd.f32 %v1477, %v1622
        %v1624 = vpop.f32.mrb[0].mxu0
        %v1625 = vadd.f32 %v1477, %v1624
        %1626 = vmatprep.mubr.f32.mxu0 0.0
        %1627 = vmatmul.mubr.f32.gmra.mrb[0].mxu0 %v1435
        %v1628 = vpop.f32.mrb[0].mxu0
        %v1629 = vadd.f32 %v1482, %v1628
        %v1630 = vpop.f32.mrb[0].mxu0
        %v1631 = vadd.f32 %v1482, %v1630
        %1632 = vmatprep.mubr.f32.mxu0 0.0
        %1633 = vmatmul.mubr.f32.gmra.mrb[0].mxu0 %v1436
        %v1634 = vpop.f32.mrb[0].mxu0
        %v1635 = vadd.f32 %v1487, %v1634
        %v1636 = vpop.f32.mrb[0].mxu0
        %v1637 = vadd.f32 %v1487, %v1636
        %1638 = vmatprep.mubr.f32.mxu0 0.0
        %1639 = vmatmul.mubr.f32.gmra.mrb[0].mxu0 %v1437
        %v1640 = vpop.f32.mrb[0].mxu0
        %v1641 = vadd.f32 %v1492, %v1640
        %v1642 = vpop.f32.mrb[0].mxu0
        %v1643 = vadd.f32 %v1492, %v1642
        %1644 = vmatprep.mubr.f32.mxu0 0.0
        %1645 = vmatmul.mubr.f32.gmra.mrb[0].mxu0 %v1438
        %v1646 = vpop.f32.mrb[0].mxu0
        %v1647 = vadd.f32 %v1497, %v1646
        %v1648 = vpop.f32.mrb[0].mxu0
        %v1649 = vadd.f32 %v1497, %v1648
        %1650 = vmatprep.mubr.f32.mxu0 0.0
        %1651 = vmatmul.mubr.f32.gmra.mrb[0].mxu0 %v1439
        %v1652 = vpop.f32.mrb[0].mxu0
        %v1653 = vadd.f32 %v1502, %v1652
        %v1654 = vpop.f32.mrb[0].mxu0
        %v1655 = vadd.f32 %v1502, %v1654
        %1656 = vmatprep.mubr.f32.mxu0 0.0
        %1657 = vmatmul.mubr.f32.gmra.mrb[0].mxu0 %v1440
        %v1658 = vpop.f32.mrb[0].mxu0
        %v1659 = vadd.f32 %v1507, %v1658
        %v1660 = vpop.f32.mrb[0].mxu0
        %v1661 = vadd.f32 %v1507, %v1660
        %1662 = vmatprep.mubr.f32.mxu0 0.0
        %1663 = vmatmul.mubr.f32.gmra.mrb[0].mxu0 %v1441
        %v1664 = vpop.f32.mrb[0].mxu0
        %v1665 = vadd.f32 %v1512, %v1664
        %v1666 = vpop.f32.mrb[0].mxu0
        %v1667 = vadd.f32 %v1512, %v1666
        %1668 = vmatprep.mubr.f32.mxu0 0.0
        %1669 = vmatmul.mubr.f32.gmra.mrb[0].mxu0 %v1442
        %v1670 = vpop.f32.mrb[0].mxu0
        %v1671 = vadd.f32 %v1517, %v1670
        %v1672 = vpop.f32.mrb[0].mxu0
        %v1673 = vadd.f32 %v1517, %v1672
        %1674 = vmatprep.mubr.f32.mxu0 0.0
        %1675 = vmatmul.mubr.f32.gmra.mrb[0].mxu0 %v1443
        %v1676 = vpop.f32.mrb[0].mxu0
        %v1677 = vadd.f32 %v1522, %v1676
        %v1678 = vpop.f32.mrb[0].mxu0
        %v1679 = vadd.f32 %v1522, %v1678
        %1680 = vmatprep.mubr.f32.mxu0 0.0
        %1681 = vmatmul.mubr.f32.gmra.mrb[0].mxu0 %v1444
        %v1682 = vpop.f32.mrb[0].mxu0
        %v1683 = vadd.f32 %v1527, %v1682
        %v1684 = vpop.f32.mrb[0].mxu0
        %v1685 = vadd.f32 %v1527, %v1684
        %1686 = vmatprep.mubr.f32.mxu0 0.0
        %1687 = vmatmul.mubr.f32.gmra.mrb[0].mxu0 %v1445
        %v1688 = vpop.f32.mrb[0].mxu0
        %v1689 = vadd.f32 %v1532, %v1688
        %v1690 = vpop.f32.mrb[0].mxu0
        %v1691 = vadd.f32 %v1532, %v1690
        %1692 = vmatprep.mubr.f32.mxu0 0.0
        %1693 = vmatmul.mubr.f32.gmra.mrb[0].mxu0 %v1446
        %v1694 = vpop.f32.mrb[0].mxu0
        %v1695 = vadd.f32 %v1537, %v1694
        %v1696 = vpop.f32.mrb[0].mxu0
        %v1697 = vadd.f32 %v1537, %v1696
        %1698 = vmatprep.mubr.f32.mxu0 0.0
        %1699 = vmatmul.mubr.f32.gmra.mrb[0].mxu0 %v1447
        %v1700 = vpop.f32.mrb[0].mxu0
        %v1701 = vadd.f32 %v1542, %v1700
        %v1702 = vpop.f32.mrb[0].mxu0
        %v1703 = vadd.f32 %v1542, %v1702
        %1704 = vdwg.mxu0
        %1705 = vmatprep.subr.mxu0 %v295
        %1706 = vmatpush1.msra.mxu0 %v294
        %1707 = vmatprep.subr.mxu0 %v303
        %1708 = vmatpush1.msra.mxu0 %v302
        %1709 = vmatprep.subr.mxu0 %v311
        %1710 = vmatpush1.msra.mxu0 %v310
        %1711 = vmatprep.subr.mxu0 %v319
        %1712 = vmatpush1.msra.mxu0 %v318
        %1713 = vmatprep.subr.mxu0 %v327
        %1714 = vmatpush1.msra.mxu0 %v326
        %1715 = vmatprep.subr.mxu0 %v335
        %1716 = vmatpush1.msra.mxu0 %v334
        %1717 = vmatprep.subr.mxu0 %v343
        %1718 = vmatpush1.msra.mxu0 %v342
        %1719 = vmatprep.subr.mxu0 %v351
        %1720 = vmatpush1.msra.mxu0 %v350
        %1721 = vmatprep.subr.mxu0 %v359
        %1722 = vmatpush1.msra.mxu0 %v358
        %1723 = vmatprep.subr.mxu0 %v367
        %1724 = vmatpush1.msra.mxu0 %v366
        %1725 = vmatprep.subr.mxu0 %v375
        %1726 = vmatpush1.msra.mxu0 %v374
        %1727 = vmatprep.subr.mxu0 %v383
        %1728 = vmatpush1.msra.mxu0 %v382
        %1729 = vmatprep.subr.mxu0 %v391
        %1730 = vmatpush1.msra.mxu0 %v390
        %1731 = vmatprep.subr.mxu0 %v399
        %1732 = vmatpush1.msra.mxu0 %v398
        %1733 = vmatprep.subr.mxu0 %v407
        %1734 = vmatpush1.msra.mxu0 %v406
        %1735 = vmatprep.subr.mxu0 %v415
        %1736 = vmatpush1.msra.mxu0 %v414
        %1737 = vmatprep.subr.mxu0 0.0
        %1738 = vmatpush1.msra.mxu0 0.0
        %1739 = vmatprep.subr.mxu0 0.0
        %1740 = vmatpush1.msra.mxu0 0.0
        %1741 = vmatprep.subr.mxu0 0.0
        %1742 = vmatpush1.msra.mxu0 0.0
        %1743 = vmatprep.subr.mxu0 0.0
        %1744 = vmatpush1.msra.mxu0 0.0
        %1745 = vmatprep.subr.mxu0 0.0
        %1746 = vmatpush1.msra.mxu0 0.0
        %1747 = vmatprep.subr.mxu0 0.0
        %1748 = vmatpush1.msra.mxu0 0.0
        %1749 = vmatprep.subr.mxu0 0.0
        %1750 = vmatpush1.msra.mxu0 0.0
        %1751 = vmatprep.subr.mxu0 0.0
        %1752 = vmatpush1.msra.mxu0 0.0
        %1753 = vmatprep.subr.mxu0 0.0
        %1754 = vmatpush1.msra.mxu0 0.0
        %1755 = vmatprep.subr.mxu0 0.0
        %1756 = vmatpush1.msra.mxu0 0.0
        %1757 = vmatprep.subr.mxu0 0.0
        %1758 = vmatpush1.msra.mxu0 0.0
        %1759 = vmatprep.subr.mxu0 0.0
        %1760 = vmatpush1.msra.mxu0 0.0
        %1761 = vmatprep.subr.mxu0 0.0
        %1762 = vmatpush1.msra.mxu0 0.0
        %1763 = vmatprep.subr.mxu0 0.0
        %1764 = vmatpush1.msra.mxu0 0.0
        %1765 = vmatprep.subr.mxu0 0.0
        %1766 = vmatpush1.msra.mxu0 0.0
        %1767 = vmatprep.subr.mxu0 0.0
        %1768 = vmatpush1.msra.mxu0 0.0
        %1769 = vmatprep.mubr.f32.mxu0 0.0
        %1770 = vmatmul.mubr.f32.gmra.mrb[0].mxu0 %v1432
        %v1771 = vpop.f32.mrb[0].mxu0
        %v1772 = vadd.f32 %v1467, %v1771
        %v1773 = vpop.f32.mrb[0].mxu0
        %v1774 = vadd.f32 %v1467, %v1773
        %1775 = vmatprep.mubr.f32.mxu0 0.0
        %1776 = vmatmul.mubr.f32.gmra.mrb[0].mxu0 %v1433
        %v1777 = vpop.f32.mrb[0].mxu0
        %v1778 = vadd.f32 %v1472, %v1777
        %v1779 = vpop.f32.mrb[0].mxu0
        %v1780 = vadd.f32 %v1472, %v1779
        %1781 = vmatprep.mubr.f32.mxu0 0.0
        %1782 = vmatmul.mubr.f32.gmra.mrb[0].mxu0 %v1434
        %v1783 = vpop.f32.mrb[0].mxu0
        %v1784 = vadd.f32 %v1477, %v1783
        %v1785 = vpop.f32.mrb[0].mxu0
        %v1786 = vadd.f32 %v1477, %v1785
        %1787 = vmatprep.mubr.f32.mxu0 0.0
        %1788 = vmatmul.mubr.f32.gmra.mrb[0].mxu0 %v1435
        %v1789 = vpop.f32.mrb[0].mxu0
        %v1790 = vadd.f32 %v1482, %v1789
        %v1791 = vpop.f32.mrb[0].mxu0
        %v1792 = vadd.f32 %v1482, %v1791
        %1793 = vmatprep.mubr.f32.mxu0 0.0
        %1794 = vmatmul.mubr.f32.gmra.mrb[0].mxu0 %v1436
        %v1795 = vpop.f32.mrb[0].mxu0
        %v1796 = vadd.f32 %v1487, %v1795
        %v1797 = vpop.f32.mrb[0].mxu0
        %v1798 = vadd.f32 %v1487, %v1797
        %1799 = vmatprep.mubr.f32.mxu0 0.0
        %1800 = vmatmul.mubr.f32.gmra.mrb[0].mxu0 %v1437
        %v1801 = vpop.f32.mrb[0].mxu0
        %v1802 = vadd.f32 %v1492, %v1801
        %v1803 = vpop.f32.mrb[0].mxu0
        %v1804 = vadd.f32 %v1492, %v1803
        %1805 = vmatprep.mubr.f32.mxu0 0.0
        %1806 = vmatmul.mubr.f32.gmra.mrb[0].mxu0 %v1438
        %v1807 = vpop.f32.mrb[0].mxu0
        %v1808 = vadd.f32 %v1497, %v1807
        %v1809 = vpop.f32.mrb[0].mxu0
        %v1810 = vadd.f32 %v1497, %v1809
        %1811 = vmatprep.mubr.f32.mxu0 0.0
        %1812 = vmatmul.mubr.f32.gmra.mrb[0].mxu0 %v1439
        %v1813 = vpop.f32.mrb[0].mxu0
        %v1814 = vadd.f32 %v1502, %v1813
        %v1815 = vpop.f32.mrb[0].mxu0
        %v1816 = vadd.f32 %v1502, %v1815
        %1817 = vmatprep.mubr.f32.mxu0 0.0
        %1818 = vmatmul.mubr.f32.gmra.mrb[0].mxu0 %v1440
        %v1819 = vpop.f32.mrb[0].mxu0
        %v1820 = vadd.f32 %v1507, %v1819
        %v1821 = vpop.f32.mrb[0].mxu0
        %v1822 = vadd.f32 %v1507, %v1821
        %1823 = vmatprep.mubr.f32.mxu0 0.0
        %1824 = vmatmul.mubr.f32.gmra.mrb[0].mxu0 %v1441
        %v1825 = vpop.f32.mrb[0].mxu0
        %v1826 = vadd.f32 %v1512, %v1825
        %v1827 = vpop.f32.mrb[0].mxu0
        %v1828 = vadd.f32 %v1512, %v1827
        %1829 = vmatprep.mubr.f32.mxu0 0.0
        %1830 = vmatmul.mubr.f32.gmra.mrb[0].mxu0 %v1442
        %v1831 = vpop.f32.mrb[0].mxu0
        %v1832 = vadd.f32 %v1517, %v1831
        %v1833 = vpop.f32.mrb[0].mxu0
        %v1834 = vadd.f32 %v1517, %v1833
        %1835 = vmatprep.mubr.f32.mxu0 0.0
        %1836 = vmatmul.mubr.f32.gmra.mrb[0].mxu0 %v1443
        %v1837 = vpop.f32.mrb[0].mxu0
        %v1838 = vadd.f32 %v1522, %v1837
        %v1839 = vpop.f32.mrb[0].mxu0
        %v1840 = vadd.f32 %v1522, %v1839
        %1841 = vmatprep.mubr.f32.mxu0 0.0
        %1842 = vmatmul.mubr.f32.gmra.mrb[0].mxu0 %v1444
        %v1843 = vpop.f32.mrb[0].mxu0
        %v1844 = vadd.f32 %v1527, %v1843
        %v1845 = vpop.f32.mrb[0].mxu0
        %v1846 = vadd.f32 %v1527, %v1845
        %1847 = vmatprep.mubr.f32.mxu0 0.0
        %1848 = vmatmul.mubr.f32.gmra.mrb[0].mxu0 %v1445
        %v1849 = vpop.f32.mrb[0].mxu0
        %v1850 = vadd.f32 %v1532, %v1849
        %v1851 = vpop.f32.mrb[0].mxu0
        %v1852 = vadd.f32 %v1532, %v1851
        %1853 = vmatprep.mubr.f32.mxu0 0.0
        %1854 = vmatmul.mubr.f32.gmra.mrb[0].mxu0 %v1446
        %v1855 = vpop.f32.mrb[0].mxu0
        %v1856 = vadd.f32 %v1537, %v1855
        %v1857 = vpop.f32.mrb[0].mxu0
        %v1858 = vadd.f32 %v1537, %v1857
        %1859 = vmatprep.mubr.f32.mxu0 0.0
        %1860 = vmatmul.mubr.f32.gmra.mrb[0].mxu0 %v1447
        %v1861 = vpop.f32.mrb[0].mxu0
        %v1862 = vadd.f32 %v1542, %v1861
        %v1863 = vpop.f32.mrb[0].mxu0
        %v1864 = vadd.f32 %v1542, %v1863
        %1865 = vdwg.mxu0
        %1866 = vmatprep.subr.mxu0 %v297
        %1867 = vmatpush1.msra.mxu0 %v296
        %1868 = vmatprep.subr.mxu0 %v305
        %1869 = vmatpush1.msra.mxu0 %v304
        %1870 = vmatprep.subr.mxu0 %v313
        %1871 = vmatpush1.msra.mxu0 %v312
        %1872 = vmatprep.subr.mxu0 %v321
        %1873 = vmatpush1.msra.mxu0 %v320
        %1874 = vmatprep.subr.mxu0 %v329
        %1875 = vmatpush1.msra.mxu0 %v328
        %1876 = vmatprep.subr.mxu0 %v337
        %1877 = vmatpush1.msra.mxu0 %v336
        %1878 = vmatprep.subr.mxu0 %v345
        %1879 = vmatpush1.msra.mxu0 %v344
        %1880 = vmatprep.subr.mxu0 %v353
        %1881 = vmatpush1.msra.mxu0 %v352
        %1882 = vmatprep.subr.mxu0 %v361
        %1883 = vmatpush1.msra.mxu0 %v360
        %1884 = vmatprep.subr.mxu0 %v369
        %1885 = vmatpush1.msra.mxu0 %v368
        %1886 = vmatprep.subr.mxu0 %v377
        %1887 = vmatpush1.msra.mxu0 %v376
        %1888 = vmatprep.subr.mxu0 %v385
        %1889 = vmatpush1.msra.mxu0 %v384
        %1890 = vmatprep.subr.mxu0 %v393
        %1891 = vmatpush1.msra.mxu0 %v392
        %1892 = vmatprep.subr.mxu0 %v401
        %1893 = vmatpush1.msra.mxu0 %v400
        %1894 = vmatprep.subr.mxu0 %v409
        %1895 = vmatpush1.msra.mxu0 %v408
        %1896 = vmatprep.subr.mxu0 %v417
        %1897 = vmatpush1.msra.mxu0 %v416
        %1898 = vmatprep.subr.mxu0 0.0
        %1899 = vmatpush1.msra.mxu0 0.0
        %1900 = vmatprep.subr.mxu0 0.0
        %1901 = vmatpush1.msra.mxu0 0.0
        %1902 = vmatprep.subr.mxu0 0.0
        %1903 = vmatpush1.msra.mxu0 0.0
        %1904 = vmatprep.subr.mxu0 0.0
        %1905 = vmatpush1.msra.mxu0 0.0
        %1906 = vmatprep.subr.mxu0 0.0
        %1907 = vmatpush1.msra.mxu0 0.0
        %1908 = vmatprep.subr.mxu0 0.0
        %1909 = vmatpush1.msra.mxu0 0.0
        %1910 = vmatprep.subr.mxu0 0.0
        %1911 = vmatpush1.msra.mxu0 0.0
        %1912 = vmatprep.subr.mxu0 0.0
        %1913 = vmatpush1.msra.mxu0 0.0
        %1914 = vmatprep.subr.mxu0 0.0
        %1915 = vmatpush1.msra.mxu0 0.0
        %1916 = vmatprep.subr.mxu0 0.0
        %1917 = vmatpush1.msra.mxu0 0.0
        %1918 = vmatprep.subr.mxu0 0.0
        %1919 = vmatpush1.msra.mxu0 0.0
        %1920 = vmatprep.subr.mxu0 0.0
        %1921 = vmatpush1.msra.mxu0 0.0
        %1922 = vmatprep.subr.mxu0 0.0
        %1923 = vmatpush1.msra.mxu0 0.0
        %1924 = vmatprep.subr.mxu0 0.0
        %1925 = vmatpush1.msra.mxu0 0.0
        %1926 = vmatprep.subr.mxu0 0.0
        %1927 = vmatpush1.msra.mxu0 0.0
        %1928 = vmatprep.subr.mxu0 0.0
        %1929 = vmatpush1.msra.mxu0 0.0
        %1930 = vmatprep.mubr.f32.mxu0 0.0
        %1931 = vmatmul.mubr.f32.gmra.mrb[0].mxu0 %v1432
        %v1932 = vpop.f32.mrb[0].mxu0
        %v1933 = vadd.f32 %v1467, %v1932
        %v1934 = vpop.f32.mrb[0].mxu0
        %v1935 = vadd.f32 %v1467, %v1934
        %1936 = vmatprep.mubr.f32.mxu0 0.0
        %1937 = vmatmul.mubr.f32.gmra.mrb[0].mxu0 %v1433
        %v1938 = vpop.f32.mrb[0].mxu0
        %v1939 = vadd.f32 %v1472, %v1938
        %v1940 = vpop.f32.mrb[0].mxu0
        %v1941 = vadd.f32 %v1472, %v1940
        %1942 = vmatprep.mubr.f32.mxu0 0.0
        %1943 = vmatmul.mubr.f32.gmra.mrb[0].mxu0 %v1434
        %v1944 = vpop.f32.mrb[0].mxu0
        %v1945 = vadd.f32 %v1477, %v1944
        %v1946 = vpop.f32.mrb[0].mxu0
        %v1947 = vadd.f32 %v1477, %v1946
        %1948 = vmatprep.mubr.f32.mxu0 0.0
        %1949 = vmatmul.mubr.f32.gmra.mrb[0].mxu0 %v1435
        %v1950 = vpop.f32.mrb[0].mxu0
        %v1951 = vadd.f32 %v1482, %v1950
        %v1952 = vpop.f32.mrb[0].mxu0
        %v1953 = vadd.f32 %v1482, %v1952
        %1954 = vmatprep.mubr.f32.mxu0 0.0
        %1955 = vmatmul.mubr.f32.gmra.mrb[0].mxu0 %v1436
        %v1956 = vpop.f32.mrb[0].mxu0
        %v1957 = vadd.f32 %v1487, %v1956
        %v1958 = vpop.f32.mrb[0].mxu0
        %v1959 = vadd.f32 %v1487, %v1958
        %1960 = vmatprep.mubr.f32.mxu0 0.0
        %1961 = vmatmul.mubr.f32.gmra.mrb[0].mxu0 %v1437
        %v1962 = vpop.f32.mrb[0].mxu0
        %v1963 = vadd.f32 %v1492, %v1962
        %v1964 = vpop.f32.mrb[0].mxu0
        %v1965 = vadd.f32 %v1492, %v1964
        %1966 = vmatprep.mubr.f32.mxu0 0.0
        %1967 = vmatmul.mubr.f32.gmra.mrb[0].mxu0 %v1438
        %v1968 = vpop.f32.mrb[0].mxu0
        %v1969 = vadd.f32 %v1497, %v1968
        %v1970 = vpop.f32.mrb[0].mxu0
        %v1971 = vadd.f32 %v1497, %v1970
        %1972 = vmatprep.mubr.f32.mxu0 0.0
        %1973 = vmatmul.mubr.f32.gmra.mrb[0].mxu0 %v1439
        %v1974 = vpop.f32.mrb[0].mxu0
        %v1975 = vadd.f32 %v1502, %v1974
        %v1976 = vpop.f32.mrb[0].mxu0
        %v1977 = vadd.f32 %v1502, %v1976
        %1978 = vmatprep.mubr.f32.mxu0 0.0
        %1979 = vmatmul.mubr.f32.gmra.mrb[0].mxu0 %v1440
        %v1980 = vpop.f32.mrb[0].mxu0
        %v1981 = vadd.f32 %v1507, %v1980
        %v1982 = vpop.f32.mrb[0].mxu0
        %v1983 = vadd.f32 %v1507, %v1982
        %1984 = vmatprep.mubr.f32.mxu0 0.0
        %1985 = vmatmul.mubr.f32.gmra.mrb[0].mxu0 %v1441
        %v1986 = vpop.f32.mrb[0].mxu0
        %v1987 = vadd.f32 %v1512, %v1986
        %v1988 = vpop.f32.mrb[0].mxu0
        %v1989 = vadd.f32 %v1512, %v1988
        %1990 = vmatprep.mubr.f32.mxu0 0.0
        %1991 = vmatmul.mubr.f32.gmra.mrb[0].mxu0 %v1442
        %v1992 = vpop.f32.mrb[0].mxu0
        %v1993 = vadd.f32 %v1517, %v1992
        %v1994 = vpop.f32.mrb[0].mxu0
        %v1995 = vadd.f32 %v1517, %v1994
        %1996 = vmatprep.mubr.f32.mxu0 0.0
        %1997 = vmatmul.mubr.f32.gmra.mrb[0].mxu0 %v1443
        %v1998 = vpop.f32.mrb[0].mxu0
        %v1999 = vadd.f32 %v1522, %v1998
        %v2000 = vpop.f32.mrb[0].mxu0
        %v2001 = vadd.f32 %v1522, %v2000
        %2002 = vmatprep.mubr.f32.mxu0 0.0
        %2003 = vmatmul.mubr.f32.gmra.mrb[0].mxu0 %v1444
        %v2004 = vpop.f32.mrb[0].mxu0
        %v2005 = vadd.f32 %v1527, %v2004
        %v2006 = vpop.f32.mrb[0].mxu0
        %v2007 = vadd.f32 %v1527, %v2006
        %2008 = vmatprep.mubr.f32.mxu0 0.0
        %2009 = vmatmul.mubr.f32.gmra.mrb[0].mxu0 %v1445
        %v2010 = vpop.f32.mrb[0].mxu0
        %v2011 = vadd.f32 %v1532, %v2010
        %v2012 = vpop.f32.mrb[0].mxu0
        %v2013 = vadd.f32 %v1532, %v2012
        %2014 = vmatprep.mubr.f32.mxu0 0.0
        %2015 = vmatmul.mubr.f32.gmra.mrb[0].mxu0 %v1446
        %v2016 = vpop.f32.mrb[0].mxu0
        %v2017 = vadd.f32 %v1537, %v2016
        %v2018 = vpop.f32.mrb[0].mxu0
        %v2019 = vadd.f32 %v1537, %v2018
        %2020 = vmatprep.mubr.f32.mxu0 0.0
        %2021 = vmatmul.mubr.f32.gmra.mrb[0].mxu0 %v1447
        %v2022 = vpop.f32.mrb[0].mxu0
        %v2023 = vadd.f32 %v1542, %v2022
        %v2024 = vpop.f32.mrb[0].mxu0
        %v2025 = vadd.f32 %v1542, %v2024
        %2026 = vdwg.mxu0
        %2027 = vmatprep.subr.mxu0 %v299
        %2028 = vmatpush1.msra.mxu0 %v298
        %2029 = vmatprep.subr.mxu0 %v307
        %2030 = vmatpush1.msra.mxu0 %v306
        %2031 = vmatprep.subr.mxu0 %v315
        %2032 = vmatpush1.msra.mxu0 %v314
        %2033 = vmatprep.subr.mxu0 %v323
        %2034 = vmatpush1.msra.mxu0 %v322
        %2035 = vmatprep.subr.mxu0 %v331
        %2036 = vmatpush1.msra.mxu0 %v330
        %2037 = vmatprep.subr.mxu0 %v339
        %2038 = vmatpush1.msra.mxu0 %v338
        %2039 = vmatprep.subr.mxu0 %v347
        %2040 = vmatpush1.msra.mxu0 %v346
        %2041 = vmatprep.subr.mxu0 %v355
        %2042 = vmatpush1.msra.mxu0 %v354
        %2043 = vmatprep.subr.mxu0 %v363
        %2044 = vmatpush1.msra.mxu0 %v362
        %2045 = vmatprep.subr.mxu0 %v371
        %2046 = vmatpush1.msra.mxu0 %v370
        %2047 = vmatprep.subr.mxu0 %v379
        %2048 = vmatpush1.msra.mxu0 %v378
        %2049 = vmatprep.subr.mxu0 %v387
        %2050 = vmatpush1.msra.mxu0 %v386
        %2051 = vmatprep.subr.mxu0 %v395
        %2052 = vmatpush1.msra.mxu0 %v394
        %2053 = vmatprep.subr.mxu0 %v403
        %2054 = vmatpush1.msra.mxu0 %v402
        %2055 = vmatprep.subr.mxu0 %v411
        %2056 = vmatpush1.msra.mxu0 %v410
        %2057 = vmatprep.subr.mxu0 %v419
        %2058 = vmatpush1.msra.mxu0 %v418
        %2059 = vmatprep.subr.mxu0 0.0
        %2060 = vmatpush1.msra.mxu0 0.0
        %2061 = vmatprep.subr.mxu0 0.0
        %2062 = vmatpush1.msra.mxu0 0.0
        %2063 = vmatprep.subr.mxu0 0.0
        %2064 = vmatpush1.msra.mxu0 0.0
        %2065 = vmatprep.subr.mxu0 0.0
        %2066 = vmatpush1.msra.mxu0 0.0
        %2067 = vmatprep.subr.mxu0 0.0
        %2068 = vmatpush1.msra.mxu0 0.0
        %2069 = vmatprep.subr.mxu0 0.0
        %2070 = vmatpush1.msra.mxu0 0.0
        %2071 = vmatprep.subr.mxu0 0.0
        %2072 = vmatpush1.msra.mxu0 0.0
        %2073 = vmatprep.subr.mxu0 0.0
        %2074 = vmatpush1.msra.mxu0 0.0
        %2075 = vmatprep.subr.mxu0 0.0
        %2076 = vmatpush1.msra.mxu0 0.0
        %2077 = vmatprep.subr.mxu0 0.0
        %2078 = vmatpush1.msra.mxu0 0.0
        %2079 = vmatprep.subr.mxu0 0.0
        %2080 = vmatpush1.msra.mxu0 0.0
        %2081 = vmatprep.subr.mxu0 0.0
        %2082 = vmatpush1.msra.mxu0 0.0
        %2083 = vmatprep.subr.mxu0 0.0
        %2084 = vmatpush1.msra.mxu0 0.0
        %2085 = vmatprep.subr.mxu0 0.0
        %2086 = vmatpush1.msra.mxu0 0.0
        %2087 = vmatprep.subr.mxu0 0.0
        %2088 = vmatpush1.msra.mxu0 0.0
        %2089 = vmatprep.subr.mxu0 0.0
        %2090 = vmatpush1.msra.mxu0 0.0
        %2091 = vmatprep.mubr.f32.mxu0 0.0
        %2092 = vmatmul.mubr.f32.gmra.mrb[0].mxu0 %v1432
        %v2093 = vpop.f32.mrb[0].mxu0
        %v2094 = vadd.f32 %v1467, %v2093
        %v2095 = vpop.f32.mrb[0].mxu0
        %v2096 = vadd.f32 %v1467, %v2095
        %2097 = vmatprep.mubr.f32.mxu0 0.0
        %2098 = vmatmul.mubr.f32.gmra.mrb[0].mxu0 %v1433
        %v2099 = vpop.f32.mrb[0].mxu0
        %v2100 = vadd.f32 %v1472, %v2099
        %v2101 = vpop.f32.mrb[0].mxu0
        %v2102 = vadd.f32 %v1472, %v2101
        %2103 = vmatprep.mubr.f32.mxu0 0.0
        %2104 = vmatmul.mubr.f32.gmra.mrb[0].mxu0 %v1434
        %v2105 = vpop.f32.mrb[0].mxu0
        %v2106 = vadd.f32 %v1477, %v2105
        %v2107 = vpop.f32.mrb[0].mxu0
        %v2108 = vadd.f32 %v1477, %v2107
        %2109 = vmatprep.mubr.f32.mxu0 0.0
        %2110 = vmatmul.mubr.f32.gmra.mrb[0].mxu0 %v1435
        %v2111 = vpop.f32.mrb[0].mxu0
        %v2112 = vadd.f32 %v1482, %v2111
        %v2113 = vpop.f32.mrb[0].mxu0
        %v2114 = vadd.f32 %v1482, %v2113
        %2115 = vmatprep.mubr.f32.mxu0 0.0
        %2116 = vmatmul.mubr.f32.gmra.mrb[0].mxu0 %v1436
        %v2117 = vpop.f32.mrb[0].mxu0
        %v2118 = vadd.f32 %v1487, %v2117
        %v2119 = vpop.f32.mrb[0].mxu0
        %v2120 = vadd.f32 %v1487, %v2119
        %2121 = vmatprep.mubr.f32.mxu0 0.0
        %2122 = vmatmul.mubr.f32.gmra.mrb[0].mxu0 %v1437
        %v2123 = vpop.f32.mrb[0].mxu0
        %v2124 = vadd.f32 %v1492, %v2123
        %v2125 = vpop.f32.mrb[0].mxu0
        %v2126 = vadd.f32 %v1492, %v2125
        %2127 = vmatprep.mubr.f32.mxu0 0.0
        %2128 = vmatmul.mubr.f32.gmra.mrb[0].mxu0 %v1438
        %v2129 = vpop.f32.mrb[0].mxu0
        %v2130 = vadd.f32 %v1497, %v2129
        %v2131 = vpop.f32.mrb[0].mxu0
        %v2132 = vadd.f32 %v1497, %v2131
        %2133 = vmatprep.mubr.f32.mxu0 0.0
        %2134 = vmatmul.mubr.f32.gmra.mrb[0].mxu0 %v1439
        %v2135 = vpop.f32.mrb[0].mxu0
        %v2136 = vadd.f32 %v1502, %v2135
        %v2137 = vpop.f32.mrb[0].mxu0
        %v2138 = vadd.f32 %v1502, %v2137
        %2139 = vmatprep.mubr.f32.mxu0 0.0
        %2140 = vmatmul.mubr.f32.gmra.mrb[0].mxu0 %v1440
        %v2141 = vpop.f32.mrb[0].mxu0
        %v2142 = vadd.f32 %v1507, %v2141
        %v2143 = vpop.f32.mrb[0].mxu0
        %v2144 = vadd.f32 %v1507, %v2143
        %2145 = vmatprep.mubr.f32.mxu0 0.0
        %2146 = vmatmul.mubr.f32.gmra.mrb[0].mxu0 %v1441
        %v2147 = vpop.f32.mrb[0].mxu0
        %v2148 = vadd.f32 %v1512, %v2147
        %v2149 = vpop.f32.mrb[0].mxu0
        %v2150 = vadd.f32 %v1512, %v2149
        %2151 = vmatprep.mubr.f32.mxu0 0.0
        %2152 = vmatmul.mubr.f32.gmra.mrb[0].mxu0 %v1442
        %v2153 = vpop.f32.mrb[0].mxu0
        %v2154 = vadd.f32 %v1517, %v2153
        %v2155 = vpop.f32.mrb[0].mxu0
        %v2156 = vadd.f32 %v1517, %v2155
        %2157 = vmatprep.mubr.f32.mxu0 0.0
        %2158 = vmatmul.mubr.f32.gmra.mrb[0].mxu0 %v1443
        %v2159 = vpop.f32.mrb[0].mxu0
        %v2160 = vadd.f32 %v1522, %v2159
        %v2161 = vpop.f32.mrb[0].mxu0
        %v2162 = vadd.f32 %v1522, %v2161
        %2163 = vmatprep.mubr.f32.mxu0 0.0
        %2164 = vmatmul.mubr.f32.gmra.mrb[0].mxu0 %v1444
        %v2165 = vpop.f32.mrb[0].mxu0
        %v2166 = vadd.f32 %v1527, %v2165
        %v2167 = vpop.f32.mrb[0].mxu0
        %v2168 = vadd.f32 %v1527, %v2167
        %2169 = vmatprep.mubr.f32.mxu0 0.0
        %2170 = vmatmul.mubr.f32.gmra.mrb[0].mxu0 %v1445
        %v2171 = vpop.f32.mrb[0].mxu0
        %v2172 = vadd.f32 %v1532, %v2171
        %v2173 = vpop.f32.mrb[0].mxu0
        %v2174 = vadd.f32 %v1532, %v2173
        %2175 = vmatprep.mubr.f32.mxu0 0.0
        %2176 = vmatmul.mubr.f32.gmra.mrb[0].mxu0 %v1446
        %v2177 = vpop.f32.mrb[0].mxu0
        %v2178 = vadd.f32 %v1537, %v2177
        %v2179 = vpop.f32.mrb[0].mxu0
        %v2180 = vadd.f32 %v1537, %v2179
        %2181 = vmatprep.mubr.f32.mxu0 0.0
        %2182 = vmatmul.mubr.f32.gmra.mrb[0].mxu0 %v1447
        %v2183 = vpop.f32.mrb[0].mxu0
        %v2184 = vadd.f32 %v1542, %v2183
        %v2185 = vpop.f32.mrb[0].mxu0
        %v2186 = vadd.f32 %v1542, %v2185
        %2187 = vdwg.mxu0
        %v2188 = vmax.f32 %v1611, 0.0
        %v2189 = vmax.f32 %v1613, 0.0
        %v2190 = vmax.f32 %v1772, 0.0
        %v2191 = vmax.f32 %v1774, 0.0
        %v2192 = vmax.f32 %v1933, 0.0
        %v2193 = vmax.f32 %v1935, 0.0
        %v2194 = vmax.f32 %v2094, 0.0
        %v2195 = vmax.f32 %v2096, 0.0
        %v2196 = vmax.f32 %v1617, 0.0
        %v2197 = vmax.f32 %v1619, 0.0
        %v2198 = vmax.f32 %v1778, 0.0
        %v2199 = vmax.f32 %v1780, 0.0
        %v2200 = vmax.f32 %v1939, 0.0
        %v2201 = vmax.f32 %v1941, 0.0
        %v2202 = vmax.f32 %v2100, 0.0
        %v2203 = vmax.f32 %v2102, 0.0
        %v2204 = vmax.f32 %v1623, 0.0
        %v2205 = vmax.f32 %v1625, 0.0
        %v2206 = vmax.f32 %v1784, 0.0
        %v2207 = vmax.f32 %v1786, 0.0
        %v2208 = vmax.f32 %v1945, 0.0
        %v2209 = vmax.f32 %v1947, 0.0
        %v2210 = vmax.f32 %v2106, 0.0
        %v2211 = vmax.f32 %v2108, 0.0
        %v2212 = vmax.f32 %v1629, 0.0
        %v2213 = vmax.f32 %v1631, 0.0
        %v2214 = vmax.f32 %v1790, 0.0
        %v2215 = vmax.f32 %v1792, 0.0
        %v2216 = vmax.f32 %v1951, 0.0
        %v2217 = vmax.f32 %v1953, 0.0
        %v2218 = vmax.f32 %v2112, 0.0
        %v2219 = vmax.f32 %v2114, 0.0
        %v2220 = vmax.f32 %v1635, 0.0
        %v2221 = vmax.f32 %v1637, 0.0
        %v2222 = vmax.f32 %v1796, 0.0
        %v2223 = vmax.f32 %v1798, 0.0
        %v2224 = vmax.f32 %v1957, 0.0
        %v2225 = vmax.f32 %v1959, 0.0
        %v2226 = vmax.f32 %v2118, 0.0
        %v2227 = vmax.f32 %v2120, 0.0
        %v2228 = vmax.f32 %v1641, 0.0
        %v2229 = vmax.f32 %v1643, 0.0
        %v2230 = vmax.f32 %v1802, 0.0
        %v2231 = vmax.f32 %v1804, 0.0
        %v2232 = vmax.f32 %v1963, 0.0
        %v2233 = vmax.f32 %v1965, 0.0
        %v2234 = vmax.f32 %v2124, 0.0
        %v2235 = vmax.f32 %v2126, 0.0
        %v2236 = vmax.f32 %v1647, 0.0
        %v2237 = vmax.f32 %v1649, 0.0
        %v2238 = vmax.f32 %v1808, 0.0
        %v2239 = vmax.f32 %v1810, 0.0
        %v2240 = vmax.f32 %v1969, 0.0
        %v2241 = vmax.f32 %v1971, 0.0
        %v2242 = vmax.f32 %v2130, 0.0
        %v2243 = vmax.f32 %v2132, 0.0
        %v2244 = vmax.f32 %v1653, 0.0
        %v2245 = vmax.f32 %v1655, 0.0
        %v2246 = vmax.f32 %v1814, 0.0
        %v2247 = vmax.f32 %v1816, 0.0
        %v2248 = vmax.f32 %v1975, 0.0
        %v2249 = vmax.f32 %v1977, 0.0
        %v2250 = vmax.f32 %v2136, 0.0
        %v2251 = vmax.f32 %v2138, 0.0
        %v2252 = vmax.f32 %v1659, 0.0
        %v2253 = vmax.f32 %v1661, 0.0
        %v2254 = vmax.f32 %v1820, 0.0
        %v2255 = vmax.f32 %v1822, 0.0
        %v2256 = vmax.f32 %v1981, 0.0
        %v2257 = vmax.f32 %v1983, 0.0
        %v2258 = vmax.f32 %v2142, 0.0
        %v2259 = vmax.f32 %v2144, 0.0
        %v2260 = vmax.f32 %v1665, 0.0
        %v2261 = vmax.f32 %v1667, 0.0
        %v2262 = vmax.f32 %v1826, 0.0
        %v2263 = vmax.f32 %v1828, 0.0
        %v2264 = vmax.f32 %v1987, 0.0
        %v2265 = vmax.f32 %v1989, 0.0
        %v2266 = vmax.f32 %v2148, 0.0
        %v2267 = vmax.f32 %v2150, 0.0
        %v2268 = vmax.f32 %v1671, 0.0
        %v2269 = vmax.f32 %v1673, 0.0
        %v2270 = vmax.f32 %v1832, 0.0
        %v2271 = vmax.f32 %v1834, 0.0
        %v2272 = vmax.f32 %v1993, 0.0
        %v2273 = vmax.f32 %v1995, 0.0
        %v2274 = vmax.f32 %v2154, 0.0
        %v2275 = vmax.f32 %v2156, 0.0
        %v2276 = vmax.f32 %v1677, 0.0
        %v2277 = vmax.f32 %v1679, 0.0
        %v2278 = vmax.f32 %v1838, 0.0
        %v2279 = vmax.f32 %v1840, 0.0
        %v2280 = vmax.f32 %v1999, 0.0
        %v2281 = vmax.f32 %v2001, 0.0
        %v2282 = vmax.f32 %v2160, 0.0
        %v2283 = vmax.f32 %v2162, 0.0
        %v2284 = vmax.f32 %v1683, 0.0
        %v2285 = vmax.f32 %v1685, 0.0
        %v2286 = vmax.f32 %v1844, 0.0
        %v2287 = vmax.f32 %v1846, 0.0
        %v2288 = vmax.f32 %v2005, 0.0
        %v2289 = vmax.f32 %v2007, 0.0
        %v2290 = vmax.f32 %v2166, 0.0
        %v2291 = vmax.f32 %v2168, 0.0
        %v2292 = vmax.f32 %v1689, 0.0
        %v2293 = vmax.f32 %v1691, 0.0
        %v2294 = vmax.f32 %v1850, 0.0
        %v2295 = vmax.f32 %v1852, 0.0
        %v2296 = vmax.f32 %v2011, 0.0
        %v2297 = vmax.f32 %v2013, 0.0
        %v2298 = vmax.f32 %v2172, 0.0
        %v2299 = vmax.f32 %v2174, 0.0
        %v2300 = vmax.f32 %v1695, 0.0
        %v2301 = vmax.f32 %v1697, 0.0
        %v2302 = vmax.f32 %v1856, 0.0
        %v2303 = vmax.f32 %v1858, 0.0
        %v2304 = vmax.f32 %v2017, 0.0
        %v2305 = vmax.f32 %v2019, 0.0
        %v2306 = vmax.f32 %v2178, 0.0
        %v2307 = vmax.f32 %v2180, 0.0
        %v2308 = vmax.f32 %v1701, 0.0
        %v2309 = vmax.f32 %v1703, 0.0
        %v2310 = vmax.f32 %v1862, 0.0
        %v2311 = vmax.f32 %v1864, 0.0
        %v2312 = vmax.f32 %v2023, 0.0
        %v2313 = vmax.f32 %v2025, 0.0
        %v2314 = vmax.f32 %v2184, 0.0
        %v2315 = vmax.f32 %v2186, 0.0
        %v2316 = vadd.f32 %v292, %v1304
        %v2317 = vadd.f32 %v293, %v1305
        %v2318 = vadd.f32 %v294, %v1306
        %v2319 = vadd.f32 %v295, %v1307
        %v2320 = vadd.f32 %v296, %v1308
        %v2321 = vadd.f32 %v297, %v1309
        %v2322 = vadd.f32 %v298, %v1310
        %v2323 = vadd.f32 %v299, %v1311
        %v2324 = vadd.f32 %v300, %v1312
        %v2325 = vadd.f32 %v301, %v1313
        %v2326 = vadd.f32 %v302, %v1314
        %v2327 = vadd.f32 %v303, %v1315
        %v2328 = vadd.f32 %v304, %v1316
        %v2329 = vadd.f32 %v305, %v1317
        %v2330 = vadd.f32 %v306, %v1318
        %v2331 = vadd.f32 %v307, %v1319
        %v2332 = vadd.f32 %v308, %v1320
        %v2333 = vadd.f32 %v309, %v1321
        %v2334 = vadd.f32 %v310, %v1322
        %v2335 = vadd.f32 %v311, %v1323
        %v2336 = vadd.f32 %v312, %v1324
        %v2337 = vadd.f32 %v313, %v1325
        %v2338 = vadd.f32 %v314, %v1326
        %v2339 = vadd.f32 %v315, %v1327
        %v2340 = vadd.f32 %v316, %v1328
        %v2341 = vadd.f32 %v317, %v1329
        %v2342 = vadd.f32 %v318, %v1330
        %v2343 = vadd.f32 %v319, %v1331
        %v2344 = vadd.f32 %v320, %v1332
        %v2345 = vadd.f32 %v321, %v1333
        %v2346 = vadd.f32 %v322, %v1334
        %v2347 = vadd.f32 %v323, %v1335
        %v2348 = vadd.f32 %v324, %v1336
        %v2349 = vadd.f32 %v325, %v1337
        %v2350 = vadd.f32 %v326, %v1338
        %v2351 = vadd.f32 %v327, %v1339
        %v2352 = vadd.f32 %v328, %v1340
        %v2353 = vadd.f32 %v329, %v1341
        %v2354 = vadd.f32 %v330, %v1342
        %v2355 = vadd.f32 %v331, %v1343
        %v2356 = vadd.f32 %v332, %v1344
        %v2357 = vadd.f32 %v333, %v1345
        %v2358 = vadd.f32 %v334, %v1346
        %v2359 = vadd.f32 %v335, %v1347
        %v2360 = vadd.f32 %v336, %v1348
        %v2361 = vadd.f32 %v337, %v1349
        %v2362 = vadd.f32 %v338, %v1350
        %v2363 = vadd.f32 %v339, %v1351
        %v2364 = vadd.f32 %v340, %v1352
        %v2365 = vadd.f32 %v341, %v1353
        %v2366 = vadd.f32 %v342, %v1354
        %v2367 = vadd.f32 %v343, %v1355
        %v2368 = vadd.f32 %v344, %v1356
        %v2369 = vadd.f32 %v345, %v1357
        %v2370 = vadd.f32 %v346, %v1358
        %v2371 = vadd.f32 %v347, %v1359
        %v2372 = vadd.f32 %v348, %v1360
        %v2373 = vadd.f32 %v349, %v1361
        %v2374 = vadd.f32 %v350, %v1362
        %v2375 = vadd.f32 %v351, %v1363
        %v2376 = vadd.f32 %v352, %v1364
        %v2377 = vadd.f32 %v353, %v1365
        %v2378 = vadd.f32 %v354, %v1366
        %v2379 = vadd.f32 %v355, %v1367
        %v2380 = vadd.f32 %v356, %v1368
        %v2381 = vadd.f32 %v357, %v1369
        %v2382 = vadd.f32 %v358, %v1370
        %v2383 = vadd.f32 %v359, %v1371
        %v2384 = vadd.f32 %v360, %v1372
        %v2385 = vadd.f32 %v361, %v1373
        %v2386 = vadd.f32 %v362, %v1374
        %v2387 = vadd.f32 %v363, %v1375
        %v2388 = vadd.f32 %v364, %v1376
        %v2389 = vadd.f32 %v365, %v1377
        %v2390 = vadd.f32 %v366, %v1378
        %v2391 = vadd.f32 %v367, %v1379
        %v2392 = vadd.f32 %v368, %v1380
        %v2393 = vadd.f32 %v369, %v1381
        %v2394 = vadd.f32 %v370, %v1382
        %v2395 = vadd.f32 %v371, %v1383
        %v2396 = vadd.f32 %v372, %v1384
        %v2397 = vadd.f32 %v373, %v1385
        %v2398 = vadd.f32 %v374, %v1386
        %v2399 = vadd.f32 %v375, %v1387
        %v2400 = vadd.f32 %v376, %v1388
        %v2401 = vadd.f32 %v377, %v1389
        %v2402 = vadd.f32 %v378, %v1390
        %v2403 = vadd.f32 %v379, %v1391
        %v2404 = vadd.f32 %v380, %v1392
        %v2405 = vadd.f32 %v381, %v1393
        %v2406 = vadd.f32 %v382, %v1394
        %v2407 = vadd.f32 %v383, %v1395
        %v2408 = vadd.f32 %v384, %v1396
        %v2409 = vadd.f32 %v385, %v1397
        %v2410 = vadd.f32 %v386, %v1398
        %v2411 = vadd.f32 %v387, %v1399
        %v2412 = vadd.f32 %v388, %v1400
        %v2413 = vadd.f32 %v389, %v1401
        %v2414 = vadd.f32 %v390, %v1402
        %v2415 = vadd.f32 %v391, %v1403
        %v2416 = vadd.f32 %v392, %v1404
        %v2417 = vadd.f32 %v393, %v1405
        %v2418 = vadd.f32 %v394, %v1406
        %v2419 = vadd.f32 %v395, %v1407
        %v2420 = vadd.f32 %v396, %v1408
        %v2421 = vadd.f32 %v397, %v1409
        %v2422 = vadd.f32 %v398, %v1410
        %v2423 = vadd.f32 %v399, %v1411
        %v2424 = vadd.f32 %v400, %v1412
        %v2425 = vadd.f32 %v401, %v1413
        %v2426 = vadd.f32 %v402, %v1414
        %v2427 = vadd.f32 %v403, %v1415
        %v2428 = vadd.f32 %v404, %v1416
        %v2429 = vadd.f32 %v405, %v1417
        %v2430 = vadd.f32 %v406, %v1418
        %v2431 = vadd.f32 %v407, %v1419
        %v2432 = vadd.f32 %v408, %v1420
        %v2433 = vadd.f32 %v409, %v1421
        %v2434 = vadd.f32 %v410, %v1422
        %v2435 = vadd.f32 %v411, %v1423
        %v2436 = vadd.f32 %v412, %v1424
        %v2437 = vadd.f32 %v413, %v1425
        %v2438 = vadd.f32 %v414, %v1426
        %v2439 = vadd.f32 %v415, %v1427
        %v2440 = vadd.f32 %v416, %v1428
        %v2441 = vadd.f32 %v417, %v1429
        %v2442 = vadd.f32 %v418, %v1430
        %v2443 = vadd.f32 %v419, %v1431
        %v2444 = vmax.f32 %v2316, 0.0
        %v2445 = vmax.f32 %v2317, 0.0
        %v2446 = vmax.f32 %v2318, 0.0
        %v2447 = vmax.f32 %v2319, 0.0
        %v2448 = vmax.f32 %v2320, 0.0
        %v2449 = vmax.f32 %v2321, 0.0
        %v2450 = vmax.f32 %v2322, 0.0
        %v2451 = vmax.f32 %v2323, 0.0
        %v2452 = vmax.f32 %v2324, 0.0
        %v2453 = vmax.f32 %v2325, 0.0
        %v2454 = vmax.f32 %v2326, 0.0
        %v2455 = vmax.f32 %v2327, 0.0
        %v2456 = vmax.f32 %v2328, 0.0
        %v2457 = vmax.f32 %v2329, 0.0
        %v2458 = vmax.f32 %v2330, 0.0
        %v2459 = vmax.f32 %v2331, 0.0
        %v2460 = vmax.f32 %v2332, 0.0
        %v2461 = vmax.f32 %v2333, 0.0
        %v2462 = vmax.f32 %v2334, 0.0
        %v2463 = vmax.f32 %v2335, 0.0
        %v2464 = vmax.f32 %v2336, 0.0
        %v2465 = vmax.f32 %v2337, 0.0
        %v2466 = vmax.f32 %v2338, 0.0
        %v2467 = vmax.f32 %v2339, 0.0
        %v2468 = vmax.f32 %v2340, 0.0
        %v2469 = vmax.f32 %v2341, 0.0
        %v2470 = vmax.f32 %v2342, 0.0
        %v2471 = vmax.f32 %v2343, 0.0
        %v2472 = vmax.f32 %v2344, 0.0
        %v2473 = vmax.f32 %v2345, 0.0
        %v2474 = vmax.f32 %v2346, 0.0
        %v2475 = vmax.f32 %v2347, 0.0
        %v2476 = vmax.f32 %v2348, 0.0
        %v2477 = vmax.f32 %v2349, 0.0
        %v2478 = vmax.f32 %v2350, 0.0
        %v2479 = vmax.f32 %v2351, 0.0
        %v2480 = vmax.f32 %v2352, 0.0
        %v2481 = vmax.f32 %v2353, 0.0
        %v2482 = vmax.f32 %v2354, 0.0
        %v2483 = vmax.f32 %v2355, 0.0
        %v2484 = vmax.f32 %v2356, 0.0
        %v2485 = vmax.f32 %v2357, 0.0
        %v2486 = vmax.f32 %v2358, 0.0
        %v2487 = vmax.f32 %v2359, 0.0
        %v2488 = vmax.f32 %v2360, 0.0
        %v2489 = vmax.f32 %v2361, 0.0
        %v2490 = vmax.f32 %v2362, 0.0
        %v2491 = vmax.f32 %v2363, 0.0
        %v2492 = vmax.f32 %v2364, 0.0
        %v2493 = vmax.f32 %v2365, 0.0
        %v2494 = vmax.f32 %v2366, 0.0
        %v2495 = vmax.f32 %v2367, 0.0
        %v2496 = vmax.f32 %v2368, 0.0
        %v2497 = vmax.f32 %v2369, 0.0
        %v2498 = vmax.f32 %v2370, 0.0
        %v2499 = vmax.f32 %v2371, 0.0
        %v2500 = vmax.f32 %v2372, 0.0
        %v2501 = vmax.f32 %v2373, 0.0
        %v2502 = vmax.f32 %v2374, 0.0
        %v2503 = vmax.f32 %v2375, 0.0
        %v2504 = vmax.f32 %v2376, 0.0
        %v2505 = vmax.f32 %v2377, 0.0
        %v2506 = vmax.f32 %v2378, 0.0
        %v2507 = vmax.f32 %v2379, 0.0
        %v2508 = vmax.f32 %v2380, 0.0
        %v2509 = vmax.f32 %v2381, 0.0
        %v2510 = vmax.f32 %v2382, 0.0
        %v2511 = vmax.f32 %v2383, 0.0
        %v2512 = vmax.f32 %v2384, 0.0
        %v2513 = vmax.f32 %v2385, 0.0
        %v2514 = vmax.f32 %v2386, 0.0
        %v2515 = vmax.f32 %v2387, 0.0
        %v2516 = vmax.f32 %v2388, 0.0
        %v2517 = vmax.f32 %v2389, 0.0
        %v2518 = vmax.f32 %v2390, 0.0
        %v2519 = vmax.f32 %v2391, 0.0
        %v2520 = vmax.f32 %v2392, 0.0
        %v2521 = vmax.f32 %v2393, 0.0
        %v2522 = vmax.f32 %v2394, 0.0
        %v2523 = vmax.f32 %v2395, 0.0
        %v2524 = vmax.f32 %v2396, 0.0
        %v2525 = vmax.f32 %v2397, 0.0
        %v2526 = vmax.f32 %v2398, 0.0
        %v2527 = vmax.f32 %v2399, 0.0
        %v2528 = vmax.f32 %v2400, 0.0
        %v2529 = vmax.f32 %v2401, 0.0
        %v2530 = vmax.f32 %v2402, 0.0
        %v2531 = vmax.f32 %v2403, 0.0
        %v2532 = vmax.f32 %v2404, 0.0
        %v2533 = vmax.f32 %v2405, 0.0
        %v2534 = vmax.f32 %v2406, 0.0
        %v2535 = vmax.f32 %v2407, 0.0
        %v2536 = vmax.f32 %v2408, 0.0
        %v2537 = vmax.f32 %v2409, 0.0
        %v2538 = vmax.f32 %v2410, 0.0
        %v2539 = vmax.f32 %v2411, 0.0
        %v2540 = vmax.f32 %v2412, 0.0
        %v2541 = vmax.f32 %v2413, 0.0
        %v2542 = vmax.f32 %v2414, 0.0
        %v2543 = vmax.f32 %v2415, 0.0
        %v2544 = vmax.f32 %v2416, 0.0
        %v2545 = vmax.f32 %v2417, 0.0
        %v2546 = vmax.f32 %v2418, 0.0
        %v2547 = vmax.f32 %v2419, 0.0
        %v2548 = vmax.f32 %v2420, 0.0
        %v2549 = vmax.f32 %v2421, 0.0
        %v2550 = vmax.f32 %v2422, 0.0
        %v2551 = vmax.f32 %v2423, 0.0
        %v2552 = vmax.f32 %v2424, 0.0
        %v2553 = vmax.f32 %v2425, 0.0
        %v2554 = vmax.f32 %v2426, 0.0
        %v2555 = vmax.f32 %v2427, 0.0
        %v2556 = vmax.f32 %v2428, 0.0
        %v2557 = vmax.f32 %v2429, 0.0
        %v2558 = vmax.f32 %v2430, 0.0
        %v2559 = vmax.f32 %v2431, 0.0
        %v2560 = vmax.f32 %v2432, 0.0
        %v2561 = vmax.f32 %v2433, 0.0
        %v2562 = vmax.f32 %v2434, 0.0
        %v2563 = vmax.f32 %v2435, 0.0
        %v2564 = vmax.f32 %v2436, 0.0
        %v2565 = vmax.f32 %v2437, 0.0
        %v2566 = vmax.f32 %v2438, 0.0
        %v2567 = vmax.f32 %v2439, 0.0
        %v2568 = vmax.f32 %v2440, 0.0
        %v2569 = vmax.f32 %v2441, 0.0
        %v2570 = vmax.f32 %v2442, 0.0
        %v2571 = vmax.f32 %v2443, 0.0
        %v2572 = vadd.f32 %v420, %v2188
        %v2573 = vadd.f32 %v421, %v2189
        %v2574 = vadd.f32 %v422, %v2190
        %v2575 = vadd.f32 %v423, %v2191
        %v2576 = vadd.f32 %v424, %v2192
        %v2577 = vadd.f32 %v425, %v2193
        %v2578 = vadd.f32 %v426, %v2194
        %v2579 = vadd.f32 %v427, %v2195
        %v2580 = vadd.f32 %v428, %v2196
        %v2581 = vadd.f32 %v429, %v2197
        %v2582 = vadd.f32 %v430, %v2198
        %v2583 = vadd.f32 %v431, %v2199
        %v2584 = vadd.f32 %v432, %v2200
        %v2585 = vadd.f32 %v433, %v2201
        %v2586 = vadd.f32 %v434, %v2202
        %v2587 = vadd.f32 %v435, %v2203
        %v2588 = vadd.f32 %v436, %v2204
        %v2589 = vadd.f32 %v437, %v2205
        %v2590 = vadd.f32 %v438, %v2206
        %v2591 = vadd.f32 %v439, %v2207
        %v2592 = vadd.f32 %v440, %v2208
        %v2593 = vadd.f32 %v441, %v2209
        %v2594 = vadd.f32 %v442, %v2210
        %v2595 = vadd.f32 %v443, %v2211
        %v2596 = vadd.f32 %v444, %v2212
        %v2597 = vadd.f32 %v445, %v2213
        %v2598 = vadd.f32 %v446, %v2214
        %v2599 = vadd.f32 %v447, %v2215
        %v2600 = vadd.f32 %v448, %v2216
        %v2601 = vadd.f32 %v449, %v2217
        %v2602 = vadd.f32 %v450, %v2218
        %v2603 = vadd.f32 %v451, %v2219
        %v2604 = vadd.f32 %v452, %v2220
        %v2605 = vadd.f32 %v453, %v2221
        %v2606 = vadd.f32 %v454, %v2222
        %v2607 = vadd.f32 %v455, %v2223
        %v2608 = vadd.f32 %v456, %v2224
        %v2609 = vadd.f32 %v457, %v2225
        %v2610 = vadd.f32 %v458, %v2226
        %v2611 = vadd.f32 %v459, %v2227
        %v2612 = vadd.f32 %v460, %v2228
        %v2613 = vadd.f32 %v461, %v2229
        %v2614 = vadd.f32 %v462, %v2230
        %v2615 = vadd.f32 %v463, %v2231
        %v2616 = vadd.f32 %v464, %v2232
        %v2617 = vadd.f32 %v465, %v2233
        %v2618 = vadd.f32 %v466, %v2234
        %v2619 = vadd.f32 %v467, %v2235
        %v2620 = vadd.f32 %v468, %v2236
        %v2621 = vadd.f32 %v469, %v2237
        %v2622 = vadd.f32 %v470, %v2238
        %v2623 = vadd.f32 %v471, %v2239
        %v2624 = vadd.f32 %v472, %v2240
        %v2625 = vadd.f32 %v473, %v2241
        %v2626 = vadd.f32 %v474, %v2242
        %v2627 = vadd.f32 %v475, %v2243
        %v2628 = vadd.f32 %v476, %v2244
        %v2629 = vadd.f32 %v477, %v2245
        %v2630 = vadd.f32 %v478, %v2246
        %v2631 = vadd.f32 %v479, %v2247
        %v2632 = vadd.f32 %v480, %v2248
        %v2633 = vadd.f32 %v481, %v2249
        %v2634 = vadd.f32 %v482, %v2250
        %v2635 = vadd.f32 %v483, %v2251
        %v2636 = vadd.f32 %v484, %v2252
        %v2637 = vadd.f32 %v485, %v2253
        %v2638 = vadd.f32 %v486, %v2254
        %v2639 = vadd.f32 %v487, %v2255
        %v2640 = vadd.f32 %v488, %v2256
        %v2641 = vadd.f32 %v489, %v2257
        %v2642 = vadd.f32 %v490, %v2258
        %v2643 = vadd.f32 %v491, %v2259
        %v2644 = vadd.f32 %v492, %v2260
        %v2645 = vadd.f32 %v493, %v2261
        %v2646 = vadd.f32 %v494, %v2262
        %v2647 = vadd.f32 %v495, %v2263
        %v2648 = vadd.f32 %v496, %v2264
        %v2649 = vadd.f32 %v497, %v2265
        %v2650 = vadd.f32 %v498, %v2266
        %v2651 = vadd.f32 %v499, %v2267
        %v2652 = vadd.f32 %v500, %v2268
        %v2653 = vadd.f32 %v501, %v2269
        %v2654 = vadd.f32 %v502, %v2270
        %v2655 = vadd.f32 %v503, %v2271
        %v2656 = vadd.f32 %v504, %v2272
        %v2657 = vadd.f32 %v505, %v2273
        %v2658 = vadd.f32 %v506, %v2274
        %v2659 = vadd.f32 %v507, %v2275
        %v2660 = vadd.f32 %v508, %v2276
        %v2661 = vadd.f32 %v509, %v2277
        %v2662 = vadd.f32 %v510, %v2278
        %v2663 = vadd.f32 %v511, %v2279
        %v2664 = vadd.f32 %v512, %v2280
        %v2665 = vadd.f32 %v513, %v2281
        %v2666 = vadd.f32 %v514, %v2282
        %v2667 = vadd.f32 %v515, %v2283
        %v2668 = vadd.f32 %v516, %v2284
        %v2669 = vadd.f32 %v517, %v2285
        %v2670 = vadd.f32 %v518, %v2286
        %v2671 = vadd.f32 %v519, %v2287
        %v2672 = vadd.f32 %v520, %v2288
        %v2673 = vadd.f32 %v521, %v2289
        %v2674 = vadd.f32 %v522, %v2290
        %v2675 = vadd.f32 %v523, %v2291
        %v2676 = vadd.f32 %v524, %v2292
        %v2677 = vadd.f32 %v525, %v2293
        %v2678 = vadd.f32 %v526, %v2294
        %v2679 = vadd.f32 %v527, %v2295
        %v2680 = vadd.f32 %v528, %v2296
        %v2681 = vadd.f32 %v529, %v2297
        %v2682 = vadd.f32 %v530, %v2298
        %v2683 = vadd.f32 %v531, %v2299
        %v2684 = vadd.f32 %v532, %v2300
        %v2685 = vadd.f32 %v533, %v2301
        %v2686 = vadd.f32 %v534, %v2302
        %v2687 = vadd.f32 %v535, %v2303
        %v2688 = vadd.f32 %v536, %v2304
        %v2689 = vadd.f32 %v537, %v2305
        %v2690 = vadd.f32 %v538, %v2306
        %v2691 = vadd.f32 %v539, %v2307
        %v2692 = vadd.f32 %v540, %v2308
        %v2693 = vadd.f32 %v541, %v2309
        %v2694 = vadd.f32 %v542, %v2310
        %v2695 = vadd.f32 %v543, %v2311
        %v2696 = vadd.f32 %v544, %v2312
        %v2697 = vadd.f32 %v545, %v2313
        %v2698 = vadd.f32 %v546, %v2314
        %v2699 = vadd.f32 %v547, %v2315
        %v2700 = vmax.f32 %v2572, 0.0
        %v2701 = vmax.f32 %v2573, 0.0
        %v2702 = vmax.f32 %v2574, 0.0
        %v2703 = vmax.f32 %v2575, 0.0
        %v2704 = vmax.f32 %v2576, 0.0
        %v2705 = vmax.f32 %v2577, 0.0
        %v2706 = vmax.f32 %v2578, 0.0
        %v2707 = vmax.f32 %v2579, 0.0
        %v2708 = vmax.f32 %v2580, 0.0
        %v2709 = vmax.f32 %v2581, 0.0
        %v2710 = vmax.f32 %v2582, 0.0
        %v2711 = vmax.f32 %v2583, 0.0
        %v2712 = vmax.f32 %v2584, 0.0
        %v2713 = vmax.f32 %v2585, 0.0
        %v2714 = vmax.f32 %v2586, 0.0
        %v2715 = vmax.f32 %v2587, 0.0
        %v2716 = vmax.f32 %v2588, 0.0
        %v2717 = vmax.f32 %v2589, 0.0
        %v2718 = vmax.f32 %v2590, 0.0
        %v2719 = vmax.f32 %v2591, 0.0
        %v2720 = vmax.f32 %v2592, 0.0
        %v2721 = vmax.f32 %v2593, 0.0
        %v2722 = vmax.f32 %v2594, 0.0
        %v2723 = vmax.f32 %v2595, 0.0
        %v2724 = vmax.f32 %v2596, 0.0
        %v2725 = vmax.f32 %v2597, 0.0
        %v2726 = vmax.f32 %v2598, 0.0
        %v2727 = vmax.f32 %v2599, 0.0
        %v2728 = vmax.f32 %v2600, 0.0
        %v2729 = vmax.f32 %v2601, 0.0
        %v2730 = vmax.f32 %v2602, 0.0
        %v2731 = vmax.f32 %v2603, 0.0
        %v2732 = vmax.f32 %v2604, 0.0
        %v2733 = vmax.f32 %v2605, 0.0
        %v2734 = vmax.f32 %v2606, 0.0
        %v2735 = vmax.f32 %v2607, 0.0
        %v2736 = vmax.f32 %v2608, 0.0
        %v2737 = vmax.f32 %v2609, 0.0
        %v2738 = vmax.f32 %v2610, 0.0
        %v2739 = vmax.f32 %v2611, 0.0
        %v2740 = vmax.f32 %v2612, 0.0
        %v2741 = vmax.f32 %v2613, 0.0
        %v2742 = vmax.f32 %v2614, 0.0
        %v2743 = vmax.f32 %v2615, 0.0
        %v2744 = vmax.f32 %v2616, 0.0
        %v2745 = vmax.f32 %v2617, 0.0
        %v2746 = vmax.f32 %v2618, 0.0
        %v2747 = vmax.f32 %v2619, 0.0
        %v2748 = vmax.f32 %v2620, 0.0
        %v2749 = vmax.f32 %v2621, 0.0
        %v2750 = vmax.f32 %v2622, 0.0
        %v2751 = vmax.f32 %v2623, 0.0
        %v2752 = vmax.f32 %v2624, 0.0
        %v2753 = vmax.f32 %v2625, 0.0
        %v2754 = vmax.f32 %v2626, 0.0
        %v2755 = vmax.f32 %v2627, 0.0
        %v2756 = vmax.f32 %v2628, 0.0
        %v2757 = vmax.f32 %v2629, 0.0
        %v2758 = vmax.f32 %v2630, 0.0
        %v2759 = vmax.f32 %v2631, 0.0
        %v2760 = vmax.f32 %v2632, 0.0
        %v2761 = vmax.f32 %v2633, 0.0
        %v2762 = vmax.f32 %v2634, 0.0
        %v2763 = vmax.f32 %v2635, 0.0
        %v2764 = vmax.f32 %v2636, 0.0
        %v2765 = vmax.f32 %v2637, 0.0
        %v2766 = vmax.f32 %v2638, 0.0
        %v2767 = vmax.f32 %v2639, 0.0
        %v2768 = vmax.f32 %v2640, 0.0
        %v2769 = vmax.f32 %v2641, 0.0
        %v2770 = vmax.f32 %v2642, 0.0
        %v2771 = vmax.f32 %v2643, 0.0
        %v2772 = vmax.f32 %v2644, 0.0
        %v2773 = vmax.f32 %v2645, 0.0
        %v2774 = vmax.f32 %v2646, 0.0
        %v2775 = vmax.f32 %v2647, 0.0
        %v2776 = vmax.f32 %v2648, 0.0
        %v2777 = vmax.f32 %v2649, 0.0
        %v2778 = vmax.f32 %v2650, 0.0
        %v2779 = vmax.f32 %v2651, 0.0
        %v2780 = vmax.f32 %v2652, 0.0
        %v2781 = vmax.f32 %v2653, 0.0
        %v2782 = vmax.f32 %v2654, 0.0
        %v2783 = vmax.f32 %v2655, 0.0
        %v2784 = vmax.f32 %v2656, 0.0
        %v2785 = vmax.f32 %v2657, 0.0
        %v2786 = vmax.f32 %v2658, 0.0
        %v2787 = vmax.f32 %v2659, 0.0
        %v2788 = vmax.f32 %v2660, 0.0
        %v2789 = vmax.f32 %v2661, 0.0
        %v2790 = vmax.f32 %v2662, 0.0
        %v2791 = vmax.f32 %v2663, 0.0
        %v2792 = vmax.f32 %v2664, 0.0
        %v2793 = vmax.f32 %v2665, 0.0
        %v2794 = vmax.f32 %v2666, 0.0
        %v2795 = vmax.f32 %v2667, 0.0
        %v2796 = vmax.f32 %v2668, 0.0
        %v2797 = vmax.f32 %v2669, 0.0
        %v2798 = vmax.f32 %v2670, 0.0
        %v2799 = vmax.f32 %v2671, 0.0
        %v2800 = vmax.f32 %v2672, 0.0
        %v2801 = vmax.f32 %v2673, 0.0
        %v2802 = vmax.f32 %v2674, 0.0
        %v2803 = vmax.f32 %v2675, 0.0
        %v2804 = vmax.f32 %v2676, 0.0
        %v2805 = vmax.f32 %v2677, 0.0
        %v2806 = vmax.f32 %v2678, 0.0
        %v2807 = vmax.f32 %v2679, 0.0
        %v2808 = vmax.f32 %v2680, 0.0
        %v2809 = vmax.f32 %v2681, 0.0
        %v2810 = vmax.f32 %v2682, 0.0
        %v2811 = vmax.f32 %v2683, 0.0
        %v2812 = vmax.f32 %v2684, 0.0
        %v2813 = vmax.f32 %v2685, 0.0
        %v2814 = vmax.f32 %v2686, 0.0
        %v2815 = vmax.f32 %v2687, 0.0
        %v2816 = vmax.f32 %v2688, 0.0
        %v2817 = vmax.f32 %v2689, 0.0
        %v2818 = vmax.f32 %v2690, 0.0
        %v2819 = vmax.f32 %v2691, 0.0
        %v2820 = vmax.f32 %v2692, 0.0
        %v2821 = vmax.f32 %v2693, 0.0
        %v2822 = vmax.f32 %v2694, 0.0
        %v2823 = vmax.f32 %v2695, 0.0
        %v2824 = vmax.f32 %v2696, 0.0
        %v2825 = vmax.f32 %v2697, 0.0
        %v2826 = vmax.f32 %v2698, 0.0
        %v2827 = vmax.f32 %v2699, 0.0
        %2828 = vst [vmem:[%s289] sm:$0xff] %v2444
        %2829 = vst [vmem:[%s289 + $0x8] sm:$0xff] %v2445
        %2830 = vst [vmem:[%s289 + $0x10] sm:$0xff] %v2446
        %2831 = vst [vmem:[%s289 + $0x18] sm:$0xff] %v2447
        %2832 = vst [vmem:[%s289 + $0x20] sm:$0xff] %v2448
        %2833 = vst [vmem:[%s289 + $0x28] sm:$0xff] %v2449
        %2834 = vst [vmem:[%s289 + $0x30] sm:$0xff] %v2450
        %2835 = vst [vmem:[%s289 + $0x38] sm:$0xff] %v2451
        %2836 = vst [vmem:[%s289 + $0x40] sm:$0xff] %v2452
        %2837 = vst [vmem:[%s289 + $0x48] sm:$0xff] %v2453
        %2838 = vst [vmem:[%s289 + $0x50] sm:$0xff] %v2454
        %2839 = vst [vmem:[%s289 + $0x58] sm:$0xff] %v2455
        %2840 = vst [vmem:[%s289 + $0x60] sm:$0xff] %v2456
        %2841 = vst [vmem:[%s289 + $0x68] sm:$0xff] %v2457
        %2842 = vst [vmem:[%s289 + $0x70] sm:$0xff] %v2458
        %2843 = vst [vmem:[%s289 + $0x78] sm:$0xff] %v2459
        %2844 = vst [vmem:[%s289 + $0x80] sm:$0xff] %v2460
        %2845 = vst [vmem:[%s289 + $0x88] sm:$0xff] %v2461
        %2846 = vst [vmem:[%s289 + $0x90] sm:$0xff] %v2462
        %2847 = vst [vmem:[%s289 + $0x98] sm:$0xff] %v2463
        %2848 = vst [vmem:[%s289 + $0xa0] sm:$0xff] %v2464
        %2849 = vst [vmem:[%s289 + $0xa8] sm:$0xff] %v2465
        %2850 = vst [vmem:[%s289 + $0xb0] sm:$0xff] %v2466
        %2851 = vst [vmem:[%s289 + $0xb8] sm:$0xff] %v2467
        %2852 = vst [vmem:[%s289 + $0xc0] sm:$0xff] %v2468
        %2853 = vst [vmem:[%s289 + $0xc8] sm:$0xff] %v2469
        %2854 = vst [vmem:[%s289 + $0xd0] sm:$0xff] %v2470
        %2855 = vst [vmem:[%s289 + $0xd8] sm:$0xff] %v2471
        %2856 = vst [vmem:[%s289 + $0xe0] sm:$0xff] %v2472
        %2857 = vst [vmem:[%s289 + $0xe8] sm:$0xff] %v2473
        %2858 = vst [vmem:[%s289 + $0xf0] sm:$0xff] %v2474
        %2859 = vst [vmem:[%s289 + $0xf8] sm:$0xff] %v2475
        %2860 = vst [vmem:[%s289 + $0x100] sm:$0xff] %v2476
        %2861 = vst [vmem:[%s289 + $0x108] sm:$0xff] %v2477
        %2862 = vst [vmem:[%s289 + $0x110] sm:$0xff] %v2478
        %2863 = vst [vmem:[%s289 + $0x118] sm:$0xff] %v2479
        %2864 = vst [vmem:[%s289 + $0x120] sm:$0xff] %v2480
        %2865 = vst [vmem:[%s289 + $0x128] sm:$0xff] %v2481
        %2866 = vst [vmem:[%s289 + $0x130] sm:$0xff] %v2482
        %2867 = vst [vmem:[%s289 + $0x138] sm:$0xff] %v2483
        %2868 = vst [vmem:[%s289 + $0x140] sm:$0xff] %v2484
        %2869 = vst [vmem:[%s289 + $0x148] sm:$0xff] %v2485
        %2870 = vst [vmem:[%s289 + $0x150] sm:$0xff] %v2486
        %2871 = vst [vmem:[%s289 + $0x158] sm:$0xff] %v2487
        %2872 = vst [vmem:[%s289 + $0x160] sm:$0xff] %v2488
        %2873 = vst [vmem:[%s289 + $0x168] sm:$0xff] %v2489
        %2874 = vst [vmem:[%s289 + $0x170] sm:$0xff] %v2490
        %2875 = vst [vmem:[%s289 + $0x178] sm:$0xff] %v2491
        %2876 = vst [vmem:[%s289 + $0x180] sm:$0xff] %v2492
        %2877 = vst [vmem:[%s289 + $0x188] sm:$0xff] %v2493
        %2878 = vst [vmem:[%s289 + $0x190] sm:$0xff] %v2494
        %2879 = vst [vmem:[%s289 + $0x198] sm:$0xff] %v2495
        %2880 = vst [vmem:[%s289 + $0x1a0] sm:$0xff] %v2496
        %2881 = vst [vmem:[%s289 + $0x1a8] sm:$0xff] %v2497
        %2882 = vst [vmem:[%s289 + $0x1b0] sm:$0xff] %v2498
        %2883 = vst [vmem:[%s289 + $0x1b8] sm:$0xff] %v2499
        %2884 = vst [vmem:[%s289 + $0x1c0] sm:$0xff] %v2500
        %2885 = vst [vmem:[%s289 + $0x1c8] sm:$0xff] %v2501
        %2886 = vst [vmem:[%s289 + $0x1d0] sm:$0xff] %v2502
        %2887 = vst [vmem:[%s289 + $0x1d8] sm:$0xff] %v2503
        %2888 = vst [vmem:[%s289 + $0x1e0] sm:$0xff] %v2504
        %2889 = vst [vmem:[%s289 + $0x1e8] sm:$0xff] %v2505
        %2890 = vst [vmem:[%s289 + $0x1f0] sm:$0xff] %v2506
        %2891 = vst [vmem:[%s289 + $0x1f8] sm:$0xff] %v2507
        %2892 = vst [vmem:[%s289 + $0x200] sm:$0xff] %v2508
        %2893 = vst [vmem:[%s289 + $0x208] sm:$0xff] %v2509
        %2894 = vst [vmem:[%s289 + $0x210] sm:$0xff] %v2510
        %2895 = vst [vmem:[%s289 + $0x218] sm:$0xff] %v2511
        %2896 = vst [vmem:[%s289 + $0x220] sm:$0xff] %v2512
        %2897 = vst [vmem:[%s289 + $0x228] sm:$0xff] %v2513
        %2898 = vst [vmem:[%s289 + $0x230] sm:$0xff] %v2514
        %2899 = vst [vmem:[%s289 + $0x238] sm:$0xff] %v2515
        %2900 = vst [vmem:[%s289 + $0x240] sm:$0xff] %v2516
        %2901 = vst [vmem:[%s289 + $0x248] sm:$0xff] %v2517
        %2902 = vst [vmem:[%s289 + $0x250] sm:$0xff] %v2518
        %2903 = vst [vmem:[%s289 + $0x258] sm:$0xff] %v2519
        %2904 = vst [vmem:[%s289 + $0x260] sm:$0xff] %v2520
        %2905 = vst [vmem:[%s289 + $0x268] sm:$0xff] %v2521
        %2906 = vst [vmem:[%s289 + $0x270] sm:$0xff] %v2522
        %2907 = vst [vmem:[%s289 + $0x278] sm:$0xff] %v2523
        %2908 = vst [vmem:[%s289 + $0x280] sm:$0xff] %v2524
        %2909 = vst [vmem:[%s289 + $0x288] sm:$0xff] %v2525
        %2910 = vst [vmem:[%s289 + $0x290] sm:$0xff] %v2526
        %2911 = vst [vmem:[%s289 + $0x298] sm:$0xff] %v2527
        %2912 = vst [vmem:[%s289 + $0x2a0] sm:$0xff] %v2528
        %2913 = vst [vmem:[%s289 + $0x2a8] sm:$0xff] %v2529
        %2914 = vst [vmem:[%s289 + $0x2b0] sm:$0xff] %v2530
        %2915 = vst [vmem:[%s289 + $0x2b8] sm:$0xff] %v2531
        %2916 = vst [vmem:[%s289 + $0x2c0] sm:$0xff] %v2532
        %2917 = vst [vmem:[%s289 + $0x2c8] sm:$0xff] %v2533
        %2918 = vst [vmem:[%s289 + $0x2d0] sm:$0xff] %v2534
        %2919 = vst [vmem:[%s289 + $0x2d8] sm:$0xff] %v2535
        %2920 = vst [vmem:[%s289 + $0x2e0] sm:$0xff] %v2536
        %2921 = vst [vmem:[%s289 + $0x2e8] sm:$0xff] %v2537
        %2922 = vst [vmem:[%s289 + $0x2f0] sm:$0xff] %v2538
        %2923 = vst [vmem:[%s289 + $0x2f8] sm:$0xff] %v2539
        %2924 = vst [vmem:[%s289 + $0x300] sm:$0xff] %v2540
        %2925 = vst [vmem:[%s289 + $0x308] sm:$0xff] %v2541
        %2926 = vst [vmem:[%s289 + $0x310] sm:$0xff] %v2542
        %2927 = vst [vmem:[%s289 + $0x318] sm:$0xff] %v2543
        %2928 = vst [vmem:[%s289 + $0x320] sm:$0xff] %v2544
        %2929 = vst [vmem:[%s289 + $0x328] sm:$0xff] %v2545
        %2930 = vst [vmem:[%s289 + $0x330] sm:$0xff] %v2546
        %2931 = vst [vmem:[%s289 + $0x338] sm:$0xff] %v2547
        %2932 = vst [vmem:[%s289 + $0x340] sm:$0xff] %v2548
        %2933 = vst [vmem:[%s289 + $0x348] sm:$0xff] %v2549
        %2934 = vst [vmem:[%s289 + $0x350] sm:$0xff] %v2550
        %2935 = vst [vmem:[%s289 + $0x358] sm:$0xff] %v2551
        %2936 = vst [vmem:[%s289 + $0x360] sm:$0xff] %v2552
        %2937 = vst [vmem:[%s289 + $0x368] sm:$0xff] %v2553
        %2938 = vst [vmem:[%s289 + $0x370] sm:$0xff] %v2554
        %2939 = vst [vmem:[%s289 + $0x378] sm:$0xff] %v2555
        %2940 = vst [vmem:[%s289 + $0x380] sm:$0xff] %v2556
        %2941 = vst [vmem:[%s289 + $0x388] sm:$0xff] %v2557
        %2942 = vst [vmem:[%s289 + $0x390] sm:$0xff] %v2558
        %2943 = vst [vmem:[%s289 + $0x398] sm:$0xff] %v2559
        %2944 = vst [vmem:[%s289 + $0x3a0] sm:$0xff] %v2560
        %2945 = vst [vmem:[%s289 + $0x3a8] sm:$0xff] %v2561
        %2946 = vst [vmem:[%s289 + $0x3b0] sm:$0xff] %v2562
        %2947 = vst [vmem:[%s289 + $0x3b8] sm:$0xff] %v2563
        %2948 = vst [vmem:[%s289 + $0x3c0] sm:$0xff] %v2564
        %2949 = vst [vmem:[%s289 + $0x3c8] sm:$0xff] %v2565
        %2950 = vst [vmem:[%s289 + $0x3d0] sm:$0xff] %v2566
        %2951 = vst [vmem:[%s289 + $0x3d8] sm:$0xff] %v2567
        %2952 = vst [vmem:[%s289 + $0x3e0] sm:$0xff] %v2568
        %2953 = vst [vmem:[%s289 + $0x3e8] sm:$0xff] %v2569
        %2954 = vst [vmem:[%s289 + $0x3f0] sm:$0xff] %v2570
        %2955 = vst [vmem:[%s289 + $0x3f8] sm:$0xff] %v2571
        %2956 = vst [vmem:[%s289 + $0x400] sm:$0xff] %v2700
        %2957 = vst [vmem:[%s289 + $0x408] sm:$0xff] %v2701
        %2958 = vst [vmem:[%s289 + $0x410] sm:$0xff] %v2702
        %2959 = vst [vmem:[%s289 + $0x418] sm:$0xff] %v2703
        %2960 = vst [vmem:[%s289 + $0x420] sm:$0xff] %v2704
        %2961 = vst [vmem:[%s289 + $0x428] sm:$0xff] %v2705
        %2962 = vst [vmem:[%s289 + $0x430] sm:$0xff] %v2706
        %2963 = vst [vmem:[%s289 + $0x438] sm:$0xff] %v2707
        %2964 = vst [vmem:[%s289 + $0x440] sm:$0xff] %v2708
        %2965 = vst [vmem:[%s289 + $0x448] sm:$0xff] %v2709
        %2966 = vst [vmem:[%s289 + $0x450] sm:$0xff] %v2710
        %2967 = vst [vmem:[%s289 + $0x458] sm:$0xff] %v2711
        %2968 = vst [vmem:[%s289 + $0x460] sm:$0xff] %v2712
        %2969 = vst [vmem:[%s289 + $0x468] sm:$0xff] %v2713
        %2970 = vst [vmem:[%s289 + $0x470] sm:$0xff] %v2714
        %2971 = vst [vmem:[%s289 + $0x478] sm:$0xff] %v2715
        %2972 = vst [vmem:[%s289 + $0x480] sm:$0xff] %v2716
        %2973 = vst [vmem:[%s289 + $0x488] sm:$0xff] %v2717
        %2974 = vst [vmem:[%s289 + $0x490] sm:$0xff] %v2718
        %2975 = vst [vmem:[%s289 + $0x498] sm:$0xff] %v2719
        %2976 = vst [vmem:[%s289 + $0x4a0] sm:$0xff] %v2720
        %2977 = vst [vmem:[%s289 + $0x4a8] sm:$0xff] %v2721
        %2978 = vst [vmem:[%s289 + $0x4b0] sm:$0xff] %v2722
        %2979 = vst [vmem:[%s289 + $0x4b8] sm:$0xff] %v2723
        %2980 = vst [vmem:[%s289 + $0x4c0] sm:$0xff] %v2724
        %2981 = vst [vmem:[%s289 + $0x4c8] sm:$0xff] %v2725
        %2982 = vst [vmem:[%s289 + $0x4d0] sm:$0xff] %v2726
        %2983 = vst [vmem:[%s289 + $0x4d8] sm:$0xff] %v2727
        %2984 = vst [vmem:[%s289 + $0x4e0] sm:$0xff] %v2728
        %2985 = vst [vmem:[%s289 + $0x4e8] sm:$0xff] %v2729
        %2986 = vst [vmem:[%s289 + $0x4f0] sm:$0xff] %v2730
        %2987 = vst [vmem:[%s289 + $0x4f8] sm:$0xff] %v2731
        %2988 = vst [vmem:[%s289 + $0x500] sm:$0xff] %v2732
        %2989 = vst [vmem:[%s289 + $0x508] sm:$0xff] %v2733
        %2990 = vst [vmem:[%s289 + $0x510] sm:$0xff] %v2734
        %2991 = vst [vmem:[%s289 + $0x518] sm:$0xff] %v2735
        %2992 = vst [vmem:[%s289 + $0x520] sm:$0xff] %v2736
        %2993 = vst [vmem:[%s289 + $0x528] sm:$0xff] %v2737
        %2994 = vst [vmem:[%s289 + $0x530] sm:$0xff] %v2738
        %2995 = vst [vmem:[%s289 + $0x538] sm:$0xff] %v2739
        %2996 = vst [vmem:[%s289 + $0x540] sm:$0xff] %v2740
        %2997 = vst [vmem:[%s289 + $0x548] sm:$0xff] %v2741
        %2998 = vst [vmem:[%s289 + $0x550] sm:$0xff] %v2742
        %2999 = vst [vmem:[%s289 + $0x558] sm:$0xff] %v2743
        %3000 = vst [vmem:[%s289 + $0x560] sm:$0xff] %v2744
        %3001 = vst [vmem:[%s289 + $0x568] sm:$0xff] %v2745
        %3002 = vst [vmem:[%s289 + $0x570] sm:$0xff] %v2746
        %3003 = vst [vmem:[%s289 + $0x578] sm:$0xff] %v2747
        %3004 = vst [vmem:[%s289 + $0x580] sm:$0xff] %v2748
        %3005 = vst [vmem:[%s289 + $0x588] sm:$0xff] %v2749
        %3006 = vst [vmem:[%s289 + $0x590] sm:$0xff] %v2750
        %3007 = vst [vmem:[%s289 + $0x598] sm:$0xff] %v2751
        %3008 = vst [vmem:[%s289 + $0x5a0] sm:$0xff] %v2752
        %3009 = vst [vmem:[%s289 + $0x5a8] sm:$0xff] %v2753
        %3010 = vst [vmem:[%s289 + $0x5b0] sm:$0xff] %v2754
        %3011 = vst [vmem:[%s289 + $0x5b8] sm:$0xff] %v2755
        %3012 = vst [vmem:[%s289 + $0x5c0] sm:$0xff] %v2756
        %3013 = vst [vmem:[%s289 + $0x5c8] sm:$0xff] %v2757
        %3014 = vst [vmem:[%s289 + $0x5d0] sm:$0xff] %v2758
        %3015 = vst [vmem:[%s289 + $0x5d8] sm:$0xff] %v2759
        %3016 = vst [vmem:[%s289 + $0x5e0] sm:$0xff] %v2760
        %3017 = vst [vmem:[%s289 + $0x5e8] sm:$0xff] %v2761
        %3018 = vst [vmem:[%s289 + $0x5f0] sm:$0xff] %v2762
        %3019 = vst [vmem:[%s289 + $0x5f8] sm:$0xff] %v2763
        %3020 = vst [vmem:[%s289 + $0x600] sm:$0xff] %v2764
        %3021 = vst [vmem:[%s289 + $0x608] sm:$0xff] %v2765
        %3022 = vst [vmem:[%s289 + $0x610] sm:$0xff] %v2766
        %3023 = vst [vmem:[%s289 + $0x618] sm:$0xff] %v2767
        %3024 = vst [vmem:[%s289 + $0x620] sm:$0xff] %v2768
        %3025 = vst [vmem:[%s289 + $0x628] sm:$0xff] %v2769
        %3026 = vst [vmem:[%s289 + $0x630] sm:$0xff] %v2770
        %3027 = vst [vmem:[%s289 + $0x638] sm:$0xff] %v2771
        %3028 = vst [vmem:[%s289 + $0x640] sm:$0xff] %v2772
        %3029 = vst [vmem:[%s289 + $0x648] sm:$0xff] %v2773
        %3030 = vst [vmem:[%s289 + $0x650] sm:$0xff] %v2774
        %3031 = vst [vmem:[%s289 + $0x658] sm:$0xff] %v2775
        %3032 = vst [vmem:[%s289 + $0x660] sm:$0xff] %v2776
        %3033 = vst [vmem:[%s289 + $0x668] sm:$0xff] %v2777
        %3034 = vst [vmem:[%s289 + $0x670] sm:$0xff] %v2778
        %3035 = vst [vmem:[%s289 + $0x678] sm:$0xff] %v2779
        %3036 = vst [vmem:[%s289 + $0x680] sm:$0xff] %v2780
        %3037 = vst [vmem:[%s289 + $0x688] sm:$0xff] %v2781
        %3038 = vst [vmem:[%s289 + $0x690] sm:$0xff] %v2782
        %3039 = vst [vmem:[%s289 + $0x698] sm:$0xff] %v2783
        %3040 = vst [vmem:[%s289 + $0x6a0] sm:$0xff] %v2784
        %3041 = vst [vmem:[%s289 + $0x6a8] sm:$0xff] %v2785
        %3042 = vst [vmem:[%s289 + $0x6b0] sm:$0xff] %v2786
        %3043 = vst [vmem:[%s289 + $0x6b8] sm:$0xff] %v2787
        %3044 = vst [vmem:[%s289 + $0x6c0] sm:$0xff] %v2788
        %3045 = vst [vmem:[%s289 + $0x6c8] sm:$0xff] %v2789
        %3046 = vst [vmem:[%s289 + $0x6d0] sm:$0xff] %v2790
        %3047 = vst [vmem:[%s289 + $0x6d8] sm:$0xff] %v2791
        %3048 = vst [vmem:[%s289 + $0x6e0] sm:$0xff] %v2792
        %3049 = vst [vmem:[%s289 + $0x6e8] sm:$0xff] %v2793
        %3050 = vst [vmem:[%s289 + $0x6f0] sm:$0xff] %v2794
        %3051 = vst [vmem:[%s289 + $0x6f8] sm:$0xff] %v2795
        %3052 = vst [vmem:[%s289 + $0x700] sm:$0xff] %v2796
        %3053 = vst [vmem:[%s289 + $0x708] sm:$0xff] %v2797
        %3054 = vst [vmem:[%s289 + $0x710] sm:$0xff] %v2798
        %3055 = vst [vmem:[%s289 + $0x718] sm:$0xff] %v2799
        %3056 = vst [vmem:[%s289 + $0x720] sm:$0xff] %v2800
        %3057 = vst [vmem:[%s289 + $0x728] sm:$0xff] %v2801
        %3058 = vst [vmem:[%s289 + $0x730] sm:$0xff] %v2802
        %3059 = vst [vmem:[%s289 + $0x738] sm:$0xff] %v2803
        %3060 = vst [vmem:[%s289 + $0x740] sm:$0xff] %v2804
        %3061 = vst [vmem:[%s289 + $0x748] sm:$0xff] %v2805
        %3062 = vst [vmem:[%s289 + $0x750] sm:$0xff] %v2806
        %3063 = vst [vmem:[%s289 + $0x758] sm:$0xff] %v2807
        %3064 = vst [vmem:[%s289 + $0x760] sm:$0xff] %v2808
        %3065 = vst [vmem:[%s289 + $0x768] sm:$0xff] %v2809
        %3066 = vst [vmem:[%s289 + $0x770] sm:$0xff] %v2810
        %3067 = vst [vmem:[%s289 + $0x778] sm:$0xff] %v2811
        %3068 = vst [vmem:[%s289 + $0x780] sm:$0xff] %v2812
        %3069 = vst [vmem:[%s289 + $0x788] sm:$0xff] %v2813
        %3070 = vst [vmem:[%s289 + $0x790] sm:$0xff] %v2814
        %3071 = vst [vmem:[%s289 + $0x798] sm:$0xff] %v2815
        %3072 = vst [vmem:[%s289 + $0x7a0] sm:$0xff] %v2816
        %3073 = vst [vmem:[%s289 + $0x7a8] sm:$0xff] %v2817
        %3074 = vst [vmem:[%s289 + $0x7b0] sm:$0xff] %v2818
        %3075 = vst [vmem:[%s289 + $0x7b8] sm:$0xff] %v2819
        %3076 = vst [vmem:[%s289 + $0x7c0] sm:$0xff] %v2820
        %3077 = vst [vmem:[%s289 + $0x7c8] sm:$0xff] %v2821
        %3078 = vst [vmem:[%s289 + $0x7d0] sm:$0xff] %v2822
        %3079 = vst [vmem:[%s289 + $0x7d8] sm:$0xff] %v2823
        %3080 = vst [vmem:[%s289 + $0x7e0] sm:$0xff] %v2824
        %3081 = vst [vmem:[%s289 + $0x7e8] sm:$0xff] %v2825
        %3082 = vst [vmem:[%s289 + $0x7f0] sm:$0xff] %v2826
        %3083 = vst [vmem:[%s289 + $0x7f8] sm:$0xff] %v2827
        %s3084 = sand.u32 %s157, 1
        %s3085 = scalar_lea.sflag [#allocation4], %s3084
        %s3086 = sand.u32 %s157, 1
        %s3087 = smul.addr %s3086, 2048
        %s3088 = scalar_lea.vmem [#allocation8], %s3087
        // Predicated region
        $region53: #{tpu_custom_call.1} parent=39 // pred_check
          %p3089 = pneg %p167
        $region54: #{tpu_custom_call.1} parent=39 // pred_check_branch
          %3091 = sbr.rel (%p3089) target = $region56
        $region55: #{tpu_custom_call.1} parent=39 // pred_region
          %s3092 = smul.u32 8, %s28
          %s3094 = ssub.s32 32768, 32768
          %3095 = vsyncadd %s3085, %s3094
          %s3096 = smul.addr %s27, 256
          %s3097 = sadd.s32 %s3092, %s3096
          %s3098 = smul.addr %s3097, 128
          %s3099 = scalar_lea.hbm %s5, %s3098
          %s3100 = sshll.u32 %s3088, 4
          %s3101 = int_to_ptr.vmem [resolvable:$true] %s3100
          %3106 = dma.vmem_to_hbm [thread:$0]  %s3101, 32768, %s3099, %s3085, 1024, 1024, 64
        $region56: #{tpu_custom_call.1} parent=39 // pred_fallthru
          _
      $region40: #{tpu_custom_call.1} parent=5 // pred_fallthru
        _
      %p3107 = scmp.le.s32.totalorder 2, %s18
      // Predicated region
      $region57: #{tpu_custom_call.1} parent=5 // pred_check
        %p3108 = pneg %p3107
      $region58: #{tpu_custom_call.1} parent=5 // pred_check_branch
        %3110 = sbr.rel (%p3108) target = $region60
      $region59: #{tpu_custom_call.1} parent=5 // pred_region
        %s3111 = ssub.s32 %s18, 2
        // Predicated region
        $region61: #{tpu_custom_call.1} parent=59 // pred_check
          %p3112 = pneg %p173
        $region62: #{tpu_custom_call.1} parent=59 // pred_check_branch
          %3114 = sbr.rel (%p3112) target = $region64
        $region63: #{tpu_custom_call.1} parent=59 // pred_region
          %s3115 = sand.u32 %s158, 1
          %s3116 = scalar_lea.sflag [#allocation4], %s3115
          %s3117 = sand.u32 %s158, 1
          %s3118 = smul.addr %s3117, 2048
          %s3119 = scalar_lea.vmem [#allocation8], %s3118
          %3120 = dma.done %s3116, 32768
        $region64: #{tpu_custom_call.1} parent=59 // pred_fallthru
          _
      $region60: #{tpu_custom_call.1} parent=5 // pred_fallthru
        _
    $region6: #{tpu_custom_call.1} parent=1 // loop_footer
      %s22 = sadd.s32 1, %s18
    $region7: #{tpu_custom_call.1} parent=1 // loop_footer_branch
      %17 = sbr.rel target = $region3
    $region8: #{tpu_custom_call.1} parent=1 // loop_exit
      _
    %3121 = vsyncpa [#allocation3], 1
    %s3122 = scalar_lea.sflag [#allocation3], 1
    %3123 = vsyncpa %s3122, 1
    %3124 = vsyncpa [#allocation6], 1
    %3125 = vsyncpa [#allocation4], 1
    %s3126 = scalar_lea.sflag [#allocation4], 1
    %3127 = vsyncpa %s3126, 1

</llo_original>
